<compile_context>
chip_gen: v7x
topology: tpu7x:2x2x1
jax: 0.10.0
libtpu: 0.0.40
codegen_flags: <defaults>
</compile_context>

<pallas_src>
import jax
import jax.numpy as jnp
import numpy as np
from jax.experimental import pallas as pl
from jax.experimental.pallas import tpu as pltpu

PAD = 3                 # max conv padding (7x7 branch)
KTAPS = 2 * PAD + 1     # 7 — shared tap grid for every spatial conv
HIGHEST = jax.lax.Precision.HIGHEST


def _sigmoid(x):
    # exact divide kept on purpose: approximate-reciprocal error would
    # propagate through the softmax and break the 1e-3 tolerance.
    return 1.0 / (1.0 + jnp.exp(-x))


# ----------------------------------------------------------------------------
# Parameter construction (deterministic, BN folded into conv weight + bias)
# ----------------------------------------------------------------------------
def _init_conv_bn(key, K, cin, cout):
    kw, kg, kb, km, kv = jax.random.split(key, 5)
    w = 0.2 * jax.random.normal(kw, (K, K, cin, cout), jnp.float32)
    gamma = 1.0 + 0.1 * jax.random.normal(kg, (cout,), jnp.float32)
    beta = 0.1 * jax.random.normal(kb, (cout,), jnp.float32)
    mean = 0.1 * jax.random.normal(km, (cout,), jnp.float32)
    var = 0.5 + 0.5 * jax.random.uniform(kv, (cout,), jnp.float32)
    scale = gamma / jnp.sqrt(var + 1e-5)
    w_fold = w * scale                         # fold BN scale into conv weight
    b_fold = (beta - mean * scale).reshape(1, cout)
    return w_fold, b_fold


def init_params(key, dim_pv, reduction=4):
    cr = dim_pv // reduction
    ks = jax.random.split(key, 9)
    P = {}
    P['w_l1_4d'], P['b_l1'] = _init_conv_bn(ks[0], 3, 4, cr)
    P['w_l2_4d'], P['b_l2'] = _init_conv_bn(ks[1], 5, 4, cr)
    P['w_g_4d'], P['b_g'] = _init_conv_bn(ks[2], 7, 4, cr)
    w, b = _init_conv_bn(ks[3], 1, 4, cr)
    P['w_gap'], P['b_gap'] = w.reshape(4, cr), b
    w, b = _init_conv_bn(ks[4], 1, 4 * cr, dim_pv)
    P['w_fuse'], P['b_fuse'] = w.reshape(4 * cr, dim_pv), b
    P['w_pv1_4d'], P['b_pv1'] = _init_conv_bn(ks[5], 3, 2, cr)
    w, b = _init_conv_bn(ks[6], 1, cr, dim_pv)
    P['w_pv2'], P['b_pv2'] = w.reshape(cr, dim_pv), b
    P['w_art1_4d'], P['b_art1'] = _init_conv_bn(ks[7], 3, 2, cr)
    w, b = _init_conv_bn(ks[8], 1, cr, dim_pv)
    P['w_art2'], P['b_art2'] = w.reshape(cr, dim_pv), b
    return P


# ----------------------------------------------------------------------------
# Host-side weight packing (im2col + block-diagonal 1x1) for the fused kernel
# ----------------------------------------------------------------------------
_PACKED_KEYS = ['w_spat', 'b_spat', 'w_gap', 'b_gap', 'w_fuse_gap', 'w_pw', 'b_pw']


def pack_params(P):
    Cr = P['w_gap'].shape[1]
    C = P['w_fuse'].shape[1]

    # ---- all 5 spatial convs on one 7x7x4 tap grid -> (196, 5*Cr) weight ----
    Wtaps = jnp.zeros((KTAPS, KTAPS, 4, 5 * Cr), jnp.float32)

    def place(Wt, w, c_lo, o_lo):
        K, _, cin, cout = w.shape
        off = PAD - K // 2
        return Wt.at[off:off + K, off:off + K,
                     c_lo:c_lo + cin, o_lo:o_lo + cout].set(w)

    Wtaps = place(Wtaps, P['w_l1_4d'], 0, 0)          # 3x3, all 4 channels
    Wtaps = place(Wtaps, P['w_l2_4d'], 0, Cr)         # 5x5, all 4 channels
    Wtaps = place(Wtaps, P['w_g_4d'], 0, 2 * Cr)      # 7x7, all 4 channels
    Wtaps = place(Wtaps, P['w_pv1_4d'], 0, 3 * Cr)    # 3x3, (pv_avg, pv_max)
    Wtaps = place(Wtaps, P['w_art1_4d'], 2, 4 * Cr)   # 3x3, (art_avg, art_max)
    # in-kernel im2col column order is (dw, dh, c): swap kh<->kw then flatten
    w_spat = jnp.transpose(Wtaps, (1, 0, 2, 3)).reshape(KTAPS * KTAPS * 4, 5 * Cr)
    b_spat = jnp.concatenate([P['b_l1'], P['b_l2'], P['b_g'],
                              P['b_pv1'], P['b_art1']], axis=-1)      # (1, 5*Cr)

    # ---- fuse / pv-gate / art-gate 1x1 convs as one block matrix ----
    w_pw = jnp.zeros((5 * Cr, 3 * C), jnp.float32)
    w_pw = w_pw.at[0:3 * Cr, 0:C].set(P['w_fuse'][0:3 * Cr])          # c3|c5|c7 rows
    w_pw = w_pw.at[3 * Cr:4 * Cr, C:2 * C].set(P['w_pv2'])
    w_pw = w_pw.at[4 * Cr:5 * Cr, 2 * C:3 * C].set(P['w_art2'])
    b_pw = jnp.concatenate([P['b_fuse'], P['b_pv2'], P['b_art2']], axis=-1)  # (1, 3*C)
    w_fuse_gap = P['w_fuse'][3 * Cr:4 * Cr]                            # (Cr, C)

    return dict(w_spat=w_spat, b_spat=b_spat, w_gap=P['w_gap'], b_gap=P['b_gap'],
                w_fuse_gap=w_fuse_gap, w_pw=w_pw, b_pw=b_pw)


# ----------------------------------------------------------------------------
# Pallas kernel + wrapper
# ----------------------------------------------------------------------------
def pf_forward(pv, art, packed):
    B, H, W, C = pv.shape
    HW = H * W
    Cr = packed['w_gap'].shape[1]
    weights = [packed[k] for k in _PACKED_KEYS]

    def kernel(pv_ref, art_ref, wsp, bsp, wgap, bgap, wfg, wpw, bpw,
               mpv_ref, mart_ref, agg_ref):
        f32 = jnp.float32
        pvx = pv_ref[0].astype(f32)      # (HW, C)
        artx = art_ref[0].astype(f32)

        # 4-channel spatial descriptor (channel = lane dim)
        pv_avg = jnp.mean(pvx, axis=-1, keepdims=True)
        pv_max = jnp.max(pvx, axis=-1, keepdims=True)
        art_avg = jnp.mean(artx, axis=-1, keepdims=True)
        art_max = jnp.max(artx, axis=-1, keepdims=True)
        f4 = jnp.concatenate([pv_avg, pv_max, art_avg, art_max], axis=-1)  # (HW, 4)

        # zero-padded 4-channel map (padding 3 covers all tap grids)
        f4_hw = f4.reshape(H, W, 4)
        zr = jnp.zeros((PAD, W, 4), f32)
        f4v = jnp.concatenate([zr, f4_hw, zr], axis=0)         # (H+6, W, 4)
        zc = jnp.zeros((H + 2 * PAD, PAD, 4), f32)
        f4p = jnp.concatenate([zc, f4v, zc], axis=1)           # (H+6, W+6, 4)

        # im2col in two stages: 7 row-shift concats + 7 col-shift concats
        # patches[h, w, dw*28 + dh*4 + c] = f4p[h+dh, w+dw, c]
        rows = jnp.concatenate([f4p[dh:dh + H] for dh in range(KTAPS)],
                               axis=-1)                        # (H, W+6, 28)
        patches = jnp.concatenate([rows[:, dw:dw + W, :] for dw in range(KTAPS)],
                                  axis=-1)                     # (H, W, 196)
        patches = patches.reshape(HW, KTAPS * KTAPS * 4)       # (HW, 196)

        # ALL five spatial convs (+ folded BN biases) in one MXU matmul
        conv5 = jnp.dot(patches, wsp[...],
                        preferred_element_type=f32) + bsp[...]  # (HW, 5*Cr)
        # ReLU only the two gate branches (output columns >= 3*Cr)
        colid = jax.lax.broadcasted_iota(jnp.int32, conv5.shape, 1)
        act5 = jnp.where(colid < 3 * Cr, conv5, jnp.maximum(conv5, 0.0))

        # GAP branch: 1x1 conv + BN + ReLU on the global mean; bilinear upsample
        # from 1x1 (align_corners=True) is a broadcast, so its fuse-conv
        # contribution is a constant row folded into the 1x1 bias.
        gmean = jnp.mean(f4, axis=0, keepdims=True)            # (1, 4)
        gvec = jnp.maximum(
            jnp.dot(gmean, wgap[...], preferred_element_type=f32) + bgap[...], 0.0)
        gap_c = jnp.dot(gvec, wfg[...], preferred_element_type=f32)   # (1, C)
        bias = bpw[...] + jnp.concatenate(
            [gap_c, jnp.zeros((1, 2 * C), f32)], axis=-1)      # (1, 3*C)

        # fused 1x1 convs (fuse / pv gate / art gate) + sigmoid, one matmul
        gates = _sigmoid(jnp.dot(act5, wpw[...],
                                 preferred_element_type=f32) + bias)   # (HW, 3*C)
        fagg = gates[:, 0:C]
        pvw = gates[:, C:2 * C]
        artw = gates[:, 2 * C:3 * C]

        # softmax over the three gates per (pixel, channel) — exact divide:
        # the approx-reciprocal error does NOT cancel in agg and breaks 1e-3.
        m = jnp.maximum(jnp.maximum(pvw, artw), fagg)
        e1 = jnp.exp(pvw - m)
        e2 = jnp.exp(artw - m)
        e3 = jnp.exp(fagg - m)
        inv = 1.0 / (e1 + e2 + e3)
        w1, w2, w3 = e1 * inv, e2 * inv, e3 * inv

        agg = pvx * (w1 + w3) + artx * (w2 + w3)
        agg_ref[0] = agg
        mpv_ref[0] = (pvx + agg) * 0.5
        mart_ref[0] = (artx + agg) * 0.5

    io_spec = pl.BlockSpec((1, HW, C), lambda b: (b, 0, 0))
    w_specs = [pl.BlockSpec(a.shape, (lambda b, nd=a.ndim: (0,) * nd))
               for a in weights]

    grid_spec = pltpu.PrefetchScalarGridSpec(
        num_scalar_prefetch=0,
        grid=(B,),
        in_specs=[io_spec, io_spec] + w_specs,
        out_specs=(io_spec, io_spec, io_spec),
    )

    out_shape = tuple(jax.ShapeDtypeStruct((B, HW, C), jnp.float32)
                      for _ in range(3))

    pv2 = pv.reshape(B, HW, C)       # free relayout in the wrapper, not in-kernel
    art2 = art.reshape(B, HW, C)
    mpv, mart, agg = pl.pallas_call(
        kernel,
        out_shape=out_shape,
        grid_spec=grid_spec,
        compiler_params=pltpu.CompilerParams(
            dimension_semantics=("parallel",)),   # batch items independent (megacore)
    )(pv2, art2, *weights)
    return (mpv.reshape(B, H, W, C),
            mart.reshape(B, H, W, C),
            agg.reshape(B, H, W, C))


# ----------------------------------------------------------------------------
# Pure-JAX reference (same folded parameters) for verification.
# precision=HIGHEST everywhere so the reference is f32-accurate on TPU
# (XLA's DEFAULT f32 matmul/conv precision is a low-precision bf16 pass).
# ----------------------------------------------------------------------------
def ref_forward(pv, art, P):
    def conv(x, w, pad):
        return jax.lax.conv_general_dilated(
            x, w, (1, 1), [(pad, pad), (pad, pad)],
            dimension_numbers=('NHWC', 'HWIO', 'NHWC'),
            precision=HIGHEST)

    def ein(eq, a, b):
        return jnp.einsum(eq, a, b, precision=HIGHEST)

    pv_avg = jnp.mean(pv, axis=-1, keepdims=True)
    pv_max = jnp.max(pv, axis=-1, keepdims=True)
    art_avg = jnp.mean(art, axis=-1, keepdims=True)
    art_max = jnp.max(art, axis=-1, keepdims=True)
    f1 = jnp.concatenate([pv_avg, pv_max], -1)
    f2 = jnp.concatenate([art_avg, art_max], -1)
    f4 = jnp.concatenate([pv_avg, pv_max, art_avg, art_max], -1)

    c3 = conv(f4, P['w_l1_4d'], 1) + P['b_l1']
    c5 = conv(f4, P['w_l2_4d'], 2) + P['b_l2']
    c7 = conv(f4, P['w_g_4d'], 3) + P['b_g']
    gm = jnp.mean(f4, axis=(1, 2), keepdims=True)
    gv = jnp.maximum(ein('bijc,co->bijo', gm, P['w_gap']) + P['b_gap'], 0.0)
    gb = jnp.broadcast_to(gv, c3.shape)
    cat = jnp.concatenate([c3, c5, c7, gb], -1)
    fagg = _sigmoid(ein('bhwc,co->bhwo', cat, P['w_fuse']) + P['b_fuse'])

    hpv = jnp.maximum(conv(f1, P['w_pv1_4d'], 1) + P['b_pv1'], 0.0)
    pvw = _sigmoid(ein('bhwc,co->bhwo', hpv, P['w_pv2']) + P['b_pv2'])
    hart = jnp.maximum(conv(f2, P['w_art1_4d'], 1) + P['b_art1'], 0.0)
    artw = _sigmoid(ein('bhwc,co->bhwo', hart, P['w_art2']) + P['b_art2'])

    m = jnp.maximum(jnp.maximum(pvw, artw), fagg)
    e1, e2, e3 = jnp.exp(pvw - m), jnp.exp(artw - m), jnp.exp(fagg - m)
    inv = 1.0 / (e1 + e2 + e3)
    w1, w2, w3 = e1 * inv, e2 * inv, e3 * inv
    agg = pv * (w1 + w3) + art * (w2 + w3)
    return (pv + agg) / 2, (art + agg) / 2, agg


if __name__ == "__main__":
    B, dim_pv, H, W = 2, 32, 16, 16          # PyTorch input: [2, 32, 16, 16] NCHW
    key = jax.random.PRNGKey(0)
    kpv, kart, kp = jax.random.split(key, 3)
    pv = jax.random.normal(kpv, (B, H, W, dim_pv), jnp.float32)   # NHWC
    art = jax.random.normal(kart, (B, H, W, dim_pv), jnp.float32)
    params = init_params(kp, dim_pv=dim_pv, reduction=4)
    packed = pack_params(params)

    out = pf_forward(pv, art, packed)
    out = jax.block_until_ready(out)

    ref = jax.block_until_ready(ref_forward(pv, art, params))
    for o, r in zip(out, ref):
        np.testing.assert_allclose(np.asarray(o), np.asarray(r),
                                   rtol=1e-3, atol=1e-3)
    print("KERNEL_OK")
</pallas_src>

<mosaic_0001>
module attributes {stable_mosaic.version = 11 : i64} {
  func.func @kernel(%arg0: i32, %arg1: memref<1x256x32xf32, #tpu.memory_space<vmem>>, %arg2: memref<1x256x32xf32, #tpu.memory_space<vmem>>, %arg3: memref<196x40xf32, #tpu.memory_space<vmem>>, %arg4: memref<1x40xf32, #tpu.memory_space<vmem>>, %arg5: memref<4x8xf32, #tpu.memory_space<vmem>>, %arg6: memref<1x8xf32, #tpu.memory_space<vmem>>, %arg7: memref<8x32xf32, #tpu.memory_space<vmem>>, %arg8: memref<40x96xf32, #tpu.memory_space<vmem>>, %arg9: memref<1x96xf32, #tpu.memory_space<vmem>>, %arg10: memref<1x256x32xf32, #tpu.memory_space<vmem>>, %arg11: memref<1x256x32xf32, #tpu.memory_space<vmem>>, %arg12: memref<1x256x32xf32, #tpu.memory_space<vmem>>) attributes {dimension_semantics = [#tpu.dimension_semantics<parallel>], iteration_bounds = array<i64: 2>, scalar_prefetch = 0 : i64, scratch_operands = 0 : i64, tpu.core_type = #tpu.core_type<tc>, window_params = [{transform_indices = @transform_0, window_bounds = array<i64: 1, 256, 32>}, {transform_indices = @transform_1, window_bounds = array<i64: 1, 256, 32>}, {pipeline_mode = #tpu.pipeline_mode<synchronous>, transform_indices = @transform_2, window_bounds = array<i64: 196, 40>}, {pipeline_mode = #tpu.pipeline_mode<synchronous>, transform_indices = @transform_3, window_bounds = array<i64: 1, 40>}, {pipeline_mode = #tpu.pipeline_mode<synchronous>, transform_indices = @transform_4, window_bounds = array<i64: 4, 8>}, {pipeline_mode = #tpu.pipeline_mode<synchronous>, transform_indices = @transform_5, window_bounds = array<i64: 1, 8>}, {pipeline_mode = #tpu.pipeline_mode<synchronous>, transform_indices = @transform_6, window_bounds = array<i64: 8, 32>}, {pipeline_mode = #tpu.pipeline_mode<synchronous>, transform_indices = @transform_7, window_bounds = array<i64: 40, 96>}, {pipeline_mode = #tpu.pipeline_mode<synchronous>, transform_indices = @transform_8, window_bounds = array<i64: 1, 96>}, {transform_indices = @transform_9, window_bounds = array<i64: 1, 256, 32>}, {transform_indices = @transform_10, window_bounds = array<i64: 1, 256, 32>}, {transform_indices = @transform_11, window_bounds = array<i64: 1, 256, 32>}]} {
    %c0 = arith.constant 0 : index
    %c0_0 = arith.constant 0 : index
    %c0_1 = arith.constant 0 : index
    %0 = vector.load %arg1[%c0, %c0_0, %c0_1] : memref<1x256x32xf32, #tpu.memory_space<vmem>>, vector<1x256x32xf32>
    %1 = vector.shape_cast %0 : vector<1x256x32xf32> to vector<256x32xf32>
    %c0_2 = arith.constant 0 : index
    %c0_3 = arith.constant 0 : index
    %c0_4 = arith.constant 0 : index
    %2 = vector.load %arg2[%c0_2, %c0_3, %c0_4] : memref<1x256x32xf32, #tpu.memory_space<vmem>>, vector<1x256x32xf32>
    %3 = vector.shape_cast %2 : vector<1x256x32xf32> to vector<256x32xf32>
    %cst = arith.constant dense<0.000000e+00> : vector<256xf32>
    %4 = vector.multi_reduction <add>, %1, %cst [1] : vector<256x32xf32> to vector<256xf32>
    %5 = vector.shape_cast %4 : vector<256xf32> to vector<256x1xf32>
    %cst_5 = arith.constant 3.200000e+01 : f32
    %6 = vector.broadcast %cst_5 : f32 to vector<256x1xf32>
    %7 = arith.divf %5, %6 : vector<256x1xf32>
    %cst_6 = arith.constant dense<0xFF800000> : vector<256xf32>
    %8 = vector.multi_reduction <maximumf>, %1, %cst_6 [1] : vector<256x32xf32> to vector<256xf32>
    %9 = vector.shape_cast %8 : vector<256xf32> to vector<256x1xf32>
    %cst_7 = arith.constant dense<0.000000e+00> : vector<256xf32>
    %10 = vector.multi_reduction <add>, %3, %cst_7 [1] : vector<256x32xf32> to vector<256xf32>
    %11 = vector.shape_cast %10 : vector<256xf32> to vector<256x1xf32>
    %cst_8 = arith.constant 3.200000e+01 : f32
    %12 = vector.broadcast %cst_8 : f32 to vector<256x1xf32>
    %13 = arith.divf %11, %12 : vector<256x1xf32>
    %cst_9 = arith.constant dense<0xFF800000> : vector<256xf32>
    %14 = vector.multi_reduction <maximumf>, %3, %cst_9 [1] : vector<256x32xf32> to vector<256xf32>
    %15 = vector.shape_cast %14 : vector<256xf32> to vector<256x1xf32>
    %16 = tpu.concatenate %7, %9, %13, %15 in 1 : vector<256x1xf32>, vector<256x1xf32>, vector<256x1xf32>, vector<256x1xf32> -> vector<256x4xf32>
    %17 = vector.shape_cast %16 : vector<256x4xf32> to vector<16x16x4xf32>
    %cst_10 = arith.constant 0.000000e+00 : f32
    %18 = vector.broadcast %cst_10 : f32 to vector<3x16x4xf32>
    %19 = tpu.concatenate %18, %17, %18 in 0 : vector<3x16x4xf32>, vector<16x16x4xf32>, vector<3x16x4xf32> -> vector<22x16x4xf32>
    %cst_11 = arith.constant 0.000000e+00 : f32
    %20 = vector.broadcast %cst_11 : f32 to vector<22x3x4xf32>
    %21 = tpu.concatenate %20, %19, %20 in 1 : vector<22x3x4xf32>, vector<22x16x4xf32>, vector<22x3x4xf32> -> vector<22x22x4xf32>
    %22 = vector.extract_strided_slice %21 {offsets = [0, 0, 0], sizes = [16, 22, 4], strides = [1, 1, 1]} : vector<22x22x4xf32> to vector<16x22x4xf32>
    %23 = vector.extract_strided_slice %21 {offsets = [1, 0, 0], sizes = [16, 22, 4], strides = [1, 1, 1]} : vector<22x22x4xf32> to vector<16x22x4xf32>
    %24 = vector.extract_strided_slice %21 {offsets = [2, 0, 0], sizes = [16, 22, 4], strides = [1, 1, 1]} : vector<22x22x4xf32> to vector<16x22x4xf32>
    %25 = vector.extract_strided_slice %21 {offsets = [3, 0, 0], sizes = [16, 22, 4], strides = [1, 1, 1]} : vector<22x22x4xf32> to vector<16x22x4xf32>
    %26 = vector.extract_strided_slice %21 {offsets = [4, 0, 0], sizes = [16, 22, 4], strides = [1, 1, 1]} : vector<22x22x4xf32> to vector<16x22x4xf32>
    %27 = vector.extract_strided_slice %21 {offsets = [5, 0, 0], sizes = [16, 22, 4], strides = [1, 1, 1]} : vector<22x22x4xf32> to vector<16x22x4xf32>
    %28 = vector.extract_strided_slice %21 {offsets = [6, 0, 0], sizes = [16, 22, 4], strides = [1, 1, 1]} : vector<22x22x4xf32> to vector<16x22x4xf32>
    %29 = tpu.concatenate %22, %23, %24, %25, %26, %27, %28 in 2 : vector<16x22x4xf32>, vector<16x22x4xf32>, vector<16x22x4xf32>, vector<16x22x4xf32>, vector<16x22x4xf32>, vector<16x22x4xf32>, vector<16x22x4xf32> -> vector<16x22x28xf32>
    %30 = vector.extract_strided_slice %29 {offsets = [0, 0, 0], sizes = [16, 16, 28], strides = [1, 1, 1]} : vector<16x22x28xf32> to vector<16x16x28xf32>
    %31 = vector.extract_strided_slice %29 {offsets = [0, 1, 0], sizes = [16, 16, 28], strides = [1, 1, 1]} : vector<16x22x28xf32> to vector<16x16x28xf32>
    %32 = vector.extract_strided_slice %29 {offsets = [0, 2, 0], sizes = [16, 16, 28], strides = [1, 1, 1]} : vector<16x22x28xf32> to vector<16x16x28xf32>
    %33 = vector.extract_strided_slice %29 {offsets = [0, 3, 0], sizes = [16, 16, 28], strides = [1, 1, 1]} : vector<16x22x28xf32> to vector<16x16x28xf32>
    %34 = vector.extract_strided_slice %29 {offsets = [0, 4, 0], sizes = [16, 16, 28], strides = [1, 1, 1]} : vector<16x22x28xf32> to vector<16x16x28xf32>
    %35 = vector.extract_strided_slice %29 {offsets = [0, 5, 0], sizes = [16, 16, 28], strides = [1, 1, 1]} : vector<16x22x28xf32> to vector<16x16x28xf32>
    %36 = vector.extract_strided_slice %29 {offsets = [0, 6, 0], sizes = [16, 16, 28], strides = [1, 1, 1]} : vector<16x22x28xf32> to vector<16x16x28xf32>
    %37 = tpu.concatenate %30, %31, %32, %33, %34, %35, %36 in 2 : vector<16x16x28xf32>, vector<16x16x28xf32>, vector<16x16x28xf32>, vector<16x16x28xf32>, vector<16x16x28xf32>, vector<16x16x28xf32>, vector<16x16x28xf32> -> vector<16x16x196xf32>
    %38 = vector.shape_cast %37 : vector<16x16x196xf32> to vector<256x196xf32>
    %c0_12 = arith.constant 0 : index
    %c0_13 = arith.constant 0 : index
    %39 = vector.load %arg3[%c0_12, %c0_13] : memref<196x40xf32, #tpu.memory_space<vmem>>, vector<196x40xf32>
    %cst_14 = arith.constant dense<0.000000e+00> : vector<256x40xf32>
    %40 = tpu.matmul %38, %39, %cst_14 {dimension_numbers = #tpu.dot_dimension_numbers<[1], [0], [0], [1], [0, 0, 1, 1], [], []>} : vector<256x196xf32>, vector<196x40xf32>, vector<256x40xf32> -> vector<256x40xf32>
    %c0_15 = arith.constant 0 : index
    %c0_16 = arith.constant 0 : index
    %41 = vector.load %arg4[%c0_15, %c0_16] : memref<1x40xf32, #tpu.memory_space<vmem>>, vector<1x40xf32>
    %42 = vector.broadcast %41 : vector<1x40xf32> to vector<256x40xf32>
    %43 = arith.addf %40, %42 : vector<256x40xf32>
    %44 = tpu.iota {dimensions = array<i32: 1>} : vector<256x40xi32>
    %c24_i32 = arith.constant 24 : i32
    %45 = vector.broadcast %c24_i32 : i32 to vector<256x40xi32>
    %46 = arith.cmpi slt, %44, %45 : vector<256x40xi32>
    %cst_17 = arith.constant 0.000000e+00 : f32
    %47 = vector.broadcast %cst_17 : f32 to vector<256x40xf32>
    %48 = arith.maximumf %43, %47 : vector<256x40xf32>
    %49 = arith.select %46, %43, %48 : vector<256x40xi1>, vector<256x40xf32>
    %cst_18 = arith.constant dense<0.000000e+00> : vector<4xf32>
    %50 = vector.multi_reduction <add>, %16, %cst_18 [0] : vector<256x4xf32> to vector<4xf32>
    %51 = vector.shape_cast %50 : vector<4xf32> to vector<1x4xf32>
    %cst_19 = arith.constant 2.560000e+02 : f32
    %52 = vector.broadcast %cst_19 : f32 to vector<1x4xf32>
    %53 = arith.divf %51, %52 : vector<1x4xf32>
    %c0_20 = arith.constant 0 : index
    %c0_21 = arith.constant 0 : index
    %54 = vector.load %arg5[%c0_20, %c0_21] : memref<4x8xf32, #tpu.memory_space<vmem>>, vector<4x8xf32>
    %cst_22 = arith.constant dense<0.000000e+00> : vector<1x8xf32>
    %55 = tpu.matmul %53, %54, %cst_22 {dimension_numbers = #tpu.dot_dimension_numbers<[1], [0], [0], [1], [0, 0, 1, 1], [], []>} : vector<1x4xf32>, vector<4x8xf32>, vector<1x8xf32> -> vector<1x8xf32>
    %c0_23 = arith.constant 0 : index
    %c0_24 = arith.constant 0 : index
    %56 = vector.load %arg6[%c0_23, %c0_24] : memref<1x8xf32, #tpu.memory_space<vmem>>, vector<1x8xf32>
    %57 = arith.addf %55, %56 : vector<1x8xf32>
    %cst_25 = arith.constant 0.000000e+00 : f32
    %58 = vector.broadcast %cst_25 : f32 to vector<1x8xf32>
    %59 = arith.maximumf %57, %58 : vector<1x8xf32>
    %c0_26 = arith.constant 0 : index
    %c0_27 = arith.constant 0 : index
    %60 = vector.load %arg7[%c0_26, %c0_27] : memref<8x32xf32, #tpu.memory_space<vmem>>, vector<8x32xf32>
    %cst_28 = arith.constant dense<0.000000e+00> : vector<1x32xf32>
    %61 = tpu.matmul %59, %60, %cst_28 {dimension_numbers = #tpu.dot_dimension_numbers<[1], [0], [0], [1], [0, 0, 1, 1], [], []>} : vector<1x8xf32>, vector<8x32xf32>, vector<1x32xf32> -> vector<1x32xf32>
    %c0_29 = arith.constant 0 : index
    %c0_30 = arith.constant 0 : index
    %62 = vector.load %arg9[%c0_29, %c0_30] : memref<1x96xf32, #tpu.memory_space<vmem>>, vector<1x96xf32>
    %cst_31 = arith.constant 0.000000e+00 : f32
    %63 = vector.broadcast %cst_31 : f32 to vector<1x64xf32>
    %64 = tpu.concatenate %61, %63 in 1 : vector<1x32xf32>, vector<1x64xf32> -> vector<1x96xf32>
    %65 = arith.addf %62, %64 : vector<1x96xf32>
    %c0_32 = arith.constant 0 : index
    %c0_33 = arith.constant 0 : index
    %66 = vector.load %arg8[%c0_32, %c0_33] : memref<40x96xf32, #tpu.memory_space<vmem>>, vector<40x96xf32>
    %cst_34 = arith.constant dense<0.000000e+00> : vector<256x96xf32>
    %67 = tpu.matmul %49, %66, %cst_34 {dimension_numbers = #tpu.dot_dimension_numbers<[1], [0], [0], [1], [0, 0, 1, 1], [], []>} : vector<256x40xf32>, vector<40x96xf32>, vector<256x96xf32> -> vector<256x96xf32>
    %68 = vector.broadcast %65 : vector<1x96xf32> to vector<256x96xf32>
    %69 = arith.addf %67, %68 : vector<256x96xf32>
    %cst_35 = arith.constant 0.000000e+00 : f32
    %70 = vector.broadcast %cst_35 : f32 to vector<256x96xf32>
    %71 = arith.subf %70, %69 : vector<256x96xf32>
    %72 = math.exp %71 : vector<256x96xf32>
    %cst_36 = arith.constant 1.000000e+00 : f32
    %73 = vector.broadcast %cst_36 : f32 to vector<256x96xf32>
    %74 = arith.addf %73, %72 : vector<256x96xf32>
    %cst_37 = arith.constant 1.000000e+00 : f32
    %75 = vector.broadcast %cst_37 : f32 to vector<256x96xf32>
    %76 = arith.divf %75, %74 : vector<256x96xf32>
    %77 = vector.extract_strided_slice %76 {offsets = [0, 0], sizes = [256, 32], strides = [1, 1]} : vector<256x96xf32> to vector<256x32xf32>
    %78 = vector.extract_strided_slice %76 {offsets = [0, 32], sizes = [256, 32], strides = [1, 1]} : vector<256x96xf32> to vector<256x32xf32>
    %79 = vector.extract_strided_slice %76 {offsets = [0, 64], sizes = [256, 32], strides = [1, 1]} : vector<256x96xf32> to vector<256x32xf32>
    %80 = arith.maximumf %78, %79 : vector<256x32xf32>
    %81 = arith.maximumf %80, %77 : vector<256x32xf32>
    %82 = arith.subf %78, %81 : vector<256x32xf32>
    %83 = math.exp %82 : vector<256x32xf32>
    %84 = arith.subf %79, %81 : vector<256x32xf32>
    %85 = math.exp %84 : vector<256x32xf32>
    %86 = arith.subf %77, %81 : vector<256x32xf32>
    %87 = math.exp %86 : vector<256x32xf32>
    %88 = arith.addf %83, %85 : vector<256x32xf32>
    %89 = arith.addf %88, %87 : vector<256x32xf32>
    %cst_38 = arith.constant 1.000000e+00 : f32
    %90 = vector.broadcast %cst_38 : f32 to vector<256x32xf32>
    %91 = arith.divf %90, %89 : vector<256x32xf32>
    %92 = arith.mulf %83, %91 : vector<256x32xf32>
    %93 = arith.mulf %85, %91 : vector<256x32xf32>
    %94 = arith.mulf %87, %91 : vector<256x32xf32>
    %95 = arith.addf %92, %94 : vector<256x32xf32>
    %96 = arith.mulf %1, %95 : vector<256x32xf32>
    %97 = arith.addf %93, %94 : vector<256x32xf32>
    %98 = arith.mulf %3, %97 : vector<256x32xf32>
    %99 = arith.addf %96, %98 : vector<256x32xf32>
    %c0_39 = arith.constant 0 : index
    %c0_40 = arith.constant 0 : index
    %c0_41 = arith.constant 0 : index
    %100 = vector.load %arg12[%c0_39, %c0_40, %c0_41] : memref<1x256x32xf32, #tpu.memory_space<vmem>>, vector<1x256x32xf32>
    %101 = vector.shape_cast %100 : vector<1x256x32xf32> to vector<256x32xf32>
    %102 = vector.shape_cast %99 : vector<256x32xf32> to vector<1x256x32xf32>
    tpu.vector_store %arg12[%c0_39, %c0_40, %c0_41], %102 {strides = array<i32>} : memref<1x256x32xf32, #tpu.memory_space<vmem>>, vector<1x256x32xf32>,
    %103 = arith.addf %1, %99 : vector<256x32xf32>
    %cst_42 = arith.constant 5.000000e-01 : f32
    %104 = vector.broadcast %cst_42 : f32 to vector<256x32xf32>
    %105 = arith.mulf %103, %104 : vector<256x32xf32>
    %c0_43 = arith.constant 0 : index
    %c0_44 = arith.constant 0 : index
    %c0_45 = arith.constant 0 : index
    %106 = vector.load %arg10[%c0_43, %c0_44, %c0_45] : memref<1x256x32xf32, #tpu.memory_space<vmem>>, vector<1x256x32xf32>
    %107 = vector.shape_cast %106 : vector<1x256x32xf32> to vector<256x32xf32>
    %108 = vector.shape_cast %105 : vector<256x32xf32> to vector<1x256x32xf32>
    tpu.vector_store %arg10[%c0_43, %c0_44, %c0_45], %108 {strides = array<i32>} : memref<1x256x32xf32, #tpu.memory_space<vmem>>, vector<1x256x32xf32>,
    %109 = arith.addf %3, %99 : vector<256x32xf32>
    %cst_46 = arith.constant 5.000000e-01 : f32
    %110 = vector.broadcast %cst_46 : f32 to vector<256x32xf32>
    %111 = arith.mulf %109, %110 : vector<256x32xf32>
    %c0_47 = arith.constant 0 : index
    %c0_48 = arith.constant 0 : index
    %c0_49 = arith.constant 0 : index
    %112 = vector.load %arg11[%c0_47, %c0_48, %c0_49] : memref<1x256x32xf32, #tpu.memory_space<vmem>>, vector<1x256x32xf32>
    %113 = vector.shape_cast %112 : vector<1x256x32xf32> to vector<256x32xf32>
    %114 = vector.shape_cast %111 : vector<256x32xf32> to vector<1x256x32xf32>
    tpu.vector_store %arg11[%c0_47, %c0_48, %c0_49], %114 {strides = array<i32>} : memref<1x256x32xf32, #tpu.memory_space<vmem>>, vector<1x256x32xf32>,
    return
  }
  func.func @transform_0(%arg0: i32) -> (i32, i32, i32) {
    %c0_i32 = arith.constant 0 : i32
    %c0_i32_0 = arith.constant 0 : i32
    %c0_i32_1 = arith.constant 0 : i32
    return %arg0, %c0_i32, %c0_i32_0 : i32, i32, i32
  }
  func.func @transform_1(%arg0: i32) -> (i32, i32, i32) {
    %c0_i32 = arith.constant 0 : i32
    %c0_i32_0 = arith.constant 0 : i32
    %c0_i32_1 = arith.constant 0 : i32
    return %arg0, %c0_i32, %c0_i32_0 : i32, i32, i32
  }
  func.func @transform_2(%arg0: i32) -> (i32, i32) {
    %c0_i32 = arith.constant 0 : i32
    %c0_i32_0 = arith.constant 0 : i32
    %c0_i32_1 = arith.constant 0 : i32
    return %c0_i32, %c0_i32_0 : i32, i32
  }
  func.func @transform_3(%arg0: i32) -> (i32, i32) {
    %c0_i32 = arith.constant 0 : i32
    %c0_i32_0 = arith.constant 0 : i32
    %c0_i32_1 = arith.constant 0 : i32
    return %c0_i32, %c0_i32_0 : i32, i32
  }
  func.func @transform_4(%arg0: i32) -> (i32, i32) {
    %c0_i32 = arith.constant 0 : i32
    %c0_i32_0 = arith.constant 0 : i32
    %c0_i32_1 = arith.constant 0 : i32
    return %c0_i32, %c0_i32_0 : i32, i32
  }
  func.func @transform_5(%arg0: i32) -> (i32, i32) {
    %c0_i32 = arith.constant 0 : i32
    %c0_i32_0 = arith.constant 0 : i32
    %c0_i32_1 = arith.constant 0 : i32
    return %c0_i32, %c0_i32_0 : i32, i32
  }
  func.func @transform_6(%arg0: i32) -> (i32, i32) {
    %c0_i32 = arith.constant 0 : i32
    %c0_i32_0 = arith.constant 0 : i32
    %c0_i32_1 = arith.constant 0 : i32
    return %c0_i32, %c0_i32_0 : i32, i32
  }
  func.func @transform_7(%arg0: i32) -> (i32, i32) {
    %c0_i32 = arith.constant 0 : i32
    %c0_i32_0 = arith.constant 0 : i32
    %c0_i32_1 = arith.constant 0 : i32
    return %c0_i32, %c0_i32_0 : i32, i32
  }
  func.func @transform_8(%arg0: i32) -> (i32, i32) {
    %c0_i32 = arith.constant 0 : i32
    %c0_i32_0 = arith.constant 0 : i32
    %c0_i32_1 = arith.constant 0 : i32
    return %c0_i32, %c0_i32_0 : i32, i32
  }
  func.func @transform_9(%arg0: i32) -> (i32, i32, i32) {
    %c0_i32 = arith.constant 0 : i32
    %c0_i32_0 = arith.constant 0 : i32
    %c0_i32_1 = arith.constant 0 : i32
    return %arg0, %c0_i32, %c0_i32_0 : i32, i32, i32
  }
  func.func @transform_10(%arg0: i32) -> (i32, i32, i32) {
    %c0_i32 = arith.constant 0 : i32
    %c0_i32_0 = arith.constant 0 : i32
    %c0_i32_1 = arith.constant 0 : i32
    return %arg0, %c0_i32, %c0_i32_0 : i32, i32, i32
  }
  func.func @transform_11(%arg0: i32) -> (i32, i32, i32) {
    %c0_i32 = arith.constant 0 : i32
    %c0_i32_0 = arith.constant 0 : i32
    %c0_i32_1 = arith.constant 0 : i32
    return %arg0, %c0_i32, %c0_i32_0 : i32, i32, i32
  }
}

</mosaic_0001>

<llo_original>
// kernel: tpu_custom_call.1
$region0: #{tpu_custom_call.1}
  #allocation0 [shape = 'u32[]', space=smem, size = 0x4, offset = 0x4, fixed_abs, tag = 'smem constant byte address 0x4 - core index']
  #allocation1 [shape = 'u32[144,128]{1,0:T(1,128)}', space=vmem, size = 0x12000, scoped, tag = 'internal scratch']
  %s0 = inlined_call_operand.vmem [shape: f32[2,256,32], index: 0, kind: input, shape index: {}]
  %s1 = inlined_call_operand.vmem [shape: f32[2,256,32], index: 1, kind: input, shape index: {}]
  %s2 = inlined_call_operand.vmem [shape: f32[196,40], index: 2, kind: input, shape index: {}]
  %s3 = inlined_call_operand.vmem [shape: f32[1,40], index: 3, kind: input, shape index: {}]
  %s4 = inlined_call_operand.vmem [shape: f32[4,8], index: 4, kind: input, shape index: {}]
  %s5 = inlined_call_operand.vmem [shape: f32[1,8], index: 5, kind: input, shape index: {}]
  %s6 = inlined_call_operand.vmem [shape: f32[8,32], index: 6, kind: input, shape index: {}]
  %s7 = inlined_call_operand.vmem [shape: f32[40,96], index: 7, kind: input, shape index: {}]
  %s8 = inlined_call_operand.vmem [shape: f32[1,96], index: 8, kind: input, shape index: {}]
  %s9 = inlined_call_operand.vmem [shape: f32[2,256,32], index: 9, kind: output, shape index: {0}]
  %s10 = inlined_call_operand.vmem [shape: f32[2,256,32], index: 10, kind: output, shape index: {1}]
  %s11 = inlined_call_operand.vmem [shape: f32[2,256,32], index: 11, kind: output, shape index: {2}]
  %12 = xla_tuple %s9, %s10, %s11
  %s13 = sld [smem:[#allocation0]]
  $region85: #{tpu_custom_call.1} parent=0
    _
  %s15 = ssub.s32 1, %s13
  %s16 = scalar_select 0, %s15, %s13
  loop: start=0, step=1, limit=4
  $region2: #{tpu_custom_call.1} parent=0 // loop_pre_header
    _
  $region3: #{tpu_custom_call.1} parent=0 // loop_header
    %s18 = sphi 0, %s22
    %p19 = scmp.ge.s32.totalorder %s18, 4
    %s28 = sphi 0, %s30
    %s31 = sphi 0, %s28
    %s32 = sphi 0, %s31
    %s48 = sphi 0, %s32
    %s54 = sphi 0, %s56
    %s57 = sphi 0, %s54
    %s58 = sphi 0, %s57
    %s74 = sphi 0, %s58
    %s78 = sphi 0, %s78
    %s80 = sphi 0, %s78
    %s81 = sphi 0, %s80
    %s95 = sphi 0, %s81
    %s99 = sphi 0, %s99
    %s101 = sphi 0, %s99
    %s102 = sphi 0, %s101
    %s116 = sphi 0, %s102
    %s120 = sphi 0, %s120
    %s122 = sphi 0, %s120
    %s123 = sphi 0, %s122
    %s137 = sphi 0, %s123
    %s141 = sphi 0, %s141
    %s143 = sphi 0, %s141
    %s144 = sphi 0, %s143
    %s158 = sphi 0, %s144
    %s162 = sphi 0, %s162
    %s164 = sphi 0, %s162
    %s165 = sphi 0, %s164
    %s179 = sphi 0, %s165
    %s183 = sphi 0, %s183
    %s185 = sphi 0, %s183
    %s186 = sphi 0, %s185
    %s200 = sphi 0, %s186
    %s204 = sphi 0, %s204
    %s206 = sphi 0, %s204
    %s207 = sphi 0, %s206
    %s221 = sphi 0, %s207
    %s227 = sphi 0, %s229
    %s230 = sphi 0, %s227
    %s231 = sphi 0, %s230
    %s247 = sphi 0, %s231
    %s253 = sphi 0, %s255
    %s256 = sphi 0, %s253
    %s257 = sphi 0, %s256
    %s273 = sphi 0, %s257
    %s279 = sphi 0, %s281
    %s282 = sphi 0, %s279
    %s283 = sphi 0, %s282
    %s299 = sphi 0, %s283
  $region4: #{tpu_custom_call.1} parent=0 // loop_header_branch
    %21 = sbr.rel (%p19) target = $region8
  $region5: #{tpu_custom_call.1} parent=0 // loop_body
    %s23 = ssub.s32 %s18, 1
    %s24 = ssub.s32 %s18, 2
    %s25 = sadd.s32 %s18, 1
    %s26 = ssub.s32 %s18, %s25
    %p27 = scmp.eq.s32.totalorder %s26, 0
    %s29 = sadd.s32 %s28, 1
    %s30 = scalar_select %p27, %s28, %s29
    %p33 = pneg %p27
    %p34 = scmp.eq.s32.totalorder %s18, 1
    %p35 = por %p33, %p34
    %p36 = scmp.ne.s32.totalorder %s28, %s31
    %p37 = scmp.eq.s32.totalorder %s18, 0
    %p38 = por %p36, %p37
    %p39 = scmp.ne.s32.totalorder %s28, %s31
    %p40 = scmp.eq.s32.totalorder %s23, 1
    %p41 = por %p39, %p40
    %p42 = scmp.ne.s32.totalorder %s31, %s32
    %p43 = scmp.eq.s32.totalorder %s23, 0
    %p44 = por %p42, %p43
    %p45 = scmp.ne.s32.totalorder %s31, %s32
    %p46 = scmp.eq.s32.totalorder %s24, 1
    %p47 = por %p45, %p46
    %p49 = scmp.ne.s32.totalorder %s32, %s48
    %p50 = scmp.eq.s32.totalorder %s24, 0
    %p51 = por %p49, %p50
    %s52 = ssub.s32 %s18, %s25
    %p53 = scmp.eq.s32.totalorder %s52, 0
    %s55 = sadd.s32 %s54, 1
    %s56 = scalar_select %p53, %s54, %s55
    %p59 = pneg %p53
    %p60 = scmp.eq.s32.totalorder %s18, 1
    %p61 = por %p59, %p60
    %p62 = scmp.ne.s32.totalorder %s54, %s57
    %p63 = scmp.eq.s32.totalorder %s18, 0
    %p64 = por %p62, %p63
    %p65 = scmp.ne.s32.totalorder %s54, %s57
    %p66 = scmp.eq.s32.totalorder %s23, 1
    %p67 = por %p65, %p66
    %p68 = scmp.ne.s32.totalorder %s57, %s58
    %p69 = scmp.eq.s32.totalorder %s23, 0
    %p70 = por %p68, %p69
    %p71 = scmp.ne.s32.totalorder %s57, %s58
    %p72 = scmp.eq.s32.totalorder %s24, 1
    %p73 = por %p71, %p72
    %p75 = scmp.ne.s32.totalorder %s58, %s74
    %p76 = scmp.eq.s32.totalorder %s24, 0
    %p77 = por %p75, %p76
    %s79 = sadd.s32 %s78, 1
    %p82 = scmp.eq.s32.totalorder %s18, 1
    %p83 = scmp.ne.s32.totalorder %s78, %s80
    %p84 = scmp.eq.s32.totalorder %s18, 0
    %p85 = por %p83, %p84
    %p86 = scmp.ne.s32.totalorder %s78, %s80
    %p87 = scmp.eq.s32.totalorder %s23, 1
    %p88 = por %p86, %p87
    %p89 = scmp.ne.s32.totalorder %s80, %s81
    %p90 = scmp.eq.s32.totalorder %s23, 0
    %p91 = por %p89, %p90
    %p92 = scmp.ne.s32.totalorder %s80, %s81
    %p93 = scmp.eq.s32.totalorder %s24, 1
    %p94 = por %p92, %p93
    %p96 = scmp.ne.s32.totalorder %s81, %s95
    %p97 = scmp.eq.s32.totalorder %s24, 0
    %p98 = por %p96, %p97
    %s100 = sadd.s32 %s99, 1
    %p103 = scmp.eq.s32.totalorder %s18, 1
    %p104 = scmp.ne.s32.totalorder %s99, %s101
    %p105 = scmp.eq.s32.totalorder %s18, 0
    %p106 = por %p104, %p105
    %p107 = scmp.ne.s32.totalorder %s99, %s101
    %p108 = scmp.eq.s32.totalorder %s23, 1
    %p109 = por %p107, %p108
    %p110 = scmp.ne.s32.totalorder %s101, %s102
    %p111 = scmp.eq.s32.totalorder %s23, 0
    %p112 = por %p110, %p111
    %p113 = scmp.ne.s32.totalorder %s101, %s102
    %p114 = scmp.eq.s32.totalorder %s24, 1
    %p115 = por %p113, %p114
    %p117 = scmp.ne.s32.totalorder %s102, %s116
    %p118 = scmp.eq.s32.totalorder %s24, 0
    %p119 = por %p117, %p118
    %s121 = sadd.s32 %s120, 1
    %p124 = scmp.eq.s32.totalorder %s18, 1
    %p125 = scmp.ne.s32.totalorder %s120, %s122
    %p126 = scmp.eq.s32.totalorder %s18, 0
    %p127 = por %p125, %p126
    %p128 = scmp.ne.s32.totalorder %s120, %s122
    %p129 = scmp.eq.s32.totalorder %s23, 1
    %p130 = por %p128, %p129
    %p131 = scmp.ne.s32.totalorder %s122, %s123
    %p132 = scmp.eq.s32.totalorder %s23, 0
    %p133 = por %p131, %p132
    %p134 = scmp.ne.s32.totalorder %s122, %s123
    %p135 = scmp.eq.s32.totalorder %s24, 1
    %p136 = por %p134, %p135
    %p138 = scmp.ne.s32.totalorder %s123, %s137
    %p139 = scmp.eq.s32.totalorder %s24, 0
    %p140 = por %p138, %p139
    %s142 = sadd.s32 %s141, 1
    %p145 = scmp.eq.s32.totalorder %s18, 1
    %p146 = scmp.ne.s32.totalorder %s141, %s143
    %p147 = scmp.eq.s32.totalorder %s18, 0
    %p148 = por %p146, %p147
    %p149 = scmp.ne.s32.totalorder %s141, %s143
    %p150 = scmp.eq.s32.totalorder %s23, 1
    %p151 = por %p149, %p150
    %p152 = scmp.ne.s32.totalorder %s143, %s144
    %p153 = scmp.eq.s32.totalorder %s23, 0
    %p154 = por %p152, %p153
    %p155 = scmp.ne.s32.totalorder %s143, %s144
    %p156 = scmp.eq.s32.totalorder %s24, 1
    %p157 = por %p155, %p156
    %p159 = scmp.ne.s32.totalorder %s144, %s158
    %p160 = scmp.eq.s32.totalorder %s24, 0
    %p161 = por %p159, %p160
    %s163 = sadd.s32 %s162, 1
    %p166 = scmp.eq.s32.totalorder %s18, 1
    %p167 = scmp.ne.s32.totalorder %s162, %s164
    %p168 = scmp.eq.s32.totalorder %s18, 0
    %p169 = por %p167, %p168
    %p170 = scmp.ne.s32.totalorder %s162, %s164
    %p171 = scmp.eq.s32.totalorder %s23, 1
    %p172 = por %p170, %p171
    %p173 = scmp.ne.s32.totalorder %s164, %s165
    %p174 = scmp.eq.s32.totalorder %s23, 0
    %p175 = por %p173, %p174
    %p176 = scmp.ne.s32.totalorder %s164, %s165
    %p177 = scmp.eq.s32.totalorder %s24, 1
    %p178 = por %p176, %p177
    %p180 = scmp.ne.s32.totalorder %s165, %s179
    %p181 = scmp.eq.s32.totalorder %s24, 0
    %p182 = por %p180, %p181
    %s184 = sadd.s32 %s183, 1
    %p187 = scmp.eq.s32.totalorder %s18, 1
    %p188 = scmp.ne.s32.totalorder %s183, %s185
    %p189 = scmp.eq.s32.totalorder %s18, 0
    %p190 = por %p188, %p189
    %p191 = scmp.ne.s32.totalorder %s183, %s185
    %p192 = scmp.eq.s32.totalorder %s23, 1
    %p193 = por %p191, %p192
    %p194 = scmp.ne.s32.totalorder %s185, %s186
    %p195 = scmp.eq.s32.totalorder %s23, 0
    %p196 = por %p194, %p195
    %p197 = scmp.ne.s32.totalorder %s185, %s186
    %p198 = scmp.eq.s32.totalorder %s24, 1
    %p199 = por %p197, %p198
    %p201 = scmp.ne.s32.totalorder %s186, %s200
    %p202 = scmp.eq.s32.totalorder %s24, 0
    %p203 = por %p201, %p202
    %s205 = sadd.s32 %s204, 1
    %p208 = scmp.eq.s32.totalorder %s18, 1
    %p209 = scmp.ne.s32.totalorder %s204, %s206
    %p210 = scmp.eq.s32.totalorder %s18, 0
    %p211 = por %p209, %p210
    %p212 = scmp.ne.s32.totalorder %s204, %s206
    %p213 = scmp.eq.s32.totalorder %s23, 1
    %p214 = por %p212, %p213
    %p215 = scmp.ne.s32.totalorder %s206, %s207
    %p216 = scmp.eq.s32.totalorder %s23, 0
    %p217 = por %p215, %p216
    %p218 = scmp.ne.s32.totalorder %s206, %s207
    %p219 = scmp.eq.s32.totalorder %s24, 1
    %p220 = por %p218, %p219
    %p222 = scmp.ne.s32.totalorder %s207, %s221
    %p223 = scmp.eq.s32.totalorder %s24, 0
    %p224 = por %p222, %p223
    %s225 = ssub.s32 %s18, %s25
    %p226 = scmp.eq.s32.totalorder %s225, 0
    %s228 = sadd.s32 %s227, 1
    %s229 = scalar_select %p226, %s227, %s228
    %p232 = pneg %p226
    %p233 = scmp.eq.s32.totalorder %s18, 1
    %p234 = por %p232, %p233
    %p235 = scmp.ne.s32.totalorder %s227, %s230
    %p236 = scmp.eq.s32.totalorder %s18, 0
    %p237 = por %p235, %p236
    %p238 = scmp.ne.s32.totalorder %s227, %s230
    %p239 = scmp.eq.s32.totalorder %s23, 1
    %p240 = por %p238, %p239
    %p241 = scmp.ne.s32.totalorder %s230, %s231
    %p242 = scmp.eq.s32.totalorder %s23, 0
    %p243 = por %p241, %p242
    %p244 = scmp.ne.s32.totalorder %s230, %s231
    %p245 = scmp.eq.s32.totalorder %s24, 1
    %p246 = por %p244, %p245
    %p248 = scmp.ne.s32.totalorder %s231, %s247
    %p249 = scmp.eq.s32.totalorder %s24, 0
    %p250 = por %p248, %p249
    %s251 = ssub.s32 %s18, %s25
    %p252 = scmp.eq.s32.totalorder %s251, 0
    %s254 = sadd.s32 %s253, 1
    %s255 = scalar_select %p252, %s253, %s254
    %p258 = pneg %p252
    %p259 = scmp.eq.s32.totalorder %s18, 1
    %p260 = por %p258, %p259
    %p261 = scmp.ne.s32.totalorder %s253, %s256
    %p262 = scmp.eq.s32.totalorder %s18, 0
    %p263 = por %p261, %p262
    %p264 = scmp.ne.s32.totalorder %s253, %s256
    %p265 = scmp.eq.s32.totalorder %s23, 1
    %p266 = por %p264, %p265
    %p267 = scmp.ne.s32.totalorder %s256, %s257
    %p268 = scmp.eq.s32.totalorder %s23, 0
    %p269 = por %p267, %p268
    %p270 = scmp.ne.s32.totalorder %s256, %s257
    %p271 = scmp.eq.s32.totalorder %s24, 1
    %p272 = por %p270, %p271
    %p274 = scmp.ne.s32.totalorder %s257, %s273
    %p275 = scmp.eq.s32.totalorder %s24, 0
    %p276 = por %p274, %p275
    %s277 = ssub.s32 %s18, %s25
    %p278 = scmp.eq.s32.totalorder %s277, 0
    %s280 = sadd.s32 %s279, 1
    %s281 = scalar_select %p278, %s279, %s280
    %p284 = pneg %p278
    %p285 = scmp.eq.s32.totalorder %s18, 1
    %p286 = por %p284, %p285
    %p287 = scmp.ne.s32.totalorder %s279, %s282
    %p288 = scmp.eq.s32.totalorder %s18, 0
    %p289 = por %p287, %p288
    %p290 = scmp.ne.s32.totalorder %s279, %s282
    %p291 = scmp.eq.s32.totalorder %s23, 1
    %p292 = por %p290, %p291
    %p293 = scmp.ne.s32.totalorder %s282, %s283
    %p294 = scmp.eq.s32.totalorder %s23, 0
    %p295 = por %p293, %p294
    %p296 = scmp.ne.s32.totalorder %s282, %s283
    %p297 = scmp.eq.s32.totalorder %s24, 1
    %p298 = por %p296, %p297
    %p300 = scmp.ne.s32.totalorder %s283, %s299
    %p301 = scmp.eq.s32.totalorder %s24, 0
    %p302 = por %p300, %p301
    %p303 = scmp.le.s32.totalorder 1, %s18
    %p304 = scmp.lt.s32.totalorder %s18, 3
    %p305 = pnand %p303, %p304
    %p306 = pneg %p305
    // Predicated region
    $region9: #{tpu_custom_call.1} parent=5 // pred_check
      _
    $region10: #{tpu_custom_call.1} parent=5 // pred_check_branch
      %308 = sbr.rel (%p305) target = $region12
    $region11: #{tpu_custom_call.1} parent=5 // pred_region
      %s309 = ssub.s32 %s18, 1
      // Predicated region
      $region13: #{tpu_custom_call.1} parent=11 // pred_check
        %p310 = pneg %p91
      $region14: #{tpu_custom_call.1} parent=11 // pred_check_branch
        %312 = sbr.rel (%p310) target = $region16
      $region15: #{tpu_custom_call.1} parent=11 // pred_region
        _
      $region16: #{tpu_custom_call.1} parent=11 // pred_fallthru
        _
      // Predicated region
      $region17: #{tpu_custom_call.1} parent=11 // pred_check
        %p313 = pneg %p112
      $region18: #{tpu_custom_call.1} parent=11 // pred_check_branch
        %315 = sbr.rel (%p313) target = $region20
      $region19: #{tpu_custom_call.1} parent=11 // pred_region
        _
      $region20: #{tpu_custom_call.1} parent=11 // pred_fallthru
        _
      // Predicated region
      $region21: #{tpu_custom_call.1} parent=11 // pred_check
        %p316 = pneg %p133
      $region22: #{tpu_custom_call.1} parent=11 // pred_check_branch
        %318 = sbr.rel (%p316) target = $region24
      $region23: #{tpu_custom_call.1} parent=11 // pred_region
        _
      $region24: #{tpu_custom_call.1} parent=11 // pred_fallthru
        _
      // Predicated region
      $region25: #{tpu_custom_call.1} parent=11 // pred_check
        %p319 = pneg %p154
      $region26: #{tpu_custom_call.1} parent=11 // pred_check_branch
        %321 = sbr.rel (%p319) target = $region28
      $region27: #{tpu_custom_call.1} parent=11 // pred_region
        _
      $region28: #{tpu_custom_call.1} parent=11 // pred_fallthru
        _
      // Predicated region
      $region29: #{tpu_custom_call.1} parent=11 // pred_check
        %p322 = pneg %p175
      $region30: #{tpu_custom_call.1} parent=11 // pred_check_branch
        %324 = sbr.rel (%p322) target = $region32
      $region31: #{tpu_custom_call.1} parent=11 // pred_region
        _
      $region32: #{tpu_custom_call.1} parent=11 // pred_fallthru
        _
      // Predicated region
      $region33: #{tpu_custom_call.1} parent=11 // pred_check
        %p325 = pneg %p196
      $region34: #{tpu_custom_call.1} parent=11 // pred_check_branch
        %327 = sbr.rel (%p325) target = $region36
      $region35: #{tpu_custom_call.1} parent=11 // pred_region
        _
      $region36: #{tpu_custom_call.1} parent=11 // pred_fallthru
        _
      // Predicated region
      $region37: #{tpu_custom_call.1} parent=11 // pred_check
        %p328 = pneg %p217
      $region38: #{tpu_custom_call.1} parent=11 // pred_check_branch
        %330 = sbr.rel (%p328) target = $region40
      $region39: #{tpu_custom_call.1} parent=11 // pred_region
        _
      $region40: #{tpu_custom_call.1} parent=11 // pred_fallthru
        _
    $region12: #{tpu_custom_call.1} parent=5 // pred_fallthru
      _
    %p331 = scmp.lt.s32.totalorder %s18, 2
    // Predicated region
    $region41: #{tpu_custom_call.1} parent=5 // pred_check
      %p332 = pneg %p331
    $region42: #{tpu_custom_call.1} parent=5 // pred_check_branch
      %334 = sbr.rel (%p332) target = $region44
    $region43: #{tpu_custom_call.1} parent=5 // pred_region
      // Predicated region
      $region45: #{tpu_custom_call.1} parent=43 // pred_check
        %p335 = pneg %p38
      $region46: #{tpu_custom_call.1} parent=43 // pred_check_branch
        %337 = sbr.rel (%p335) target = $region48
      $region47: #{tpu_custom_call.1} parent=43 // pred_region
        %p338 = scmp.lt.s32.totalorder %s18, 1
        %s339 = scalar_select %p338, %s18, 1
        %s340 = smul.addr %s339, 32
        %s341 = smul.addr %s340, 8
        %s342 = scalar_lea.vmem %s0, %s341
      $region48: #{tpu_custom_call.1} parent=43 // pred_fallthru
        _
      // Predicated region
      $region49: #{tpu_custom_call.1} parent=43 // pred_check
        %p343 = pneg %p64
      $region50: #{tpu_custom_call.1} parent=43 // pred_check_branch
        %345 = sbr.rel (%p343) target = $region52
      $region51: #{tpu_custom_call.1} parent=43 // pred_region
        %p346 = scmp.lt.s32.totalorder %s18, 1
        %s347 = scalar_select %p346, %s18, 1
        %s348 = smul.addr %s347, 32
        %s349 = smul.addr %s348, 8
        %s350 = scalar_lea.vmem %s1, %s349
      $region52: #{tpu_custom_call.1} parent=43 // pred_fallthru
        _
    $region44: #{tpu_custom_call.1} parent=5 // pred_fallthru
      _
    %p351 = scmp.le.s32.totalorder 1, %s18
    %p352 = scmp.lt.s32.totalorder %s18, 3
    %p353 = pnand %p351, %p352
    %p354 = pneg %p353
    // Predicated region
    $region53: #{tpu_custom_call.1} parent=5 // pred_check
      _
    $region54: #{tpu_custom_call.1} parent=5 // pred_check_branch
      %356 = sbr.rel (%p353) target = $region56
    $region55: #{tpu_custom_call.1} parent=5 // pred_region
      %s357 = ssub.s32 %s18, 1
      %p358 = scmp.lt.s32.totalorder %s23, 1
      %s359 = scalar_select %p358, %s23, 1
      %s360 = smul.addr %s359, 32
      %s361 = smul.addr %s360, 8
      %s362 = scalar_lea.vmem %s0, %s361
      %p363 = pneg %p44
      %p364 = pneg %p41
      %p365 = scmp.lt.s32.totalorder %s23, 1
      %s366 = scalar_select %p365, %s23, 1
      %s367 = smul.addr %s366, 32
      %s368 = smul.addr %s367, 8
      %s369 = scalar_lea.vmem %s1, %s368
      %p370 = pneg %p70
      %p371 = pneg %p67
      %p372 = pneg %p91
      %p373 = pneg %p88
      %p374 = pneg %p112
      %p375 = pneg %p109
      %p376 = pneg %p133
      %p377 = pneg %p130
      %p378 = pneg %p154
      %p379 = pneg %p151
      %p380 = pneg %p175
      %p381 = pneg %p172
      %p382 = pneg %p196
      %p383 = pneg %p193
      %p384 = pneg %p217
      %p385 = pneg %p214
      %p386 = pneg %p243
      %p387 = pneg %p240
      %p388 = scmp.lt.s32.totalorder %s23, 1
      %s389 = scalar_select %p388, %s23, 1
      %s390 = smul.addr %s389, 32
      %s391 = smul.addr %s390, 8
      %s392 = scalar_lea.vmem %s9, %s391
      %p393 = pneg %p269
      %p394 = pneg %p266
      %p395 = scmp.lt.s32.totalorder %s23, 1
      %s396 = scalar_select %p395, %s23, 1
      %s397 = smul.addr %s396, 32
      %s398 = smul.addr %s397, 8
      %s399 = scalar_lea.vmem %s10, %s398
      %p400 = pneg %p295
      %p401 = pneg %p292
      %p402 = scmp.lt.s32.totalorder %s23, 1
      %s403 = scalar_select %p402, %s23, 1
      %s404 = smul.addr %s403, 32
      %s405 = smul.addr %s404, 8
      %s406 = scalar_lea.vmem %s11, %s405
      %p407 = scmp.lt.s32.totalorder %s23, 1
      %s408 = scalar_select %p407, %s23, 1
      %s409 = smul.addr %s408, 32
      %s410 = smul.addr %s409, 8
      %s411 = scalar_lea.vmem %s0, %s410
      %p412 = scmp.lt.s32.totalorder %s23, 1
      %s413 = scalar_select %p412, %s23, 1
      %s414 = smul.addr %s413, 32
      %s415 = smul.addr %s414, 8
      %s416 = scalar_lea.vmem %s1, %s415
      %p417 = scmp.lt.s32.totalorder %s23, 1
      %s418 = scalar_select %p417, %s23, 1
      %s419 = smul.addr %s418, 32
      %s420 = smul.addr %s419, 8
      %s421 = scalar_lea.vmem %s9, %s420
      %p422 = scmp.lt.s32.totalorder %s23, 1
      %s423 = scalar_select %p422, %s23, 1
      %s424 = smul.addr %s423, 32
      %s425 = smul.addr %s424, 8
      %s426 = scalar_lea.vmem %s10, %s425
      %p427 = scmp.lt.s32.totalorder %s23, 1
      %s428 = scalar_select %p427, %s23, 1
      %s429 = smul.addr %s428, 32
      %s430 = smul.addr %s429, 8
      %s431 = scalar_lea.vmem %s11, %s430
      %v432 = vld [vmem:[%s411] sm:$0xff]
      %v433 = vld [vmem:[%s411 + $0x8] sm:$0xff]
      %v434 = vld [vmem:[%s411 + $0x10] sm:$0xff]
      %v435 = vld [vmem:[%s411 + $0x18] sm:$0xff]
      %v436 = vld [vmem:[%s411 + $0x20] sm:$0xff]
      %v437 = vld [vmem:[%s411 + $0x28] sm:$0xff]
      %v438 = vld [vmem:[%s411 + $0x30] sm:$0xff]
      %v439 = vld [vmem:[%s411 + $0x38] sm:$0xff]
      %v440 = vld [vmem:[%s411 + $0x40] sm:$0xff]
      %v441 = vld [vmem:[%s411 + $0x48] sm:$0xff]
      %v442 = vld [vmem:[%s411 + $0x50] sm:$0xff]
      %v443 = vld [vmem:[%s411 + $0x58] sm:$0xff]
      %v444 = vld [vmem:[%s411 + $0x60] sm:$0xff]
      %v445 = vld [vmem:[%s411 + $0x68] sm:$0xff]
      %v446 = vld [vmem:[%s411 + $0x70] sm:$0xff]
      %v447 = vld [vmem:[%s411 + $0x78] sm:$0xff]
      %v448 = vld [vmem:[%s411 + $0x80] sm:$0xff]
      %v449 = vld [vmem:[%s411 + $0x88] sm:$0xff]
      %v450 = vld [vmem:[%s411 + $0x90] sm:$0xff]
      %v451 = vld [vmem:[%s411 + $0x98] sm:$0xff]
      %v452 = vld [vmem:[%s411 + $0xa0] sm:$0xff]
      %v453 = vld [vmem:[%s411 + $0xa8] sm:$0xff]
      %v454 = vld [vmem:[%s411 + $0xb0] sm:$0xff]
      %v455 = vld [vmem:[%s411 + $0xb8] sm:$0xff]
      %v456 = vld [vmem:[%s411 + $0xc0] sm:$0xff]
      %v457 = vld [vmem:[%s411 + $0xc8] sm:$0xff]
      %v458 = vld [vmem:[%s411 + $0xd0] sm:$0xff]
      %v459 = vld [vmem:[%s411 + $0xd8] sm:$0xff]
      %v460 = vld [vmem:[%s411 + $0xe0] sm:$0xff]
      %v461 = vld [vmem:[%s411 + $0xe8] sm:$0xff]
      %v462 = vld [vmem:[%s411 + $0xf0] sm:$0xff]
      %v463 = vld [vmem:[%s411 + $0xf8] sm:$0xff]
      %v464 = vld [vmem:[%s416] sm:$0xff]
      %v465 = vld [vmem:[%s416 + $0x8] sm:$0xff]
      %v466 = vld [vmem:[%s416 + $0x10] sm:$0xff]
      %v467 = vld [vmem:[%s416 + $0x18] sm:$0xff]
      %v468 = vld [vmem:[%s416 + $0x20] sm:$0xff]
      %v469 = vld [vmem:[%s416 + $0x28] sm:$0xff]
      %v470 = vld [vmem:[%s416 + $0x30] sm:$0xff]
      %v471 = vld [vmem:[%s416 + $0x38] sm:$0xff]
      %v472 = vld [vmem:[%s416 + $0x40] sm:$0xff]
      %v473 = vld [vmem:[%s416 + $0x48] sm:$0xff]
      %v474 = vld [vmem:[%s416 + $0x50] sm:$0xff]
      %v475 = vld [vmem:[%s416 + $0x58] sm:$0xff]
      %v476 = vld [vmem:[%s416 + $0x60] sm:$0xff]
      %v477 = vld [vmem:[%s416 + $0x68] sm:$0xff]
      %v478 = vld [vmem:[%s416 + $0x70] sm:$0xff]
      %v479 = vld [vmem:[%s416 + $0x78] sm:$0xff]
      %v480 = vld [vmem:[%s416 + $0x80] sm:$0xff]
      %v481 = vld [vmem:[%s416 + $0x88] sm:$0xff]
      %v482 = vld [vmem:[%s416 + $0x90] sm:$0xff]
      %v483 = vld [vmem:[%s416 + $0x98] sm:$0xff]
      %v484 = vld [vmem:[%s416 + $0xa0] sm:$0xff]
      %v485 = vld [vmem:[%s416 + $0xa8] sm:$0xff]
      %v486 = vld [vmem:[%s416 + $0xb0] sm:$0xff]
      %v487 = vld [vmem:[%s416 + $0xb8] sm:$0xff]
      %v488 = vld [vmem:[%s416 + $0xc0] sm:$0xff]
      %v489 = vld [vmem:[%s416 + $0xc8] sm:$0xff]
      %v490 = vld [vmem:[%s416 + $0xd0] sm:$0xff]
      %v491 = vld [vmem:[%s416 + $0xd8] sm:$0xff]
      %v492 = vld [vmem:[%s416 + $0xe0] sm:$0xff]
      %v493 = vld [vmem:[%s416 + $0xe8] sm:$0xff]
      %v494 = vld [vmem:[%s416 + $0xf0] sm:$0xff]
      %v495 = vld [vmem:[%s416 + $0xf8] sm:$0xff]
      %vm496 = vcmask 261120
      %v497 = vsel %vm496, %v432, 0.0
      %498 = vadd.xlane.f32.xlu0 %v497
      %v499 = vpop.xlane.xlu0 %498
      %v500 = vsel %vm496, %v433, 0.0
      %501 = vadd.xlane.f32.xlu0 %v500
      %v502 = vpop.xlane.xlu0 %501
      %v503 = vsel %vm496, %v434, 0.0
      %504 = vadd.xlane.f32.xlu0 %v503
      %v505 = vpop.xlane.xlu0 %504
      %v506 = vsel %vm496, %v435, 0.0
      %507 = vadd.xlane.f32.xlu0 %v506
      %v508 = vpop.xlane.xlu0 %507
      %v509 = vsel %vm496, %v436, 0.0
      %510 = vadd.xlane.f32.xlu0 %v509
      %v511 = vpop.xlane.xlu0 %510
      %v512 = vsel %vm496, %v437, 0.0
      %513 = vadd.xlane.f32.xlu0 %v512
      %v514 = vpop.xlane.xlu0 %513
      %v515 = vsel %vm496, %v438, 0.0
      %516 = vadd.xlane.f32.xlu0 %v515
      %v517 = vpop.xlane.xlu0 %516
      %v518 = vsel %vm496, %v439, 0.0
      %519 = vadd.xlane.f32.xlu0 %v518
      %v520 = vpop.xlane.xlu0 %519
      %v521 = vsel %vm496, %v440, 0.0
      %522 = vadd.xlane.f32.xlu0 %v521
      %v523 = vpop.xlane.xlu0 %522
      %v524 = vsel %vm496, %v441, 0.0
      %525 = vadd.xlane.f32.xlu0 %v524
      %v526 = vpop.xlane.xlu0 %525
      %v527 = vsel %vm496, %v442, 0.0
      %528 = vadd.xlane.f32.xlu0 %v527
      %v529 = vpop.xlane.xlu0 %528
      %v530 = vsel %vm496, %v443, 0.0
      %531 = vadd.xlane.f32.xlu0 %v530
      %v532 = vpop.xlane.xlu0 %531
      %v533 = vsel %vm496, %v444, 0.0
      %534 = vadd.xlane.f32.xlu0 %v533
      %v535 = vpop.xlane.xlu0 %534
      %v536 = vsel %vm496, %v445, 0.0
      %537 = vadd.xlane.f32.xlu0 %v536
      %v538 = vpop.xlane.xlu0 %537
      %v539 = vsel %vm496, %v446, 0.0
      %540 = vadd.xlane.f32.xlu0 %v539
      %v541 = vpop.xlane.xlu0 %540
      %v542 = vsel %vm496, %v447, 0.0
      %543 = vadd.xlane.f32.xlu0 %v542
      %v544 = vpop.xlane.xlu0 %543
      %v545 = vsel %vm496, %v448, 0.0
      %546 = vadd.xlane.f32.xlu0 %v545
      %v547 = vpop.xlane.xlu0 %546
      %v548 = vsel %vm496, %v449, 0.0
      %549 = vadd.xlane.f32.xlu0 %v548
      %v550 = vpop.xlane.xlu0 %549
      %v551 = vsel %vm496, %v450, 0.0
      %552 = vadd.xlane.f32.xlu0 %v551
      %v553 = vpop.xlane.xlu0 %552
      %v554 = vsel %vm496, %v451, 0.0
      %555 = vadd.xlane.f32.xlu0 %v554
      %v556 = vpop.xlane.xlu0 %555
      %v557 = vsel %vm496, %v452, 0.0
      %558 = vadd.xlane.f32.xlu0 %v557
      %v559 = vpop.xlane.xlu0 %558
      %v560 = vsel %vm496, %v453, 0.0
      %561 = vadd.xlane.f32.xlu0 %v560
      %v562 = vpop.xlane.xlu0 %561
      %v563 = vsel %vm496, %v454, 0.0
      %564 = vadd.xlane.f32.xlu0 %v563
      %v565 = vpop.xlane.xlu0 %564
      %v566 = vsel %vm496, %v455, 0.0
      %567 = vadd.xlane.f32.xlu0 %v566
      %v568 = vpop.xlane.xlu0 %567
      %v569 = vsel %vm496, %v456, 0.0
      %570 = vadd.xlane.f32.xlu0 %v569
      %v571 = vpop.xlane.xlu0 %570
      %v572 = vsel %vm496, %v457, 0.0
      %573 = vadd.xlane.f32.xlu0 %v572
      %v574 = vpop.xlane.xlu0 %573
      %v575 = vsel %vm496, %v458, 0.0
      %576 = vadd.xlane.f32.xlu0 %v575
      %v577 = vpop.xlane.xlu0 %576
      %v578 = vsel %vm496, %v459, 0.0
      %579 = vadd.xlane.f32.xlu0 %v578
      %v580 = vpop.xlane.xlu0 %579
      %v581 = vsel %vm496, %v460, 0.0
      %582 = vadd.xlane.f32.xlu0 %v581
      %v583 = vpop.xlane.xlu0 %582
      %v584 = vsel %vm496, %v461, 0.0
      %585 = vadd.xlane.f32.xlu0 %v584
      %v586 = vpop.xlane.xlu0 %585
      %v587 = vsel %vm496, %v462, 0.0
      %588 = vadd.xlane.f32.xlu0 %v587
      %v589 = vpop.xlane.xlu0 %588
      %v590 = vsel %vm496, %v463, 0.0
      %591 = vadd.xlane.f32.xlu0 %v590
      %v592 = vpop.xlane.xlu0 %591
      %v593 = vrcp.pop 32.0
      %v594 = vmul.f32 %v499, %v593
      %v595 = vmul.f32 %v502, %v593
      %v596 = vmul.f32 %v505, %v593
      %v597 = vmul.f32 %v508, %v593
      %v598 = vmul.f32 %v511, %v593
      %v599 = vmul.f32 %v514, %v593
      %v600 = vmul.f32 %v517, %v593
      %v601 = vmul.f32 %v520, %v593
      %v602 = vmul.f32 %v523, %v593
      %v603 = vmul.f32 %v526, %v593
      %v604 = vmul.f32 %v529, %v593
      %v605 = vmul.f32 %v532, %v593
      %v606 = vmul.f32 %v535, %v593
      %v607 = vmul.f32 %v538, %v593
      %v608 = vmul.f32 %v541, %v593
      %v609 = vmul.f32 %v544, %v593
      %v610 = vmul.f32 %v547, %v593
      %v611 = vmul.f32 %v550, %v593
      %v612 = vmul.f32 %v553, %v593
      %v613 = vmul.f32 %v556, %v593
      %v614 = vmul.f32 %v559, %v593
      %v615 = vmul.f32 %v562, %v593
      %v616 = vmul.f32 %v565, %v593
      %v617 = vmul.f32 %v568, %v593
      %v618 = vmul.f32 %v571, %v593
      %v619 = vmul.f32 %v574, %v593
      %v620 = vmul.f32 %v577, %v593
      %v621 = vmul.f32 %v580, %v593
      %v622 = vmul.f32 %v583, %v593
      %v623 = vmul.f32 %v586, %v593
      %v624 = vmul.f32 %v589, %v593
      %v625 = vmul.f32 %v592, %v593
      %v626 = vsel %vm496, %v432, -inf
      %627 = vmax.xlane.f32.xlu0 %v626
      %v628 = vpop.xlane.xlu0 %627
      %v629 = vsel %vm496, %v433, -inf
      %630 = vmax.xlane.f32.xlu0 %v629
      %v631 = vpop.xlane.xlu0 %630
      %v632 = vsel %vm496, %v434, -inf
      %633 = vmax.xlane.f32.xlu0 %v632
      %v634 = vpop.xlane.xlu0 %633
      %v635 = vsel %vm496, %v435, -inf
      %636 = vmax.xlane.f32.xlu0 %v635
      %v637 = vpop.xlane.xlu0 %636
      %v638 = vsel %vm496, %v436, -inf
      %639 = vmax.xlane.f32.xlu0 %v638
      %v640 = vpop.xlane.xlu0 %639
      %v641 = vsel %vm496, %v437, -inf
      %642 = vmax.xlane.f32.xlu0 %v641
      %v643 = vpop.xlane.xlu0 %642
      %v644 = vsel %vm496, %v438, -inf
      %645 = vmax.xlane.f32.xlu0 %v644
      %v646 = vpop.xlane.xlu0 %645
      %v647 = vsel %vm496, %v439, -inf
      %648 = vmax.xlane.f32.xlu0 %v647
      %v649 = vpop.xlane.xlu0 %648
      %v650 = vsel %vm496, %v440, -inf
      %651 = vmax.xlane.f32.xlu0 %v650
      %v652 = vpop.xlane.xlu0 %651
      %v653 = vsel %vm496, %v441, -inf
      %654 = vmax.xlane.f32.xlu0 %v653
      %v655 = vpop.xlane.xlu0 %654
      %v656 = vsel %vm496, %v442, -inf
      %657 = vmax.xlane.f32.xlu0 %v656
      %v658 = vpop.xlane.xlu0 %657
      %v659 = vsel %vm496, %v443, -inf
      %660 = vmax.xlane.f32.xlu0 %v659
      %v661 = vpop.xlane.xlu0 %660
      %v662 = vsel %vm496, %v444, -inf
      %663 = vmax.xlane.f32.xlu0 %v662
      %v664 = vpop.xlane.xlu0 %663
      %v665 = vsel %vm496, %v445, -inf
      %666 = vmax.xlane.f32.xlu0 %v665
      %v667 = vpop.xlane.xlu0 %666
      %v668 = vsel %vm496, %v446, -inf
      %669 = vmax.xlane.f32.xlu0 %v668
      %v670 = vpop.xlane.xlu0 %669
      %v671 = vsel %vm496, %v447, -inf
      %672 = vmax.xlane.f32.xlu0 %v671
      %v673 = vpop.xlane.xlu0 %672
      %v674 = vsel %vm496, %v448, -inf
      %675 = vmax.xlane.f32.xlu0 %v674
      %v676 = vpop.xlane.xlu0 %675
      %v677 = vsel %vm496, %v449, -inf
      %678 = vmax.xlane.f32.xlu0 %v677
      %v679 = vpop.xlane.xlu0 %678
      %v680 = vsel %vm496, %v450, -inf
      %681 = vmax.xlane.f32.xlu0 %v680
      %v682 = vpop.xlane.xlu0 %681
      %v683 = vsel %vm496, %v451, -inf
      %684 = vmax.xlane.f32.xlu0 %v683
      %v685 = vpop.xlane.xlu0 %684
      %v686 = vsel %vm496, %v452, -inf
      %687 = vmax.xlane.f32.xlu0 %v686
      %v688 = vpop.xlane.xlu0 %687
      %v689 = vsel %vm496, %v453, -inf
      %690 = vmax.xlane.f32.xlu0 %v689
      %v691 = vpop.xlane.xlu0 %690
      %v692 = vsel %vm496, %v454, -inf
      %693 = vmax.xlane.f32.xlu0 %v692
      %v694 = vpop.xlane.xlu0 %693
      %v695 = vsel %vm496, %v455, -inf
      %696 = vmax.xlane.f32.xlu0 %v695
      %v697 = vpop.xlane.xlu0 %696
      %v698 = vsel %vm496, %v456, -inf
      %699 = vmax.xlane.f32.xlu0 %v698
      %v700 = vpop.xlane.xlu0 %699
      %v701 = vsel %vm496, %v457, -inf
      %702 = vmax.xlane.f32.xlu0 %v701
      %v703 = vpop.xlane.xlu0 %702
      %v704 = vsel %vm496, %v458, -inf
      %705 = vmax.xlane.f32.xlu0 %v704
      %v706 = vpop.xlane.xlu0 %705
      %v707 = vsel %vm496, %v459, -inf
      %708 = vmax.xlane.f32.xlu0 %v707
      %v709 = vpop.xlane.xlu0 %708
      %v710 = vsel %vm496, %v460, -inf
      %711 = vmax.xlane.f32.xlu0 %v710
      %v712 = vpop.xlane.xlu0 %711
      %v713 = vsel %vm496, %v461, -inf
      %714 = vmax.xlane.f32.xlu0 %v713
      %v715 = vpop.xlane.xlu0 %714
      %v716 = vsel %vm496, %v462, -inf
      %717 = vmax.xlane.f32.xlu0 %v716
      %v718 = vpop.xlane.xlu0 %717
      %v719 = vsel %vm496, %v463, -inf
      %720 = vmax.xlane.f32.xlu0 %v719
      %v721 = vpop.xlane.xlu0 %720
      %v722 = vsel %vm496, %v464, 0.0
      %723 = vadd.xlane.f32.xlu0 %v722
      %v724 = vpop.xlane.xlu0 %723
      %v725 = vsel %vm496, %v465, 0.0
      %726 = vadd.xlane.f32.xlu0 %v725
      %v727 = vpop.xlane.xlu0 %726
      %v728 = vsel %vm496, %v466, 0.0
      %729 = vadd.xlane.f32.xlu0 %v728
      %v730 = vpop.xlane.xlu0 %729
      %v731 = vsel %vm496, %v467, 0.0
      %732 = vadd.xlane.f32.xlu0 %v731
      %v733 = vpop.xlane.xlu0 %732
      %v734 = vsel %vm496, %v468, 0.0
      %735 = vadd.xlane.f32.xlu0 %v734
      %v736 = vpop.xlane.xlu0 %735
      %v737 = vsel %vm496, %v469, 0.0
      %738 = vadd.xlane.f32.xlu0 %v737
      %v739 = vpop.xlane.xlu0 %738
      %v740 = vsel %vm496, %v470, 0.0
      %741 = vadd.xlane.f32.xlu0 %v740
      %v742 = vpop.xlane.xlu0 %741
      %v743 = vsel %vm496, %v471, 0.0
      %744 = vadd.xlane.f32.xlu0 %v743
      %v745 = vpop.xlane.xlu0 %744
      %v746 = vsel %vm496, %v472, 0.0
      %747 = vadd.xlane.f32.xlu0 %v746
      %v748 = vpop.xlane.xlu0 %747
      %v749 = vsel %vm496, %v473, 0.0
      %750 = vadd.xlane.f32.xlu0 %v749
      %v751 = vpop.xlane.xlu0 %750
      %v752 = vsel %vm496, %v474, 0.0
      %753 = vadd.xlane.f32.xlu0 %v752
      %v754 = vpop.xlane.xlu0 %753
      %v755 = vsel %vm496, %v475, 0.0
      %756 = vadd.xlane.f32.xlu0 %v755
      %v757 = vpop.xlane.xlu0 %756
      %v758 = vsel %vm496, %v476, 0.0
      %759 = vadd.xlane.f32.xlu0 %v758
      %v760 = vpop.xlane.xlu0 %759
      %v761 = vsel %vm496, %v477, 0.0
      %762 = vadd.xlane.f32.xlu0 %v761
      %v763 = vpop.xlane.xlu0 %762
      %v764 = vsel %vm496, %v478, 0.0
      %765 = vadd.xlane.f32.xlu0 %v764
      %v766 = vpop.xlane.xlu0 %765
      %v767 = vsel %vm496, %v479, 0.0
      %768 = vadd.xlane.f32.xlu0 %v767
      %v769 = vpop.xlane.xlu0 %768
      %v770 = vsel %vm496, %v480, 0.0
      %771 = vadd.xlane.f32.xlu0 %v770
      %v772 = vpop.xlane.xlu0 %771
      %v773 = vsel %vm496, %v481, 0.0
      %774 = vadd.xlane.f32.xlu0 %v773
      %v775 = vpop.xlane.xlu0 %774
      %v776 = vsel %vm496, %v482, 0.0
      %777 = vadd.xlane.f32.xlu0 %v776
      %v778 = vpop.xlane.xlu0 %777
      %v779 = vsel %vm496, %v483, 0.0
      %780 = vadd.xlane.f32.xlu0 %v779
      %v781 = vpop.xlane.xlu0 %780
      %v782 = vsel %vm496, %v484, 0.0
      %783 = vadd.xlane.f32.xlu0 %v782
      %v784 = vpop.xlane.xlu0 %783
      %v785 = vsel %vm496, %v485, 0.0
      %786 = vadd.xlane.f32.xlu0 %v785
      %v787 = vpop.xlane.xlu0 %786
      %v788 = vsel %vm496, %v486, 0.0
      %789 = vadd.xlane.f32.xlu0 %v788
      %v790 = vpop.xlane.xlu0 %789
      %v791 = vsel %vm496, %v487, 0.0
      %792 = vadd.xlane.f32.xlu0 %v791
      %v793 = vpop.xlane.xlu0 %792
      %v794 = vsel %vm496, %v488, 0.0
      %795 = vadd.xlane.f32.xlu0 %v794
      %v796 = vpop.xlane.xlu0 %795
      %v797 = vsel %vm496, %v489, 0.0
      %798 = vadd.xlane.f32.xlu0 %v797
      %v799 = vpop.xlane.xlu0 %798
      %v800 = vsel %vm496, %v490, 0.0
      %801 = vadd.xlane.f32.xlu0 %v800
      %v802 = vpop.xlane.xlu0 %801
      %v803 = vsel %vm496, %v491, 0.0
      %804 = vadd.xlane.f32.xlu0 %v803
      %v805 = vpop.xlane.xlu0 %804
      %v806 = vsel %vm496, %v492, 0.0
      %807 = vadd.xlane.f32.xlu0 %v806
      %v808 = vpop.xlane.xlu0 %807
      %v809 = vsel %vm496, %v493, 0.0
      %810 = vadd.xlane.f32.xlu0 %v809
      %v811 = vpop.xlane.xlu0 %810
      %v812 = vsel %vm496, %v494, 0.0
      %813 = vadd.xlane.f32.xlu0 %v812
      %v814 = vpop.xlane.xlu0 %813
      %v815 = vsel %vm496, %v495, 0.0
      %816 = vadd.xlane.f32.xlu0 %v815
      %v817 = vpop.xlane.xlu0 %816
      %v818 = vmul.f32 %v724, %v593
      %v819 = vmul.f32 %v727, %v593
      %v820 = vmul.f32 %v730, %v593
      %v821 = vmul.f32 %v733, %v593
      %v822 = vmul.f32 %v736, %v593
      %v823 = vmul.f32 %v739, %v593
      %v824 = vmul.f32 %v742, %v593
      %v825 = vmul.f32 %v745, %v593
      %v826 = vmul.f32 %v748, %v593
      %v827 = vmul.f32 %v751, %v593
      %v828 = vmul.f32 %v754, %v593
      %v829 = vmul.f32 %v757, %v593
      %v830 = vmul.f32 %v760, %v593
      %v831 = vmul.f32 %v763, %v593
      %v832 = vmul.f32 %v766, %v593
      %v833 = vmul.f32 %v769, %v593
      %v834 = vmul.f32 %v772, %v593
      %v835 = vmul.f32 %v775, %v593
      %v836 = vmul.f32 %v778, %v593
      %v837 = vmul.f32 %v781, %v593
      %v838 = vmul.f32 %v784, %v593
      %v839 = vmul.f32 %v787, %v593
      %v840 = vmul.f32 %v790, %v593
      %v841 = vmul.f32 %v793, %v593
      %v842 = vmul.f32 %v796, %v593
      %v843 = vmul.f32 %v799, %v593
      %v844 = vmul.f32 %v802, %v593
      %v845 = vmul.f32 %v805, %v593
      %v846 = vmul.f32 %v808, %v593
      %v847 = vmul.f32 %v811, %v593
      %v848 = vmul.f32 %v814, %v593
      %v849 = vmul.f32 %v817, %v593
      %v850 = vsel %vm496, %v464, -inf
      %851 = vmax.xlane.f32.xlu0 %v850
      %v852 = vpop.xlane.xlu0 %851
      %v853 = vsel %vm496, %v465, -inf
      %854 = vmax.xlane.f32.xlu0 %v853
      %v855 = vpop.xlane.xlu0 %854
      %v856 = vsel %vm496, %v466, -inf
      %857 = vmax.xlane.f32.xlu0 %v856
      %v858 = vpop.xlane.xlu0 %857
      %v859 = vsel %vm496, %v467, -inf
      %860 = vmax.xlane.f32.xlu0 %v859
      %v861 = vpop.xlane.xlu0 %860
      %v862 = vsel %vm496, %v468, -inf
      %863 = vmax.xlane.f32.xlu0 %v862
      %v864 = vpop.xlane.xlu0 %863
      %v865 = vsel %vm496, %v469, -inf
      %866 = vmax.xlane.f32.xlu0 %v865
      %v867 = vpop.xlane.xlu0 %866
      %v868 = vsel %vm496, %v470, -inf
      %869 = vmax.xlane.f32.xlu0 %v868
      %v870 = vpop.xlane.xlu0 %869
      %v871 = vsel %vm496, %v471, -inf
      %872 = vmax.xlane.f32.xlu0 %v871
      %v873 = vpop.xlane.xlu0 %872
      %v874 = vsel %vm496, %v472, -inf
      %875 = vmax.xlane.f32.xlu0 %v874
      %v876 = vpop.xlane.xlu0 %875
      %v877 = vsel %vm496, %v473, -inf
      %878 = vmax.xlane.f32.xlu0 %v877
      %v879 = vpop.xlane.xlu0 %878
      %v880 = vsel %vm496, %v474, -inf
      %881 = vmax.xlane.f32.xlu0 %v880
      %v882 = vpop.xlane.xlu0 %881
      %v883 = vsel %vm496, %v475, -inf
      %884 = vmax.xlane.f32.xlu0 %v883
      %v885 = vpop.xlane.xlu0 %884
      %v886 = vsel %vm496, %v476, -inf
      %887 = vmax.xlane.f32.xlu0 %v886
      %v888 = vpop.xlane.xlu0 %887
      %v889 = vsel %vm496, %v477, -inf
      %890 = vmax.xlane.f32.xlu0 %v889
      %v891 = vpop.xlane.xlu0 %890
      %v892 = vsel %vm496, %v478, -inf
      %893 = vmax.xlane.f32.xlu0 %v892
      %v894 = vpop.xlane.xlu0 %893
      %v895 = vsel %vm496, %v479, -inf
      %896 = vmax.xlane.f32.xlu0 %v895
      %v897 = vpop.xlane.xlu0 %896
      %v898 = vsel %vm496, %v480, -inf
      %899 = vmax.xlane.f32.xlu0 %v898
      %v900 = vpop.xlane.xlu0 %899
      %v901 = vsel %vm496, %v481, -inf
      %902 = vmax.xlane.f32.xlu0 %v901
      %v903 = vpop.xlane.xlu0 %902
      %v904 = vsel %vm496, %v482, -inf
      %905 = vmax.xlane.f32.xlu0 %v904
      %v906 = vpop.xlane.xlu0 %905
      %v907 = vsel %vm496, %v483, -inf
      %908 = vmax.xlane.f32.xlu0 %v907
      %v909 = vpop.xlane.xlu0 %908
      %v910 = vsel %vm496, %v484, -inf
      %911 = vmax.xlane.f32.xlu0 %v910
      %v912 = vpop.xlane.xlu0 %911
      %v913 = vsel %vm496, %v485, -inf
      %914 = vmax.xlane.f32.xlu0 %v913
      %v915 = vpop.xlane.xlu0 %914
      %v916 = vsel %vm496, %v486, -inf
      %917 = vmax.xlane.f32.xlu0 %v916
      %v918 = vpop.xlane.xlu0 %917
      %v919 = vsel %vm496, %v487, -inf
      %920 = vmax.xlane.f32.xlu0 %v919
      %v921 = vpop.xlane.xlu0 %920
      %v922 = vsel %vm496, %v488, -inf
      %923 = vmax.xlane.f32.xlu0 %v922
      %v924 = vpop.xlane.xlu0 %923
      %v925 = vsel %vm496, %v489, -inf
      %926 = vmax.xlane.f32.xlu0 %v925
      %v927 = vpop.xlane.xlu0 %926
      %v928 = vsel %vm496, %v490, -inf
      %929 = vmax.xlane.f32.xlu0 %v928
      %v930 = vpop.xlane.xlu0 %929
      %v931 = vsel %vm496, %v491, -inf
      %932 = vmax.xlane.f32.xlu0 %v931
      %v933 = vpop.xlane.xlu0 %932
      %v934 = vsel %vm496, %v492, -inf
      %935 = vmax.xlane.f32.xlu0 %v934
      %v936 = vpop.xlane.xlu0 %935
      %v937 = vsel %vm496, %v493, -inf
      %938 = vmax.xlane.f32.xlu0 %v937
      %v939 = vpop.xlane.xlu0 %938
      %v940 = vsel %vm496, %v494, -inf
      %941 = vmax.xlane.f32.xlu0 %v940
      %v942 = vpop.xlane.xlu0 %941
      %v943 = vsel %vm496, %v495, -inf
      %944 = vmax.xlane.f32.xlu0 %v943
      %v945 = vpop.xlane.xlu0 %944
      %vm946 = vcmask 7168
      %v947 = vsel %vm946, %v594, %v628
      %v948 = vsel %vm946, %v595, %v631
      %v949 = vsel %vm946, %v596, %v634
      %v950 = vsel %vm946, %v597, %v637
      %v951 = vsel %vm946, %v598, %v640
      %v952 = vsel %vm946, %v599, %v643
      %v953 = vsel %vm946, %v600, %v646
      %v954 = vsel %vm946, %v601, %v649
      %v955 = vsel %vm946, %v602, %v652
      %v956 = vsel %vm946, %v603, %v655
      %v957 = vsel %vm946, %v604, %v658
      %v958 = vsel %vm946, %v605, %v661
      %v959 = vsel %vm946, %v606, %v664
      %v960 = vsel %vm946, %v607, %v667
      %v961 = vsel %vm946, %v608, %v670
      %v962 = vsel %vm946, %v609, %v673
      %v963 = vsel %vm946, %v610, %v676
      %v964 = vsel %vm946, %v611, %v679
      %v965 = vsel %vm946, %v612, %v682
      %v966 = vsel %vm946, %v613, %v685
      %v967 = vsel %vm946, %v614, %v688
      %v968 = vsel %vm946, %v615, %v691
      %v969 = vsel %vm946, %v616, %v694
      %v970 = vsel %vm946, %v617, %v697
      %v971 = vsel %vm946, %v618, %v700
      %v972 = vsel %vm946, %v619, %v703
      %v973 = vsel %vm946, %v620, %v706
      %v974 = vsel %vm946, %v621, %v709
      %v975 = vsel %vm946, %v622, %v712
      %v976 = vsel %vm946, %v623, %v715
      %v977 = vsel %vm946, %v624, %v718
      %v978 = vsel %vm946, %v625, %v721
      %vm979 = vcmask 15360
      %v980 = vsel %vm979, %v947, %v818
      %v981 = vsel %vm979, %v948, %v819
      %v982 = vsel %vm979, %v949, %v820
      %v983 = vsel %vm979, %v950, %v821
      %v984 = vsel %vm979, %v951, %v822
      %v985 = vsel %vm979, %v952, %v823
      %v986 = vsel %vm979, %v953, %v824
      %v987 = vsel %vm979, %v954, %v825
      %v988 = vsel %vm979, %v955, %v826
      %v989 = vsel %vm979, %v956, %v827
      %v990 = vsel %vm979, %v957, %v828
      %v991 = vsel %vm979, %v958, %v829
      %v992 = vsel %vm979, %v959, %v830
      %v993 = vsel %vm979, %v960, %v831
      %v994 = vsel %vm979, %v961, %v832
      %v995 = vsel %vm979, %v962, %v833
      %v996 = vsel %vm979, %v963, %v834
      %v997 = vsel %vm979, %v964, %v835
      %v998 = vsel %vm979, %v965, %v836
      %v999 = vsel %vm979, %v966, %v837
      %v1000 = vsel %vm979, %v967, %v838
      %v1001 = vsel %vm979, %v968, %v839
      %v1002 = vsel %vm979, %v969, %v840
      %v1003 = vsel %vm979, %v970, %v841
      %v1004 = vsel %vm979, %v971, %v842
      %v1005 = vsel %vm979, %v972, %v843
      %v1006 = vsel %vm979, %v973, %v844
      %v1007 = vsel %vm979, %v974, %v845
      %v1008 = vsel %vm979, %v975, %v846
      %v1009 = vsel %vm979, %v976, %v847
      %v1010 = vsel %vm979, %v977, %v848
      %v1011 = vsel %vm979, %v978, %v849
      %vm1012 = vcmask 23552
      %v1013 = vsel %vm1012, %v980, %v852
      %v1014 = vsel %vm1012, %v981, %v855
      %v1015 = vsel %vm1012, %v982, %v858
      %v1016 = vsel %vm1012, %v983, %v861
      %v1017 = vsel %vm1012, %v984, %v864
      %v1018 = vsel %vm1012, %v985, %v867
      %v1019 = vsel %vm1012, %v986, %v870
      %v1020 = vsel %vm1012, %v987, %v873
      %v1021 = vsel %vm1012, %v988, %v876
      %v1022 = vsel %vm1012, %v989, %v879
      %v1023 = vsel %vm1012, %v990, %v882
      %v1024 = vsel %vm1012, %v991, %v885
      %v1025 = vsel %vm1012, %v992, %v888
      %v1026 = vsel %vm1012, %v993, %v891
      %v1027 = vsel %vm1012, %v994, %v894
      %v1028 = vsel %vm1012, %v995, %v897
      %v1029 = vsel %vm1012, %v996, %v900
      %v1030 = vsel %vm1012, %v997, %v903
      %v1031 = vsel %vm1012, %v998, %v906
      %v1032 = vsel %vm1012, %v999, %v909
      %v1033 = vsel %vm1012, %v1000, %v912
      %v1034 = vsel %vm1012, %v1001, %v915
      %v1035 = vsel %vm1012, %v1002, %v918
      %v1036 = vsel %vm1012, %v1003, %v921
      %v1037 = vsel %vm1012, %v1004, %v924
      %v1038 = vsel %vm1012, %v1005, %v927
      %v1039 = vsel %vm1012, %v1006, %v930
      %v1040 = vsel %vm1012, %v1007, %v933
      %v1041 = vsel %vm1012, %v1008, %v936
      %v1042 = vsel %vm1012, %v1009, %v939
      %v1043 = vsel %vm1012, %v1010, %v942
      %v1044 = vsel %vm1012, %v1011, %v945
      %vm1078 = vcmask 1042432
      %v1079 = vrot.slane 0.0, 5
      %v1080 = vsel %vm1078, %v1079, %v1079
      %v1081 = vrot.slane %v1013, 5
      %v1082 = vrot.slane %v1014, 5
      %v1083 = vsel %vm1078, %v1081, %v1082
      %v1084 = vrot.slane %v1015, 5
      %v1085 = vrot.slane %v1016, 5
      %v1086 = vsel %vm1078, %v1084, %v1085
      %v1087 = vrot.slane %v1017, 5
      %v1088 = vrot.slane %v1018, 5
      %v1089 = vsel %vm1078, %v1087, %v1088
      %v1090 = vrot.slane %v1019, 5
      %v1091 = vrot.slane %v1020, 5
      %v1092 = vsel %vm1078, %v1090, %v1091
      %v1093 = vrot.slane %v1021, 5
      %v1094 = vrot.slane %v1022, 5
      %v1095 = vsel %vm1078, %v1093, %v1094
      %v1096 = vrot.slane %v1023, 5
      %v1097 = vrot.slane %v1024, 5
      %v1098 = vsel %vm1078, %v1096, %v1097
      %v1099 = vrot.slane %v1025, 5
      %v1100 = vrot.slane %v1026, 5
      %v1101 = vsel %vm1078, %v1099, %v1100
      %v1102 = vrot.slane %v1027, 5
      %v1103 = vrot.slane %v1028, 5
      %v1104 = vsel %vm1078, %v1102, %v1103
      %v1105 = vrot.slane %v1029, 5
      %v1106 = vrot.slane %v1030, 5
      %v1107 = vsel %vm1078, %v1105, %v1106
      %v1108 = vrot.slane %v1031, 5
      %v1109 = vrot.slane %v1032, 5
      %v1110 = vsel %vm1078, %v1108, %v1109
      %v1111 = vrot.slane %v1033, 5
      %v1112 = vrot.slane %v1034, 5
      %v1113 = vsel %vm1078, %v1111, %v1112
      %v1114 = vrot.slane %v1035, 5
      %v1115 = vrot.slane %v1036, 5
      %v1116 = vsel %vm1078, %v1114, %v1115
      %v1117 = vrot.slane %v1037, 5
      %v1118 = vrot.slane %v1038, 5
      %v1119 = vsel %vm1078, %v1117, %v1118
      %v1120 = vrot.slane %v1039, 5
      %v1121 = vrot.slane %v1040, 5
      %v1122 = vsel %vm1078, %v1120, %v1121
      %v1123 = vrot.slane %v1041, 5
      %v1124 = vrot.slane %v1042, 5
      %v1125 = vsel %vm1078, %v1123, %v1124
      %v1126 = vrot.slane %v1043, 5
      %v1127 = vrot.slane %v1044, 5
      %v1128 = vsel %vm1078, %v1126, %v1127
      %v1176 = vsel %vm1078, 0.0, %v1079
      %v1177 = vsel %vm1078, 0.0, %v1081
      %v1178 = vsel %vm1078, 0.0, %v1084
      %v1179 = vsel %vm1078, 0.0, %v1087
      %v1180 = vsel %vm1078, 0.0, %v1090
      %v1181 = vsel %vm1078, 0.0, %v1093
      %v1182 = vsel %vm1078, 0.0, %v1096
      %v1183 = vsel %vm1078, 0.0, %v1099
      %v1184 = vsel %vm1078, 0.0, %v1102
      %v1185 = vsel %vm1078, 0.0, %v1105
      %v1186 = vsel %vm1078, 0.0, %v1108
      %v1187 = vsel %vm1078, 0.0, %v1111
      %v1188 = vsel %vm1078, 0.0, %v1114
      %v1189 = vsel %vm1078, 0.0, %v1117
      %v1190 = vsel %vm1078, 0.0, %v1120
      %v1191 = vsel %vm1078, 0.0, %v1123
      %v1192 = vsel %vm1078, 0.0, %v1126
      %v1193 = vsel %vm1078, %v1079, 0.0
      %v1194 = vsel %vm1078, %v1082, 0.0
      %v1195 = vsel %vm1078, %v1085, 0.0
      %v1196 = vsel %vm1078, %v1088, 0.0
      %v1197 = vsel %vm1078, %v1091, 0.0
      %v1198 = vsel %vm1078, %v1094, 0.0
      %v1199 = vsel %vm1078, %v1097, 0.0
      %v1200 = vsel %vm1078, %v1100, 0.0
      %v1201 = vsel %vm1078, %v1103, 0.0
      %v1202 = vsel %vm1078, %v1106, 0.0
      %v1203 = vsel %vm1078, %v1109, 0.0
      %v1204 = vsel %vm1078, %v1112, 0.0
      %v1205 = vsel %vm1078, %v1115, 0.0
      %v1206 = vsel %vm1078, %v1118, 0.0
      %v1207 = vsel %vm1078, %v1121, 0.0
      %v1208 = vsel %vm1078, %v1124, 0.0
      %v1209 = vsel %vm1078, %v1127, 0.0
      %1240 = vrot.lane.b32.xlu0 %v1176, 4
      %v1241 = vpop.permute.xlu0 %1240
      %1242 = vrot.lane.b32.xlu0 %v1080, 4
      %v1243 = vpop.permute.xlu0 %1242
      %1244 = vrot.lane.b32.xlu0 %v1193, 4
      %v1245 = vpop.permute.xlu0 %1244
      %1246 = vrot.lane.b32.xlu0 %v1177, 4
      %v1247 = vpop.permute.xlu0 %1246
      %1248 = vrot.lane.b32.xlu0 %v1083, 4
      %v1249 = vpop.permute.xlu0 %1248
      %1250 = vrot.lane.b32.xlu0 %v1194, 4
      %v1251 = vpop.permute.xlu0 %1250
      %1252 = vrot.lane.b32.xlu0 %v1178, 4
      %v1253 = vpop.permute.xlu0 %1252
      %1254 = vrot.lane.b32.xlu0 %v1086, 4
      %v1255 = vpop.permute.xlu0 %1254
      %1256 = vrot.lane.b32.xlu0 %v1195, 4
      %v1257 = vpop.permute.xlu0 %1256
      %1258 = vrot.lane.b32.xlu0 %v1179, 4
      %v1259 = vpop.permute.xlu0 %1258
      %1260 = vrot.lane.b32.xlu0 %v1089, 4
      %v1261 = vpop.permute.xlu0 %1260
      %1262 = vrot.lane.b32.xlu0 %v1196, 4
      %v1263 = vpop.permute.xlu0 %1262
      %1264 = vrot.lane.b32.xlu0 %v1180, 4
      %v1265 = vpop.permute.xlu0 %1264
      %1266 = vrot.lane.b32.xlu0 %v1092, 4
      %v1267 = vpop.permute.xlu0 %1266
      %1268 = vrot.lane.b32.xlu0 %v1197, 4
      %v1269 = vpop.permute.xlu0 %1268
      %1270 = vrot.lane.b32.xlu0 %v1181, 4
      %v1271 = vpop.permute.xlu0 %1270
      %1272 = vrot.lane.b32.xlu0 %v1095, 4
      %v1273 = vpop.permute.xlu0 %1272
      %1274 = vrot.lane.b32.xlu0 %v1198, 4
      %v1275 = vpop.permute.xlu0 %1274
      %1276 = vrot.lane.b32.xlu0 %v1182, 4
      %v1277 = vpop.permute.xlu0 %1276
      %1278 = vrot.lane.b32.xlu0 %v1098, 4
      %v1279 = vpop.permute.xlu0 %1278
      %1280 = vrot.lane.b32.xlu0 %v1199, 4
      %v1281 = vpop.permute.xlu0 %1280
      %1282 = vrot.lane.b32.xlu0 %v1183, 4
      %v1283 = vpop.permute.xlu0 %1282
      %1284 = vrot.lane.b32.xlu0 %v1101, 4
      %v1285 = vpop.permute.xlu0 %1284
      %1286 = vrot.lane.b32.xlu0 %v1200, 4
      %v1287 = vpop.permute.xlu0 %1286
      %1288 = vrot.lane.b32.xlu0 %v1184, 4
      %v1289 = vpop.permute.xlu0 %1288
      %1290 = vrot.lane.b32.xlu0 %v1104, 4
      %v1291 = vpop.permute.xlu0 %1290
      %1292 = vrot.lane.b32.xlu0 %v1201, 4
      %v1293 = vpop.permute.xlu0 %1292
      %1294 = vrot.lane.b32.xlu0 %v1185, 4
      %v1295 = vpop.permute.xlu0 %1294
      %1296 = vrot.lane.b32.xlu0 %v1107, 4
      %v1297 = vpop.permute.xlu0 %1296
      %1298 = vrot.lane.b32.xlu0 %v1202, 4
      %v1299 = vpop.permute.xlu0 %1298
      %1300 = vrot.lane.b32.xlu0 %v1186, 4
      %v1301 = vpop.permute.xlu0 %1300
      %1302 = vrot.lane.b32.xlu0 %v1110, 4
      %v1303 = vpop.permute.xlu0 %1302
      %1304 = vrot.lane.b32.xlu0 %v1203, 4
      %v1305 = vpop.permute.xlu0 %1304
      %1306 = vrot.lane.b32.xlu0 %v1187, 4
      %v1307 = vpop.permute.xlu0 %1306
      %1308 = vrot.lane.b32.xlu0 %v1113, 4
      %v1309 = vpop.permute.xlu0 %1308
      %1310 = vrot.lane.b32.xlu0 %v1204, 4
      %v1311 = vpop.permute.xlu0 %1310
      %1312 = vrot.lane.b32.xlu0 %v1188, 4
      %v1313 = vpop.permute.xlu0 %1312
      %1314 = vrot.lane.b32.xlu0 %v1116, 4
      %v1315 = vpop.permute.xlu0 %1314
      %1316 = vrot.lane.b32.xlu0 %v1205, 4
      %v1317 = vpop.permute.xlu0 %1316
      %1318 = vrot.lane.b32.xlu0 %v1189, 4
      %v1319 = vpop.permute.xlu0 %1318
      %1320 = vrot.lane.b32.xlu0 %v1119, 4
      %v1321 = vpop.permute.xlu0 %1320
      %1322 = vrot.lane.b32.xlu0 %v1206, 4
      %v1323 = vpop.permute.xlu0 %1322
      %1324 = vrot.lane.b32.xlu0 %v1190, 4
      %v1325 = vpop.permute.xlu0 %1324
      %1326 = vrot.lane.b32.xlu0 %v1122, 4
      %v1327 = vpop.permute.xlu0 %1326
      %1328 = vrot.lane.b32.xlu0 %v1207, 4
      %v1329 = vpop.permute.xlu0 %1328
      %1377 = vrot.lane.b32.xlu0 %v1176, 8
      %v1378 = vpop.permute.xlu0 %1377
      %1379 = vrot.lane.b32.xlu0 %v1080, 8
      %v1380 = vpop.permute.xlu0 %1379
      %1381 = vrot.lane.b32.xlu0 %v1193, 8
      %v1382 = vpop.permute.xlu0 %1381
      %1383 = vrot.lane.b32.xlu0 %v1177, 8
      %v1384 = vpop.permute.xlu0 %1383
      %1385 = vrot.lane.b32.xlu0 %v1083, 8
      %v1386 = vpop.permute.xlu0 %1385
      %1387 = vrot.lane.b32.xlu0 %v1194, 8
      %v1388 = vpop.permute.xlu0 %1387
      %1389 = vrot.lane.b32.xlu0 %v1178, 8
      %v1390 = vpop.permute.xlu0 %1389
      %1391 = vrot.lane.b32.xlu0 %v1086, 8
      %v1392 = vpop.permute.xlu0 %1391
      %1393 = vrot.lane.b32.xlu0 %v1195, 8
      %v1394 = vpop.permute.xlu0 %1393
      %1395 = vrot.lane.b32.xlu0 %v1179, 8
      %v1396 = vpop.permute.xlu0 %1395
      %1397 = vrot.lane.b32.xlu0 %v1089, 8
      %v1398 = vpop.permute.xlu0 %1397
      %1399 = vrot.lane.b32.xlu0 %v1196, 8
      %v1400 = vpop.permute.xlu0 %1399
      %1401 = vrot.lane.b32.xlu0 %v1180, 8
      %v1402 = vpop.permute.xlu0 %1401
      %1403 = vrot.lane.b32.xlu0 %v1092, 8
      %v1404 = vpop.permute.xlu0 %1403
      %1405 = vrot.lane.b32.xlu0 %v1197, 8
      %v1406 = vpop.permute.xlu0 %1405
      %1407 = vrot.lane.b32.xlu0 %v1181, 8
      %v1408 = vpop.permute.xlu0 %1407
      %1409 = vrot.lane.b32.xlu0 %v1095, 8
      %v1410 = vpop.permute.xlu0 %1409
      %1411 = vrot.lane.b32.xlu0 %v1198, 8
      %v1412 = vpop.permute.xlu0 %1411
      %1413 = vrot.lane.b32.xlu0 %v1182, 8
      %v1414 = vpop.permute.xlu0 %1413
      %1415 = vrot.lane.b32.xlu0 %v1098, 8
      %v1416 = vpop.permute.xlu0 %1415
      %1417 = vrot.lane.b32.xlu0 %v1199, 8
      %v1418 = vpop.permute.xlu0 %1417
      %1419 = vrot.lane.b32.xlu0 %v1183, 8
      %v1420 = vpop.permute.xlu0 %1419
      %1421 = vrot.lane.b32.xlu0 %v1101, 8
      %v1422 = vpop.permute.xlu0 %1421
      %1423 = vrot.lane.b32.xlu0 %v1200, 8
      %v1424 = vpop.permute.xlu0 %1423
      %1425 = vrot.lane.b32.xlu0 %v1184, 8
      %v1426 = vpop.permute.xlu0 %1425
      %1427 = vrot.lane.b32.xlu0 %v1104, 8
      %v1428 = vpop.permute.xlu0 %1427
      %1429 = vrot.lane.b32.xlu0 %v1201, 8
      %v1430 = vpop.permute.xlu0 %1429
      %1431 = vrot.lane.b32.xlu0 %v1185, 8
      %v1432 = vpop.permute.xlu0 %1431
      %1433 = vrot.lane.b32.xlu0 %v1107, 8
      %v1434 = vpop.permute.xlu0 %1433
      %1435 = vrot.lane.b32.xlu0 %v1202, 8
      %v1436 = vpop.permute.xlu0 %1435
      %1437 = vrot.lane.b32.xlu0 %v1186, 8
      %v1438 = vpop.permute.xlu0 %1437
      %1439 = vrot.lane.b32.xlu0 %v1110, 8
      %v1440 = vpop.permute.xlu0 %1439
      %1441 = vrot.lane.b32.xlu0 %v1203, 8
      %v1442 = vpop.permute.xlu0 %1441
      %1443 = vrot.lane.b32.xlu0 %v1187, 8
      %v1444 = vpop.permute.xlu0 %1443
      %1445 = vrot.lane.b32.xlu0 %v1113, 8
      %v1446 = vpop.permute.xlu0 %1445
      %1447 = vrot.lane.b32.xlu0 %v1204, 8
      %v1448 = vpop.permute.xlu0 %1447
      %1449 = vrot.lane.b32.xlu0 %v1188, 8
      %v1450 = vpop.permute.xlu0 %1449
      %1451 = vrot.lane.b32.xlu0 %v1116, 8
      %v1452 = vpop.permute.xlu0 %1451
      %1453 = vrot.lane.b32.xlu0 %v1205, 8
      %v1454 = vpop.permute.xlu0 %1453
      %1455 = vrot.lane.b32.xlu0 %v1189, 8
      %v1456 = vpop.permute.xlu0 %1455
      %1457 = vrot.lane.b32.xlu0 %v1119, 8
      %v1458 = vpop.permute.xlu0 %1457
      %1459 = vrot.lane.b32.xlu0 %v1206, 8
      %v1460 = vpop.permute.xlu0 %1459
      %1461 = vrot.lane.b32.xlu0 %v1190, 8
      %v1462 = vpop.permute.xlu0 %1461
      %1463 = vrot.lane.b32.xlu0 %v1122, 8
      %v1464 = vpop.permute.xlu0 %1463
      %1465 = vrot.lane.b32.xlu0 %v1207, 8
      %v1466 = vpop.permute.xlu0 %1465
      %1467 = vrot.lane.b32.xlu0 %v1191, 8
      %v1468 = vpop.permute.xlu0 %1467
      %1469 = vrot.lane.b32.xlu0 %v1125, 8
      %v1470 = vpop.permute.xlu0 %1469
      %1471 = vrot.lane.b32.xlu0 %v1208, 8
      %v1472 = vpop.permute.xlu0 %1471
      %1523 = vrot.lane.b32.xlu0 %v1177, 12
      %v1524 = vpop.permute.xlu0 %1523
      %1525 = vrot.lane.b32.xlu0 %v1083, 12
      %v1526 = vpop.permute.xlu0 %1525
      %1527 = vrot.lane.b32.xlu0 %v1194, 12
      %v1528 = vpop.permute.xlu0 %1527
      %1529 = vrot.lane.b32.xlu0 %v1178, 12
      %v1530 = vpop.permute.xlu0 %1529
      %1531 = vrot.lane.b32.xlu0 %v1086, 12
      %v1532 = vpop.permute.xlu0 %1531
      %1533 = vrot.lane.b32.xlu0 %v1195, 12
      %v1534 = vpop.permute.xlu0 %1533
      %1535 = vrot.lane.b32.xlu0 %v1179, 12
      %v1536 = vpop.permute.xlu0 %1535
      %1537 = vrot.lane.b32.xlu0 %v1089, 12
      %v1538 = vpop.permute.xlu0 %1537
      %1539 = vrot.lane.b32.xlu0 %v1196, 12
      %v1540 = vpop.permute.xlu0 %1539
      %1541 = vrot.lane.b32.xlu0 %v1180, 12
      %v1542 = vpop.permute.xlu0 %1541
      %1543 = vrot.lane.b32.xlu0 %v1092, 12
      %v1544 = vpop.permute.xlu0 %1543
      %1545 = vrot.lane.b32.xlu0 %v1197, 12
      %v1546 = vpop.permute.xlu0 %1545
      %1547 = vrot.lane.b32.xlu0 %v1181, 12
      %v1548 = vpop.permute.xlu0 %1547
      %1549 = vrot.lane.b32.xlu0 %v1095, 12
      %v1550 = vpop.permute.xlu0 %1549
      %1551 = vrot.lane.b32.xlu0 %v1198, 12
      %v1552 = vpop.permute.xlu0 %1551
      %1553 = vrot.lane.b32.xlu0 %v1182, 12
      %v1554 = vpop.permute.xlu0 %1553
      %1555 = vrot.lane.b32.xlu0 %v1098, 12
      %v1556 = vpop.permute.xlu0 %1555
      %1557 = vrot.lane.b32.xlu0 %v1199, 12
      %v1558 = vpop.permute.xlu0 %1557
      %1559 = vrot.lane.b32.xlu0 %v1183, 12
      %v1560 = vpop.permute.xlu0 %1559
      %1561 = vrot.lane.b32.xlu0 %v1101, 12
      %v1562 = vpop.permute.xlu0 %1561
      %1563 = vrot.lane.b32.xlu0 %v1200, 12
      %v1564 = vpop.permute.xlu0 %1563
      %1565 = vrot.lane.b32.xlu0 %v1184, 12
      %v1566 = vpop.permute.xlu0 %1565
      %1567 = vrot.lane.b32.xlu0 %v1104, 12
      %v1568 = vpop.permute.xlu0 %1567
      %1569 = vrot.lane.b32.xlu0 %v1201, 12
      %v1570 = vpop.permute.xlu0 %1569
      %1571 = vrot.lane.b32.xlu0 %v1185, 12
      %v1572 = vpop.permute.xlu0 %1571
      %1573 = vrot.lane.b32.xlu0 %v1107, 12
      %v1574 = vpop.permute.xlu0 %1573
      %1575 = vrot.lane.b32.xlu0 %v1202, 12
      %v1576 = vpop.permute.xlu0 %1575
      %1577 = vrot.lane.b32.xlu0 %v1186, 12
      %v1578 = vpop.permute.xlu0 %1577
      %1579 = vrot.lane.b32.xlu0 %v1110, 12
      %v1580 = vpop.permute.xlu0 %1579
      %1581 = vrot.lane.b32.xlu0 %v1203, 12
      %v1582 = vpop.permute.xlu0 %1581
      %1583 = vrot.lane.b32.xlu0 %v1187, 12
      %v1584 = vpop.permute.xlu0 %1583
      %1585 = vrot.lane.b32.xlu0 %v1113, 12
      %v1586 = vpop.permute.xlu0 %1585
      %1587 = vrot.lane.b32.xlu0 %v1204, 12
      %v1588 = vpop.permute.xlu0 %1587
      %1589 = vrot.lane.b32.xlu0 %v1188, 12
      %v1590 = vpop.permute.xlu0 %1589
      %1591 = vrot.lane.b32.xlu0 %v1116, 12
      %v1592 = vpop.permute.xlu0 %1591
      %1593 = vrot.lane.b32.xlu0 %v1205, 12
      %v1594 = vpop.permute.xlu0 %1593
      %1595 = vrot.lane.b32.xlu0 %v1189, 12
      %v1596 = vpop.permute.xlu0 %1595
      %1597 = vrot.lane.b32.xlu0 %v1119, 12
      %v1598 = vpop.permute.xlu0 %1597
      %1599 = vrot.lane.b32.xlu0 %v1206, 12
      %v1600 = vpop.permute.xlu0 %1599
      %1601 = vrot.lane.b32.xlu0 %v1190, 12
      %v1602 = vpop.permute.xlu0 %1601
      %1603 = vrot.lane.b32.xlu0 %v1122, 12
      %v1604 = vpop.permute.xlu0 %1603
      %1605 = vrot.lane.b32.xlu0 %v1207, 12
      %v1606 = vpop.permute.xlu0 %1605
      %1607 = vrot.lane.b32.xlu0 %v1191, 12
      %v1608 = vpop.permute.xlu0 %1607
      %1609 = vrot.lane.b32.xlu0 %v1125, 12
      %v1610 = vpop.permute.xlu0 %1609
      %1611 = vrot.lane.b32.xlu0 %v1208, 12
      %v1612 = vpop.permute.xlu0 %1611
      %1613 = vrot.lane.b32.xlu0 %v1192, 12
      %v1614 = vpop.permute.xlu0 %1613
      %1615 = vrot.lane.b32.xlu0 %v1128, 12
      %v1616 = vpop.permute.xlu0 %1615
      %1617 = vrot.lane.b32.xlu0 %v1209, 12
      %v1618 = vpop.permute.xlu0 %1617
      %1667 = vrot.lane.b32.xlu0 %v1178, 16
      %v1668 = vpop.permute.xlu0 %1667
      %1669 = vrot.lane.b32.xlu0 %v1086, 16
      %v1670 = vpop.permute.xlu0 %1669
      %1671 = vrot.lane.b32.xlu0 %v1195, 16
      %v1672 = vpop.permute.xlu0 %1671
      %1673 = vrot.lane.b32.xlu0 %v1179, 16
      %v1674 = vpop.permute.xlu0 %1673
      %1675 = vrot.lane.b32.xlu0 %v1089, 16
      %v1676 = vpop.permute.xlu0 %1675
      %1677 = vrot.lane.b32.xlu0 %v1196, 16
      %v1678 = vpop.permute.xlu0 %1677
      %1679 = vrot.lane.b32.xlu0 %v1180, 16
      %v1680 = vpop.permute.xlu0 %1679
      %1681 = vrot.lane.b32.xlu0 %v1092, 16
      %v1682 = vpop.permute.xlu0 %1681
      %1683 = vrot.lane.b32.xlu0 %v1197, 16
      %v1684 = vpop.permute.xlu0 %1683
      %1685 = vrot.lane.b32.xlu0 %v1181, 16
      %v1686 = vpop.permute.xlu0 %1685
      %1687 = vrot.lane.b32.xlu0 %v1095, 16
      %v1688 = vpop.permute.xlu0 %1687
      %1689 = vrot.lane.b32.xlu0 %v1198, 16
      %v1690 = vpop.permute.xlu0 %1689
      %1691 = vrot.lane.b32.xlu0 %v1182, 16
      %v1692 = vpop.permute.xlu0 %1691
      %1693 = vrot.lane.b32.xlu0 %v1098, 16
      %v1694 = vpop.permute.xlu0 %1693
      %1695 = vrot.lane.b32.xlu0 %v1199, 16
      %v1696 = vpop.permute.xlu0 %1695
      %1697 = vrot.lane.b32.xlu0 %v1183, 16
      %v1698 = vpop.permute.xlu0 %1697
      %1699 = vrot.lane.b32.xlu0 %v1101, 16
      %v1700 = vpop.permute.xlu0 %1699
      %1701 = vrot.lane.b32.xlu0 %v1200, 16
      %v1702 = vpop.permute.xlu0 %1701
      %1703 = vrot.lane.b32.xlu0 %v1184, 16
      %v1704 = vpop.permute.xlu0 %1703
      %1705 = vrot.lane.b32.xlu0 %v1104, 16
      %v1706 = vpop.permute.xlu0 %1705
      %1707 = vrot.lane.b32.xlu0 %v1201, 16
      %v1708 = vpop.permute.xlu0 %1707
      %1709 = vrot.lane.b32.xlu0 %v1185, 16
      %v1710 = vpop.permute.xlu0 %1709
      %1711 = vrot.lane.b32.xlu0 %v1107, 16
      %v1712 = vpop.permute.xlu0 %1711
      %1713 = vrot.lane.b32.xlu0 %v1202, 16
      %v1714 = vpop.permute.xlu0 %1713
      %1715 = vrot.lane.b32.xlu0 %v1186, 16
      %v1716 = vpop.permute.xlu0 %1715
      %1717 = vrot.lane.b32.xlu0 %v1110, 16
      %v1718 = vpop.permute.xlu0 %1717
      %1719 = vrot.lane.b32.xlu0 %v1203, 16
      %v1720 = vpop.permute.xlu0 %1719
      %1721 = vrot.lane.b32.xlu0 %v1187, 16
      %v1722 = vpop.permute.xlu0 %1721
      %1723 = vrot.lane.b32.xlu0 %v1113, 16
      %v1724 = vpop.permute.xlu0 %1723
      %1725 = vrot.lane.b32.xlu0 %v1204, 16
      %v1726 = vpop.permute.xlu0 %1725
      %1727 = vrot.lane.b32.xlu0 %v1188, 16
      %v1728 = vpop.permute.xlu0 %1727
      %1729 = vrot.lane.b32.xlu0 %v1116, 16
      %v1730 = vpop.permute.xlu0 %1729
      %1731 = vrot.lane.b32.xlu0 %v1205, 16
      %v1732 = vpop.permute.xlu0 %1731
      %1733 = vrot.lane.b32.xlu0 %v1189, 16
      %v1734 = vpop.permute.xlu0 %1733
      %1735 = vrot.lane.b32.xlu0 %v1119, 16
      %v1736 = vpop.permute.xlu0 %1735
      %1737 = vrot.lane.b32.xlu0 %v1206, 16
      %v1738 = vpop.permute.xlu0 %1737
      %1739 = vrot.lane.b32.xlu0 %v1190, 16
      %v1740 = vpop.permute.xlu0 %1739
      %1741 = vrot.lane.b32.xlu0 %v1122, 16
      %v1742 = vpop.permute.xlu0 %1741
      %1743 = vrot.lane.b32.xlu0 %v1207, 16
      %v1744 = vpop.permute.xlu0 %1743
      %1745 = vrot.lane.b32.xlu0 %v1191, 16
      %v1746 = vpop.permute.xlu0 %1745
      %1747 = vrot.lane.b32.xlu0 %v1125, 16
      %v1748 = vpop.permute.xlu0 %1747
      %1749 = vrot.lane.b32.xlu0 %v1208, 16
      %v1750 = vpop.permute.xlu0 %1749
      %1751 = vrot.lane.b32.xlu0 %v1192, 16
      %v1752 = vpop.permute.xlu0 %1751
      %1753 = vrot.lane.b32.xlu0 %v1128, 16
      %v1754 = vpop.permute.xlu0 %1753
      %1755 = vrot.lane.b32.xlu0 %v1209, 16
      %v1756 = vpop.permute.xlu0 %1755
      %1757 = vrot.lane.b32.xlu0 %v1176, 16
      %v1758 = vpop.permute.xlu0 %1757
      %1759 = vrot.lane.b32.xlu0 %v1080, 16
      %v1760 = vpop.permute.xlu0 %1759
      %1761 = vrot.lane.b32.xlu0 %v1193, 16
      %v1762 = vpop.permute.xlu0 %1761
      %1811 = vrot.lane.b32.xlu0 %v1179, 20
      %v1812 = vpop.permute.xlu0 %1811
      %1813 = vrot.lane.b32.xlu0 %v1089, 20
      %v1814 = vpop.permute.xlu0 %1813
      %1815 = vrot.lane.b32.xlu0 %v1196, 20
      %v1816 = vpop.permute.xlu0 %1815
      %1817 = vrot.lane.b32.xlu0 %v1180, 20
      %v1818 = vpop.permute.xlu0 %1817
      %1819 = vrot.lane.b32.xlu0 %v1092, 20
      %v1820 = vpop.permute.xlu0 %1819
      %1821 = vrot.lane.b32.xlu0 %v1197, 20
      %v1822 = vpop.permute.xlu0 %1821
      %1823 = vrot.lane.b32.xlu0 %v1181, 20
      %v1824 = vpop.permute.xlu0 %1823
      %1825 = vrot.lane.b32.xlu0 %v1095, 20
      %v1826 = vpop.permute.xlu0 %1825
      %1827 = vrot.lane.b32.xlu0 %v1198, 20
      %v1828 = vpop.permute.xlu0 %1827
      %1829 = vrot.lane.b32.xlu0 %v1182, 20
      %v1830 = vpop.permute.xlu0 %1829
      %1831 = vrot.lane.b32.xlu0 %v1098, 20
      %v1832 = vpop.permute.xlu0 %1831
      %1833 = vrot.lane.b32.xlu0 %v1199, 20
      %v1834 = vpop.permute.xlu0 %1833
      %1835 = vrot.lane.b32.xlu0 %v1183, 20
      %v1836 = vpop.permute.xlu0 %1835
      %1837 = vrot.lane.b32.xlu0 %v1101, 20
      %v1838 = vpop.permute.xlu0 %1837
      %1839 = vrot.lane.b32.xlu0 %v1200, 20
      %v1840 = vpop.permute.xlu0 %1839
      %1841 = vrot.lane.b32.xlu0 %v1184, 20
      %v1842 = vpop.permute.xlu0 %1841
      %1843 = vrot.lane.b32.xlu0 %v1104, 20
      %v1844 = vpop.permute.xlu0 %1843
      %1845 = vrot.lane.b32.xlu0 %v1201, 20
      %v1846 = vpop.permute.xlu0 %1845
      %1847 = vrot.lane.b32.xlu0 %v1185, 20
      %v1848 = vpop.permute.xlu0 %1847
      %1849 = vrot.lane.b32.xlu0 %v1107, 20
      %v1850 = vpop.permute.xlu0 %1849
      %1851 = vrot.lane.b32.xlu0 %v1202, 20
      %v1852 = vpop.permute.xlu0 %1851
      %1853 = vrot.lane.b32.xlu0 %v1186, 20
      %v1854 = vpop.permute.xlu0 %1853
      %1855 = vrot.lane.b32.xlu0 %v1110, 20
      %v1856 = vpop.permute.xlu0 %1855
      %1857 = vrot.lane.b32.xlu0 %v1203, 20
      %v1858 = vpop.permute.xlu0 %1857
      %1859 = vrot.lane.b32.xlu0 %v1187, 20
      %v1860 = vpop.permute.xlu0 %1859
      %1861 = vrot.lane.b32.xlu0 %v1113, 20
      %v1862 = vpop.permute.xlu0 %1861
      %1863 = vrot.lane.b32.xlu0 %v1204, 20
      %v1864 = vpop.permute.xlu0 %1863
      %1865 = vrot.lane.b32.xlu0 %v1188, 20
      %v1866 = vpop.permute.xlu0 %1865
      %1867 = vrot.lane.b32.xlu0 %v1116, 20
      %v1868 = vpop.permute.xlu0 %1867
      %1869 = vrot.lane.b32.xlu0 %v1205, 20
      %v1870 = vpop.permute.xlu0 %1869
      %1871 = vrot.lane.b32.xlu0 %v1189, 20
      %v1872 = vpop.permute.xlu0 %1871
      %1873 = vrot.lane.b32.xlu0 %v1119, 20
      %v1874 = vpop.permute.xlu0 %1873
      %1875 = vrot.lane.b32.xlu0 %v1206, 20
      %v1876 = vpop.permute.xlu0 %1875
      %1877 = vrot.lane.b32.xlu0 %v1190, 20
      %v1878 = vpop.permute.xlu0 %1877
      %1879 = vrot.lane.b32.xlu0 %v1122, 20
      %v1880 = vpop.permute.xlu0 %1879
      %1881 = vrot.lane.b32.xlu0 %v1207, 20
      %v1882 = vpop.permute.xlu0 %1881
      %1883 = vrot.lane.b32.xlu0 %v1191, 20
      %v1884 = vpop.permute.xlu0 %1883
      %1885 = vrot.lane.b32.xlu0 %v1125, 20
      %v1886 = vpop.permute.xlu0 %1885
      %1887 = vrot.lane.b32.xlu0 %v1208, 20
      %v1888 = vpop.permute.xlu0 %1887
      %1889 = vrot.lane.b32.xlu0 %v1192, 20
      %v1890 = vpop.permute.xlu0 %1889
      %1891 = vrot.lane.b32.xlu0 %v1128, 20
      %v1892 = vpop.permute.xlu0 %1891
      %1893 = vrot.lane.b32.xlu0 %v1209, 20
      %v1894 = vpop.permute.xlu0 %1893
      %1895 = vrot.lane.b32.xlu0 %v1176, 20
      %v1896 = vpop.permute.xlu0 %1895
      %1897 = vrot.lane.b32.xlu0 %v1080, 20
      %v1898 = vpop.permute.xlu0 %1897
      %1899 = vrot.lane.b32.xlu0 %v1193, 20
      %v1900 = vpop.permute.xlu0 %1899
      %1946 = vrot.lane.b32.xlu0 %v1180, 24
      %v1947 = vpop.permute.xlu0 %1946
      %1948 = vrot.lane.b32.xlu0 %v1092, 24
      %v1949 = vpop.permute.xlu0 %1948
      %1950 = vrot.lane.b32.xlu0 %v1197, 24
      %v1951 = vpop.permute.xlu0 %1950
      %1952 = vrot.lane.b32.xlu0 %v1181, 24
      %v1953 = vpop.permute.xlu0 %1952
      %1954 = vrot.lane.b32.xlu0 %v1095, 24
      %v1955 = vpop.permute.xlu0 %1954
      %1956 = vrot.lane.b32.xlu0 %v1198, 24
      %v1957 = vpop.permute.xlu0 %1956
      %1958 = vrot.lane.b32.xlu0 %v1182, 24
      %v1959 = vpop.permute.xlu0 %1958
      %1960 = vrot.lane.b32.xlu0 %v1098, 24
      %v1961 = vpop.permute.xlu0 %1960
      %1962 = vrot.lane.b32.xlu0 %v1199, 24
      %v1963 = vpop.permute.xlu0 %1962
      %1964 = vrot.lane.b32.xlu0 %v1183, 24
      %v1965 = vpop.permute.xlu0 %1964
      %1966 = vrot.lane.b32.xlu0 %v1101, 24
      %v1967 = vpop.permute.xlu0 %1966
      %1968 = vrot.lane.b32.xlu0 %v1200, 24
      %v1969 = vpop.permute.xlu0 %1968
      %1970 = vrot.lane.b32.xlu0 %v1184, 24
      %v1971 = vpop.permute.xlu0 %1970
      %1972 = vrot.lane.b32.xlu0 %v1104, 24
      %v1973 = vpop.permute.xlu0 %1972
      %1974 = vrot.lane.b32.xlu0 %v1201, 24
      %v1975 = vpop.permute.xlu0 %1974
      %1976 = vrot.lane.b32.xlu0 %v1185, 24
      %v1977 = vpop.permute.xlu0 %1976
      %1978 = vrot.lane.b32.xlu0 %v1107, 24
      %v1979 = vpop.permute.xlu0 %1978
      %1980 = vrot.lane.b32.xlu0 %v1202, 24
      %v1981 = vpop.permute.xlu0 %1980
      %1982 = vrot.lane.b32.xlu0 %v1186, 24
      %v1983 = vpop.permute.xlu0 %1982
      %1984 = vrot.lane.b32.xlu0 %v1110, 24
      %v1985 = vpop.permute.xlu0 %1984
      %1986 = vrot.lane.b32.xlu0 %v1203, 24
      %v1987 = vpop.permute.xlu0 %1986
      %1988 = vrot.lane.b32.xlu0 %v1187, 24
      %v1989 = vpop.permute.xlu0 %1988
      %1990 = vrot.lane.b32.xlu0 %v1113, 24
      %v1991 = vpop.permute.xlu0 %1990
      %1992 = vrot.lane.b32.xlu0 %v1204, 24
      %v1993 = vpop.permute.xlu0 %1992
      %1994 = vrot.lane.b32.xlu0 %v1188, 24
      %v1995 = vpop.permute.xlu0 %1994
      %1996 = vrot.lane.b32.xlu0 %v1116, 24
      %v1997 = vpop.permute.xlu0 %1996
      %1998 = vrot.lane.b32.xlu0 %v1205, 24
      %v1999 = vpop.permute.xlu0 %1998
      %2000 = vrot.lane.b32.xlu0 %v1189, 24
      %v2001 = vpop.permute.xlu0 %2000
      %2002 = vrot.lane.b32.xlu0 %v1119, 24
      %v2003 = vpop.permute.xlu0 %2002
      %2004 = vrot.lane.b32.xlu0 %v1206, 24
      %v2005 = vpop.permute.xlu0 %2004
      %2006 = vrot.lane.b32.xlu0 %v1190, 24
      %v2007 = vpop.permute.xlu0 %2006
      %2008 = vrot.lane.b32.xlu0 %v1122, 24
      %v2009 = vpop.permute.xlu0 %2008
      %2010 = vrot.lane.b32.xlu0 %v1207, 24
      %v2011 = vpop.permute.xlu0 %2010
      %2012 = vrot.lane.b32.xlu0 %v1191, 24
      %v2013 = vpop.permute.xlu0 %2012
      %2014 = vrot.lane.b32.xlu0 %v1125, 24
      %v2015 = vpop.permute.xlu0 %2014
      %2016 = vrot.lane.b32.xlu0 %v1208, 24
      %v2017 = vpop.permute.xlu0 %2016
      %2018 = vrot.lane.b32.xlu0 %v1192, 24
      %v2019 = vpop.permute.xlu0 %2018
      %2020 = vrot.lane.b32.xlu0 %v1128, 24
      %v2021 = vpop.permute.xlu0 %2020
      %2022 = vrot.lane.b32.xlu0 %v1209, 24
      %v2023 = vpop.permute.xlu0 %2022
      %2024 = vrot.lane.b32.xlu0 %v1176, 24
      %v2025 = vpop.permute.xlu0 %2024
      %2026 = vrot.lane.b32.xlu0 %v1080, 24
      %v2027 = vpop.permute.xlu0 %2026
      %2028 = vrot.lane.b32.xlu0 %v1193, 24
      %v2029 = vpop.permute.xlu0 %2028
      %vm2072 = vcmask 31744
      %v2073 = vsel %vm2072, %v1176, %v1241
      %v2074 = vsel %vm2072, %v1080, %v1243
      %v2075 = vsel %vm2072, %v1193, %v1245
      %v2076 = vsel %vm2072, %v1176, %v1247
      %v2077 = vsel %vm2072, %v1080, %v1249
      %v2078 = vsel %vm2072, %v1193, %v1251
      %v2079 = vsel %vm2072, %v1177, %v1253
      %v2080 = vsel %vm2072, %v1083, %v1255
      %v2081 = vsel %vm2072, %v1194, %v1257
      %v2082 = vsel %vm2072, %v1178, %v1259
      %v2083 = vsel %vm2072, %v1086, %v1261
      %v2084 = vsel %vm2072, %v1195, %v1263
      %v2085 = vsel %vm2072, %v1179, %v1265
      %v2086 = vsel %vm2072, %v1089, %v1267
      %v2087 = vsel %vm2072, %v1196, %v1269
      %v2088 = vsel %vm2072, %v1180, %v1271
      %v2089 = vsel %vm2072, %v1092, %v1273
      %v2090 = vsel %vm2072, %v1197, %v1275
      %v2091 = vsel %vm2072, %v1181, %v1277
      %v2092 = vsel %vm2072, %v1095, %v1279
      %v2093 = vsel %vm2072, %v1198, %v1281
      %v2094 = vsel %vm2072, %v1182, %v1283
      %v2095 = vsel %vm2072, %v1098, %v1285
      %v2096 = vsel %vm2072, %v1199, %v1287
      %v2097 = vsel %vm2072, %v1183, %v1289
      %v2098 = vsel %vm2072, %v1101, %v1291
      %v2099 = vsel %vm2072, %v1200, %v1293
      %v2100 = vsel %vm2072, %v1184, %v1295
      %v2101 = vsel %vm2072, %v1104, %v1297
      %v2102 = vsel %vm2072, %v1201, %v1299
      %v2103 = vsel %vm2072, %v1185, %v1301
      %v2104 = vsel %vm2072, %v1107, %v1303
      %v2105 = vsel %vm2072, %v1202, %v1305
      %v2106 = vsel %vm2072, %v1186, %v1307
      %v2107 = vsel %vm2072, %v1110, %v1309
      %v2108 = vsel %vm2072, %v1203, %v1311
      %v2109 = vsel %vm2072, %v1187, %v1313
      %v2110 = vsel %vm2072, %v1113, %v1315
      %v2111 = vsel %vm2072, %v1204, %v1317
      %v2112 = vsel %vm2072, %v1188, %v1319
      %v2113 = vsel %vm2072, %v1116, %v1321
      %v2114 = vsel %vm2072, %v1205, %v1323
      %v2115 = vsel %vm2072, %v1189, %v1325
      %v2116 = vsel %vm2072, %v1119, %v1327
      %v2117 = vsel %vm2072, %v1206, %v1329
      %vm2118 = vcmask 64512
      %v2119 = vsel %vm2118, %v2073, %v1378
      %v2120 = vsel %vm2118, %v2074, %v1380
      %v2121 = vsel %vm2118, %v2075, %v1382
      %v2122 = vsel %vm2118, %v2073, %v1384
      %v2123 = vsel %vm2118, %v2074, %v1386
      %v2124 = vsel %vm2118, %v2075, %v1388
      %v2125 = vsel %vm2118, %v2076, %v1390
      %v2126 = vsel %vm2118, %v2077, %v1392
      %v2127 = vsel %vm2118, %v2078, %v1394
      %v2128 = vsel %vm2118, %v2079, %v1396
      %v2129 = vsel %vm2118, %v2080, %v1398
      %v2130 = vsel %vm2118, %v2081, %v1400
      %v2131 = vsel %vm2118, %v2082, %v1402
      %v2132 = vsel %vm2118, %v2083, %v1404
      %v2133 = vsel %vm2118, %v2084, %v1406
      %v2134 = vsel %vm2118, %v2085, %v1408
      %v2135 = vsel %vm2118, %v2086, %v1410
      %v2136 = vsel %vm2118, %v2087, %v1412
      %v2137 = vsel %vm2118, %v2088, %v1414
      %v2138 = vsel %vm2118, %v2089, %v1416
      %v2139 = vsel %vm2118, %v2090, %v1418
      %v2140 = vsel %vm2118, %v2091, %v1420
      %v2141 = vsel %vm2118, %v2092, %v1422
      %v2142 = vsel %vm2118, %v2093, %v1424
      %v2143 = vsel %vm2118, %v2094, %v1426
      %v2144 = vsel %vm2118, %v2095, %v1428
      %v2145 = vsel %vm2118, %v2096, %v1430
      %v2146 = vsel %vm2118, %v2097, %v1432
      %v2147 = vsel %vm2118, %v2098, %v1434
      %v2148 = vsel %vm2118, %v2099, %v1436
      %v2149 = vsel %vm2118, %v2100, %v1438
      %v2150 = vsel %vm2118, %v2101, %v1440
      %v2151 = vsel %vm2118, %v2102, %v1442
      %v2152 = vsel %vm2118, %v2103, %v1444
      %v2153 = vsel %vm2118, %v2104, %v1446
      %v2154 = vsel %vm2118, %v2105, %v1448
      %v2155 = vsel %vm2118, %v2106, %v1450
      %v2156 = vsel %vm2118, %v2107, %v1452
      %v2157 = vsel %vm2118, %v2108, %v1454
      %v2158 = vsel %vm2118, %v2109, %v1456
      %v2159 = vsel %vm2118, %v2110, %v1458
      %v2160 = vsel %vm2118, %v2111, %v1460
      %v2161 = vsel %vm2118, %v2112, %v1462
      %v2162 = vsel %vm2118, %v2113, %v1464
      %v2163 = vsel %vm2118, %v2114, %v1466
      %v2164 = vsel %vm2118, %v2115, %v1468
      %v2165 = vsel %vm2118, %v2116, %v1470
      %v2166 = vsel %vm2118, %v2117, %v1472
      %vm2167 = vcmask 97280
      %v2168 = vsel %vm2167, %v2119, %v1524
      %v2169 = vsel %vm2167, %v2120, %v1526
      %v2170 = vsel %vm2167, %v2121, %v1528
      %v2171 = vsel %vm2167, %v2122, %v1530
      %v2172 = vsel %vm2167, %v2123, %v1532
      %v2173 = vsel %vm2167, %v2124, %v1534
      %v2174 = vsel %vm2167, %v2125, %v1536
      %v2175 = vsel %vm2167, %v2126, %v1538
      %v2176 = vsel %vm2167, %v2127, %v1540
      %v2177 = vsel %vm2167, %v2128, %v1542
      %v2178 = vsel %vm2167, %v2129, %v1544
      %v2179 = vsel %vm2167, %v2130, %v1546
      %v2180 = vsel %vm2167, %v2131, %v1548
      %v2181 = vsel %vm2167, %v2132, %v1550
      %v2182 = vsel %vm2167, %v2133, %v1552
      %v2183 = vsel %vm2167, %v2134, %v1554
      %v2184 = vsel %vm2167, %v2135, %v1556
      %v2185 = vsel %vm2167, %v2136, %v1558
      %v2186 = vsel %vm2167, %v2137, %v1560
      %v2187 = vsel %vm2167, %v2138, %v1562
      %v2188 = vsel %vm2167, %v2139, %v1564
      %v2189 = vsel %vm2167, %v2140, %v1566
      %v2190 = vsel %vm2167, %v2141, %v1568
      %v2191 = vsel %vm2167, %v2142, %v1570
      %v2192 = vsel %vm2167, %v2143, %v1572
      %v2193 = vsel %vm2167, %v2144, %v1574
      %v2194 = vsel %vm2167, %v2145, %v1576
      %v2195 = vsel %vm2167, %v2146, %v1578
      %v2196 = vsel %vm2167, %v2147, %v1580
      %v2197 = vsel %vm2167, %v2148, %v1582
      %v2198 = vsel %vm2167, %v2149, %v1584
      %v2199 = vsel %vm2167, %v2150, %v1586
      %v2200 = vsel %vm2167, %v2151, %v1588
      %v2201 = vsel %vm2167, %v2152, %v1590
      %v2202 = vsel %vm2167, %v2153, %v1592
      %v2203 = vsel %vm2167, %v2154, %v1594
      %v2204 = vsel %vm2167, %v2155, %v1596
      %v2205 = vsel %vm2167, %v2156, %v1598
      %v2206 = vsel %vm2167, %v2157, %v1600
      %v2207 = vsel %vm2167, %v2158, %v1602
      %v2208 = vsel %vm2167, %v2159, %v1604
      %v2209 = vsel %vm2167, %v2160, %v1606
      %v2210 = vsel %vm2167, %v2161, %v1608
      %v2211 = vsel %vm2167, %v2162, %v1610
      %v2212 = vsel %vm2167, %v2163, %v1612
      %v2213 = vsel %vm2167, %v2164, %v1614
      %v2214 = vsel %vm2167, %v2165, %v1616
      %v2215 = vsel %vm2167, %v2166, %v1618
      %vm2216 = vcmask 130048
      %v2217 = vsel %vm2216, %v2168, %v1668
      %v2218 = vsel %vm2216, %v2169, %v1670
      %v2219 = vsel %vm2216, %v2170, %v1672
      %v2220 = vsel %vm2216, %v2171, %v1674
      %v2221 = vsel %vm2216, %v2172, %v1676
      %v2222 = vsel %vm2216, %v2173, %v1678
      %v2223 = vsel %vm2216, %v2174, %v1680
      %v2224 = vsel %vm2216, %v2175, %v1682
      %v2225 = vsel %vm2216, %v2176, %v1684
      %v2226 = vsel %vm2216, %v2177, %v1686
      %v2227 = vsel %vm2216, %v2178, %v1688
      %v2228 = vsel %vm2216, %v2179, %v1690
      %v2229 = vsel %vm2216, %v2180, %v1692
      %v2230 = vsel %vm2216, %v2181, %v1694
      %v2231 = vsel %vm2216, %v2182, %v1696
      %v2232 = vsel %vm2216, %v2183, %v1698
      %v2233 = vsel %vm2216, %v2184, %v1700
      %v2234 = vsel %vm2216, %v2185, %v1702
      %v2235 = vsel %vm2216, %v2186, %v1704
      %v2236 = vsel %vm2216, %v2187, %v1706
      %v2237 = vsel %vm2216, %v2188, %v1708
      %v2238 = vsel %vm2216, %v2189, %v1710
      %v2239 = vsel %vm2216, %v2190, %v1712
      %v2240 = vsel %vm2216, %v2191, %v1714
      %v2241 = vsel %vm2216, %v2192, %v1716
      %v2242 = vsel %vm2216, %v2193, %v1718
      %v2243 = vsel %vm2216, %v2194, %v1720
      %v2244 = vsel %vm2216, %v2195, %v1722
      %v2245 = vsel %vm2216, %v2196, %v1724
      %v2246 = vsel %vm2216, %v2197, %v1726
      %v2247 = vsel %vm2216, %v2198, %v1728
      %v2248 = vsel %vm2216, %v2199, %v1730
      %v2249 = vsel %vm2216, %v2200, %v1732
      %v2250 = vsel %vm2216, %v2201, %v1734
      %v2251 = vsel %vm2216, %v2202, %v1736
      %v2252 = vsel %vm2216, %v2203, %v1738
      %v2253 = vsel %vm2216, %v2204, %v1740
      %v2254 = vsel %vm2216, %v2205, %v1742
      %v2255 = vsel %vm2216, %v2206, %v1744
      %v2256 = vsel %vm2216, %v2207, %v1746
      %v2257 = vsel %vm2216, %v2208, %v1748
      %v2258 = vsel %vm2216, %v2209, %v1750
      %v2259 = vsel %vm2216, %v2210, %v1752
      %v2260 = vsel %vm2216, %v2211, %v1754
      %v2261 = vsel %vm2216, %v2212, %v1756
      %v2262 = vsel %vm2216, %v2213, %v1758
      %v2263 = vsel %vm2216, %v2214, %v1760
      %v2264 = vsel %vm2216, %v2215, %v1762
      %vm2265 = vcmask 162816
      %v2266 = vsel %vm2265, %v2217, %v1812
      %v2267 = vsel %vm2265, %v2218, %v1814
      %v2268 = vsel %vm2265, %v2219, %v1816
      %v2269 = vsel %vm2265, %v2220, %v1818
      %v2270 = vsel %vm2265, %v2221, %v1820
      %v2271 = vsel %vm2265, %v2222, %v1822
      %v2272 = vsel %vm2265, %v2223, %v1824
      %v2273 = vsel %vm2265, %v2224, %v1826
      %v2274 = vsel %vm2265, %v2225, %v1828
      %v2275 = vsel %vm2265, %v2226, %v1830
      %v2276 = vsel %vm2265, %v2227, %v1832
      %v2277 = vsel %vm2265, %v2228, %v1834
      %v2278 = vsel %vm2265, %v2229, %v1836
      %v2279 = vsel %vm2265, %v2230, %v1838
      %v2280 = vsel %vm2265, %v2231, %v1840
      %v2281 = vsel %vm2265, %v2232, %v1842
      %v2282 = vsel %vm2265, %v2233, %v1844
      %v2283 = vsel %vm2265, %v2234, %v1846
      %v2284 = vsel %vm2265, %v2235, %v1848
      %v2285 = vsel %vm2265, %v2236, %v1850
      %v2286 = vsel %vm2265, %v2237, %v1852
      %v2287 = vsel %vm2265, %v2238, %v1854
      %v2288 = vsel %vm2265, %v2239, %v1856
      %v2289 = vsel %vm2265, %v2240, %v1858
      %v2290 = vsel %vm2265, %v2241, %v1860
      %v2291 = vsel %vm2265, %v2242, %v1862
      %v2292 = vsel %vm2265, %v2243, %v1864
      %v2293 = vsel %vm2265, %v2244, %v1866
      %v2294 = vsel %vm2265, %v2245, %v1868
      %v2295 = vsel %vm2265, %v2246, %v1870
      %v2296 = vsel %vm2265, %v2247, %v1872
      %v2297 = vsel %vm2265, %v2248, %v1874
      %v2298 = vsel %vm2265, %v2249, %v1876
      %v2299 = vsel %vm2265, %v2250, %v1878
      %v2300 = vsel %vm2265, %v2251, %v1880
      %v2301 = vsel %vm2265, %v2252, %v1882
      %v2302 = vsel %vm2265, %v2253, %v1884
      %v2303 = vsel %vm2265, %v2254, %v1886
      %v2304 = vsel %vm2265, %v2255, %v1888
      %v2305 = vsel %vm2265, %v2256, %v1890
      %v2306 = vsel %vm2265, %v2257, %v1892
      %v2307 = vsel %vm2265, %v2258, %v1894
      %v2308 = vsel %vm2265, %v2259, %v1896
      %v2309 = vsel %vm2265, %v2260, %v1898
      %v2310 = vsel %vm2265, %v2261, %v1900
      %v2311 = vsel %vm2265, %v2262, %v1896
      %v2312 = vsel %vm2265, %v2263, %v1898
      %v2313 = vsel %vm2265, %v2264, %v1900
      %vm2314 = vcmask 195584
      %v2315 = vsel %vm2314, %v2266, %v1947
      %v2316 = vsel %vm2314, %v2267, %v1949
      %v2317 = vsel %vm2314, %v2268, %v1951
      %v2318 = vsel %vm2314, %v2269, %v1953
      %v2319 = vsel %vm2314, %v2270, %v1955
      %v2320 = vsel %vm2314, %v2271, %v1957
      %v2321 = vsel %vm2314, %v2272, %v1959
      %v2322 = vsel %vm2314, %v2273, %v1961
      %v2323 = vsel %vm2314, %v2274, %v1963
      %v2324 = vsel %vm2314, %v2275, %v1965
      %v2325 = vsel %vm2314, %v2276, %v1967
      %v2326 = vsel %vm2314, %v2277, %v1969
      %v2327 = vsel %vm2314, %v2278, %v1971
      %v2328 = vsel %vm2314, %v2279, %v1973
      %v2329 = vsel %vm2314, %v2280, %v1975
      %v2330 = vsel %vm2314, %v2281, %v1977
      %v2331 = vsel %vm2314, %v2282, %v1979
      %v2332 = vsel %vm2314, %v2283, %v1981
      %v2333 = vsel %vm2314, %v2284, %v1983
      %v2334 = vsel %vm2314, %v2285, %v1985
      %v2335 = vsel %vm2314, %v2286, %v1987
      %v2336 = vsel %vm2314, %v2287, %v1989
      %v2337 = vsel %vm2314, %v2288, %v1991
      %v2338 = vsel %vm2314, %v2289, %v1993
      %v2339 = vsel %vm2314, %v2290, %v1995
      %v2340 = vsel %vm2314, %v2291, %v1997
      %v2341 = vsel %vm2314, %v2292, %v1999
      %v2342 = vsel %vm2314, %v2293, %v2001
      %v2343 = vsel %vm2314, %v2294, %v2003
      %v2344 = vsel %vm2314, %v2295, %v2005
      %v2345 = vsel %vm2314, %v2296, %v2007
      %v2346 = vsel %vm2314, %v2297, %v2009
      %v2347 = vsel %vm2314, %v2298, %v2011
      %v2348 = vsel %vm2314, %v2299, %v2013
      %v2349 = vsel %vm2314, %v2300, %v2015
      %v2350 = vsel %vm2314, %v2301, %v2017
      %v2351 = vsel %vm2314, %v2302, %v2019
      %v2352 = vsel %vm2314, %v2303, %v2021
      %v2353 = vsel %vm2314, %v2304, %v2023
      %v2354 = vsel %vm2314, %v2305, %v2025
      %v2355 = vsel %vm2314, %v2306, %v2027
      %v2356 = vsel %vm2314, %v2307, %v2029
      %v2357 = vsel %vm2314, %v2308, %v2025
      %v2358 = vsel %vm2314, %v2309, %v2027
      %v2359 = vsel %vm2314, %v2310, %v2029
      %v2360 = vsel %vm2314, %v2311, %v2025
      %v2361 = vsel %vm2314, %v2312, %v2027
      %v2362 = vsel %vm2314, %v2313, %v2029
      %vm2411 = vcmask 1046528
      %v2412 = vrot.slane %v2315, 1
      %v2413 = vrot.slane %v2316, 1
      %v2414 = vsel %vm2411, %v2412, %v2413
      %v2415 = vrot.slane %v2317, 1
      %v2416 = vsel %vm2411, %v2413, %v2415
      %v2417 = vrot.slane %v2318, 1
      %v2418 = vrot.slane %v2319, 1
      %v2419 = vsel %vm2411, %v2417, %v2418
      %v2420 = vrot.slane %v2320, 1
      %v2421 = vsel %vm2411, %v2418, %v2420
      %v2422 = vrot.slane %v2321, 1
      %v2423 = vrot.slane %v2322, 1
      %v2424 = vsel %vm2411, %v2422, %v2423
      %v2425 = vrot.slane %v2323, 1
      %v2426 = vsel %vm2411, %v2423, %v2425
      %v2427 = vrot.slane %v2324, 1
      %v2428 = vrot.slane %v2325, 1
      %v2429 = vsel %vm2411, %v2427, %v2428
      %v2430 = vrot.slane %v2326, 1
      %v2431 = vsel %vm2411, %v2428, %v2430
      %v2432 = vrot.slane %v2327, 1
      %v2433 = vrot.slane %v2328, 1
      %v2434 = vsel %vm2411, %v2432, %v2433
      %v2435 = vrot.slane %v2329, 1
      %v2436 = vsel %vm2411, %v2433, %v2435
      %v2437 = vrot.slane %v2330, 1
      %v2438 = vrot.slane %v2331, 1
      %v2439 = vsel %vm2411, %v2437, %v2438
      %v2440 = vrot.slane %v2332, 1
      %v2441 = vsel %vm2411, %v2438, %v2440
      %v2442 = vrot.slane %v2333, 1
      %v2443 = vrot.slane %v2334, 1
      %v2444 = vsel %vm2411, %v2442, %v2443
      %v2445 = vrot.slane %v2335, 1
      %v2446 = vsel %vm2411, %v2443, %v2445
      %v2447 = vrot.slane %v2336, 1
      %v2448 = vrot.slane %v2337, 1
      %v2449 = vsel %vm2411, %v2447, %v2448
      %v2450 = vrot.slane %v2338, 1
      %v2451 = vsel %vm2411, %v2448, %v2450
      %v2452 = vrot.slane %v2339, 1
      %v2453 = vrot.slane %v2340, 1
      %v2454 = vsel %vm2411, %v2452, %v2453
      %v2455 = vrot.slane %v2341, 1
      %v2456 = vsel %vm2411, %v2453, %v2455
      %v2457 = vrot.slane %v2342, 1
      %v2458 = vrot.slane %v2343, 1
      %v2459 = vsel %vm2411, %v2457, %v2458
      %v2460 = vrot.slane %v2344, 1
      %v2461 = vsel %vm2411, %v2458, %v2460
      %v2462 = vrot.slane %v2345, 1
      %v2463 = vrot.slane %v2346, 1
      %v2464 = vsel %vm2411, %v2462, %v2463
      %v2465 = vrot.slane %v2347, 1
      %v2466 = vsel %vm2411, %v2463, %v2465
      %v2467 = vrot.slane %v2348, 1
      %v2468 = vrot.slane %v2349, 1
      %v2469 = vsel %vm2411, %v2467, %v2468
      %v2470 = vrot.slane %v2350, 1
      %v2471 = vsel %vm2411, %v2468, %v2470
      %v2472 = vrot.slane %v2351, 1
      %v2473 = vrot.slane %v2352, 1
      %v2474 = vsel %vm2411, %v2472, %v2473
      %v2475 = vrot.slane %v2353, 1
      %v2476 = vsel %vm2411, %v2473, %v2475
      %v2477 = vrot.slane %v2354, 1
      %v2478 = vrot.slane %v2355, 1
      %v2479 = vsel %vm2411, %v2477, %v2478
      %v2480 = vrot.slane %v2356, 1
      %v2481 = vsel %vm2411, %v2478, %v2480
      %v2482 = vrot.slane %v2357, 1
      %v2483 = vrot.slane %v2358, 1
      %v2484 = vsel %vm2411, %v2482, %v2483
      %v2485 = vrot.slane %v2359, 1
      %v2486 = vsel %vm2411, %v2483, %v2485
      %v2487 = vrot.slane %v2360, 1
      %v2488 = vrot.slane %v2361, 1
      %v2489 = vsel %vm2411, %v2487, %v2488
      %v2490 = vrot.slane %v2362, 1
      %v2491 = vsel %vm2411, %v2488, %v2490
      %2492 = vrot.lane.b32.xlu0 %v2414, 28
      %v2493 = vpop.permute.xlu0 %2492
      %2494 = vrot.lane.b32.xlu0 %v2416, 28
      %v2495 = vpop.permute.xlu0 %2494
      %2496 = vrot.lane.b32.xlu0 %v2419, 28
      %v2497 = vpop.permute.xlu0 %2496
      %2498 = vrot.lane.b32.xlu0 %v2421, 28
      %v2499 = vpop.permute.xlu0 %2498
      %2500 = vrot.lane.b32.xlu0 %v2424, 28
      %v2501 = vpop.permute.xlu0 %2500
      %2502 = vrot.lane.b32.xlu0 %v2426, 28
      %v2503 = vpop.permute.xlu0 %2502
      %2504 = vrot.lane.b32.xlu0 %v2429, 28
      %v2505 = vpop.permute.xlu0 %2504
      %2506 = vrot.lane.b32.xlu0 %v2431, 28
      %v2507 = vpop.permute.xlu0 %2506
      %2508 = vrot.lane.b32.xlu0 %v2434, 28
      %v2509 = vpop.permute.xlu0 %2508
      %2510 = vrot.lane.b32.xlu0 %v2436, 28
      %v2511 = vpop.permute.xlu0 %2510
      %2512 = vrot.lane.b32.xlu0 %v2439, 28
      %v2513 = vpop.permute.xlu0 %2512
      %2514 = vrot.lane.b32.xlu0 %v2441, 28
      %v2515 = vpop.permute.xlu0 %2514
      %2516 = vrot.lane.b32.xlu0 %v2444, 28
      %v2517 = vpop.permute.xlu0 %2516
      %2518 = vrot.lane.b32.xlu0 %v2446, 28
      %v2519 = vpop.permute.xlu0 %2518
      %2520 = vrot.lane.b32.xlu0 %v2449, 28
      %v2521 = vpop.permute.xlu0 %2520
      %2522 = vrot.lane.b32.xlu0 %v2451, 28
      %v2523 = vpop.permute.xlu0 %2522
      %2524 = vrot.lane.b32.xlu0 %v2454, 28
      %v2525 = vpop.permute.xlu0 %2524
      %2526 = vrot.lane.b32.xlu0 %v2456, 28
      %v2527 = vpop.permute.xlu0 %2526
      %2528 = vrot.lane.b32.xlu0 %v2459, 28
      %v2529 = vpop.permute.xlu0 %2528
      %2530 = vrot.lane.b32.xlu0 %v2461, 28
      %v2531 = vpop.permute.xlu0 %2530
      %2532 = vrot.lane.b32.xlu0 %v2464, 28
      %v2533 = vpop.permute.xlu0 %2532
      %2534 = vrot.lane.b32.xlu0 %v2466, 28
      %v2535 = vpop.permute.xlu0 %2534
      %2536 = vrot.lane.b32.xlu0 %v2469, 28
      %v2537 = vpop.permute.xlu0 %2536
      %2538 = vrot.lane.b32.xlu0 %v2471, 28
      %v2539 = vpop.permute.xlu0 %2538
      %2540 = vrot.lane.b32.xlu0 %v2474, 28
      %v2541 = vpop.permute.xlu0 %2540
      %2542 = vrot.lane.b32.xlu0 %v2476, 28
      %v2543 = vpop.permute.xlu0 %2542
      %2544 = vrot.lane.b32.xlu0 %v2479, 28
      %v2545 = vpop.permute.xlu0 %2544
      %2546 = vrot.lane.b32.xlu0 %v2481, 28
      %v2547 = vpop.permute.xlu0 %2546
      %2548 = vrot.lane.b32.xlu0 %v2484, 28
      %v2549 = vpop.permute.xlu0 %2548
      %2550 = vrot.lane.b32.xlu0 %v2486, 28
      %v2551 = vpop.permute.xlu0 %2550
      %2552 = vrot.lane.b32.xlu0 %v2489, 28
      %v2553 = vpop.permute.xlu0 %2552
      %2554 = vrot.lane.b32.xlu0 %v2491, 28
      %v2555 = vpop.permute.xlu0 %2554
      %vm2588 = vcmask 1045504
      %v2589 = vrot.slane %v2315, 2
      %v2590 = vrot.slane %v2316, 2
      %v2591 = vsel %vm2588, %v2589, %v2590
      %v2592 = vrot.slane %v2317, 2
      %v2593 = vsel %vm2588, %v2590, %v2592
      %v2594 = vrot.slane %v2318, 2
      %v2595 = vrot.slane %v2319, 2
      %v2596 = vsel %vm2588, %v2594, %v2595
      %v2597 = vrot.slane %v2320, 2
      %v2598 = vsel %vm2588, %v2595, %v2597
      %v2599 = vrot.slane %v2321, 2
      %v2600 = vrot.slane %v2322, 2
      %v2601 = vsel %vm2588, %v2599, %v2600
      %v2602 = vrot.slane %v2323, 2
      %v2603 = vsel %vm2588, %v2600, %v2602
      %v2604 = vrot.slane %v2324, 2
      %v2605 = vrot.slane %v2325, 2
      %v2606 = vsel %vm2588, %v2604, %v2605
      %v2607 = vrot.slane %v2326, 2
      %v2608 = vsel %vm2588, %v2605, %v2607
      %v2609 = vrot.slane %v2327, 2
      %v2610 = vrot.slane %v2328, 2
      %v2611 = vsel %vm2588, %v2609, %v2610
      %v2612 = vrot.slane %v2329, 2
      %v2613 = vsel %vm2588, %v2610, %v2612
      %v2614 = vrot.slane %v2330, 2
      %v2615 = vrot.slane %v2331, 2
      %v2616 = vsel %vm2588, %v2614, %v2615
      %v2617 = vrot.slane %v2332, 2
      %v2618 = vsel %vm2588, %v2615, %v2617
      %v2619 = vrot.slane %v2333, 2
      %v2620 = vrot.slane %v2334, 2
      %v2621 = vsel %vm2588, %v2619, %v2620
      %v2622 = vrot.slane %v2335, 2
      %v2623 = vsel %vm2588, %v2620, %v2622
      %v2624 = vrot.slane %v2336, 2
      %v2625 = vrot.slane %v2337, 2
      %v2626 = vsel %vm2588, %v2624, %v2625
      %v2627 = vrot.slane %v2338, 2
      %v2628 = vsel %vm2588, %v2625, %v2627
      %v2629 = vrot.slane %v2339, 2
      %v2630 = vrot.slane %v2340, 2
      %v2631 = vsel %vm2588, %v2629, %v2630
      %v2632 = vrot.slane %v2341, 2
      %v2633 = vsel %vm2588, %v2630, %v2632
      %v2634 = vrot.slane %v2342, 2
      %v2635 = vrot.slane %v2343, 2
      %v2636 = vsel %vm2588, %v2634, %v2635
      %v2637 = vrot.slane %v2344, 2
      %v2638 = vsel %vm2588, %v2635, %v2637
      %v2639 = vrot.slane %v2345, 2
      %v2640 = vrot.slane %v2346, 2
      %v2641 = vsel %vm2588, %v2639, %v2640
      %v2642 = vrot.slane %v2347, 2
      %v2643 = vsel %vm2588, %v2640, %v2642
      %v2644 = vrot.slane %v2348, 2
      %v2645 = vrot.slane %v2349, 2
      %v2646 = vsel %vm2588, %v2644, %v2645
      %v2647 = vrot.slane %v2350, 2
      %v2648 = vsel %vm2588, %v2645, %v2647
      %v2649 = vrot.slane %v2351, 2
      %v2650 = vrot.slane %v2352, 2
      %v2651 = vsel %vm2588, %v2649, %v2650
      %v2652 = vrot.slane %v2353, 2
      %v2653 = vsel %vm2588, %v2650, %v2652
      %v2654 = vrot.slane %v2354, 2
      %v2655 = vrot.slane %v2355, 2
      %v2656 = vsel %vm2588, %v2654, %v2655
      %v2657 = vrot.slane %v2356, 2
      %v2658 = vsel %vm2588, %v2655, %v2657
      %v2659 = vrot.slane %v2357, 2
      %v2660 = vrot.slane %v2358, 2
      %v2661 = vsel %vm2588, %v2659, %v2660
      %v2662 = vrot.slane %v2359, 2
      %v2663 = vsel %vm2588, %v2660, %v2662
      %v2664 = vrot.slane %v2360, 2
      %v2665 = vrot.slane %v2361, 2
      %v2666 = vsel %vm2588, %v2664, %v2665
      %v2667 = vrot.slane %v2362, 2
      %v2668 = vsel %vm2588, %v2665, %v2667
      %2669 = vrot.lane.b32.xlu0 %v2591, 56
      %v2670 = vpop.permute.xlu0 %2669
      %2671 = vrot.lane.b32.xlu0 %v2593, 56
      %v2672 = vpop.permute.xlu0 %2671
      %2673 = vrot.lane.b32.xlu0 %v2596, 56
      %v2674 = vpop.permute.xlu0 %2673
      %2675 = vrot.lane.b32.xlu0 %v2598, 56
      %v2676 = vpop.permute.xlu0 %2675
      %2677 = vrot.lane.b32.xlu0 %v2601, 56
      %v2678 = vpop.permute.xlu0 %2677
      %2679 = vrot.lane.b32.xlu0 %v2603, 56
      %v2680 = vpop.permute.xlu0 %2679
      %2681 = vrot.lane.b32.xlu0 %v2606, 56
      %v2682 = vpop.permute.xlu0 %2681
      %2683 = vrot.lane.b32.xlu0 %v2608, 56
      %v2684 = vpop.permute.xlu0 %2683
      %2685 = vrot.lane.b32.xlu0 %v2611, 56
      %v2686 = vpop.permute.xlu0 %2685
      %2687 = vrot.lane.b32.xlu0 %v2613, 56
      %v2688 = vpop.permute.xlu0 %2687
      %2689 = vrot.lane.b32.xlu0 %v2616, 56
      %v2690 = vpop.permute.xlu0 %2689
      %2691 = vrot.lane.b32.xlu0 %v2618, 56
      %v2692 = vpop.permute.xlu0 %2691
      %2693 = vrot.lane.b32.xlu0 %v2621, 56
      %v2694 = vpop.permute.xlu0 %2693
      %2695 = vrot.lane.b32.xlu0 %v2623, 56
      %v2696 = vpop.permute.xlu0 %2695
      %2697 = vrot.lane.b32.xlu0 %v2626, 56
      %v2698 = vpop.permute.xlu0 %2697
      %2699 = vrot.lane.b32.xlu0 %v2628, 56
      %v2700 = vpop.permute.xlu0 %2699
      %2701 = vrot.lane.b32.xlu0 %v2631, 56
      %v2702 = vpop.permute.xlu0 %2701
      %2703 = vrot.lane.b32.xlu0 %v2633, 56
      %v2704 = vpop.permute.xlu0 %2703
      %2705 = vrot.lane.b32.xlu0 %v2636, 56
      %v2706 = vpop.permute.xlu0 %2705
      %2707 = vrot.lane.b32.xlu0 %v2638, 56
      %v2708 = vpop.permute.xlu0 %2707
      %2709 = vrot.lane.b32.xlu0 %v2641, 56
      %v2710 = vpop.permute.xlu0 %2709
      %2711 = vrot.lane.b32.xlu0 %v2643, 56
      %v2712 = vpop.permute.xlu0 %2711
      %2713 = vrot.lane.b32.xlu0 %v2646, 56
      %v2714 = vpop.permute.xlu0 %2713
      %2715 = vrot.lane.b32.xlu0 %v2648, 56
      %v2716 = vpop.permute.xlu0 %2715
      %2717 = vrot.lane.b32.xlu0 %v2651, 56
      %v2718 = vpop.permute.xlu0 %2717
      %2719 = vrot.lane.b32.xlu0 %v2653, 56
      %v2720 = vpop.permute.xlu0 %2719
      %2721 = vrot.lane.b32.xlu0 %v2656, 56
      %v2722 = vpop.permute.xlu0 %2721
      %2723 = vrot.lane.b32.xlu0 %v2658, 56
      %v2724 = vpop.permute.xlu0 %2723
      %2725 = vrot.lane.b32.xlu0 %v2661, 56
      %v2726 = vpop.permute.xlu0 %2725
      %2727 = vrot.lane.b32.xlu0 %v2663, 56
      %v2728 = vpop.permute.xlu0 %2727
      %2729 = vrot.lane.b32.xlu0 %v2666, 56
      %v2730 = vpop.permute.xlu0 %2729
      %2731 = vrot.lane.b32.xlu0 %v2668, 56
      %v2732 = vpop.permute.xlu0 %2731
      %vm2765 = vcmask 1044480
      %v2766 = vrot.slane %v2315, 3
      %v2767 = vrot.slane %v2316, 3
      %v2768 = vsel %vm2765, %v2766, %v2767
      %v2769 = vrot.slane %v2317, 3
      %v2770 = vsel %vm2765, %v2767, %v2769
      %v2771 = vrot.slane %v2318, 3
      %v2772 = vrot.slane %v2319, 3
      %v2773 = vsel %vm2765, %v2771, %v2772
      %v2774 = vrot.slane %v2320, 3
      %v2775 = vsel %vm2765, %v2772, %v2774
      %v2776 = vrot.slane %v2321, 3
      %v2777 = vrot.slane %v2322, 3
      %v2778 = vsel %vm2765, %v2776, %v2777
      %v2779 = vrot.slane %v2323, 3
      %v2780 = vsel %vm2765, %v2777, %v2779
      %v2781 = vrot.slane %v2324, 3
      %v2782 = vrot.slane %v2325, 3
      %v2783 = vsel %vm2765, %v2781, %v2782
      %v2784 = vrot.slane %v2326, 3
      %v2785 = vsel %vm2765, %v2782, %v2784
      %v2786 = vrot.slane %v2327, 3
      %v2787 = vrot.slane %v2328, 3
      %v2788 = vsel %vm2765, %v2786, %v2787
      %v2789 = vrot.slane %v2329, 3
      %v2790 = vsel %vm2765, %v2787, %v2789
      %v2791 = vrot.slane %v2330, 3
      %v2792 = vrot.slane %v2331, 3
      %v2793 = vsel %vm2765, %v2791, %v2792
      %v2794 = vrot.slane %v2332, 3
      %v2795 = vsel %vm2765, %v2792, %v2794
      %v2796 = vrot.slane %v2333, 3
      %v2797 = vrot.slane %v2334, 3
      %v2798 = vsel %vm2765, %v2796, %v2797
      %v2799 = vrot.slane %v2335, 3
      %v2800 = vsel %vm2765, %v2797, %v2799
      %v2801 = vrot.slane %v2336, 3
      %v2802 = vrot.slane %v2337, 3
      %v2803 = vsel %vm2765, %v2801, %v2802
      %v2804 = vrot.slane %v2338, 3
      %v2805 = vsel %vm2765, %v2802, %v2804
      %v2806 = vrot.slane %v2339, 3
      %v2807 = vrot.slane %v2340, 3
      %v2808 = vsel %vm2765, %v2806, %v2807
      %v2809 = vrot.slane %v2341, 3
      %v2810 = vsel %vm2765, %v2807, %v2809
      %v2811 = vrot.slane %v2342, 3
      %v2812 = vrot.slane %v2343, 3
      %v2813 = vsel %vm2765, %v2811, %v2812
      %v2814 = vrot.slane %v2344, 3
      %v2815 = vsel %vm2765, %v2812, %v2814
      %v2816 = vrot.slane %v2345, 3
      %v2817 = vrot.slane %v2346, 3
      %v2818 = vsel %vm2765, %v2816, %v2817
      %v2819 = vrot.slane %v2347, 3
      %v2820 = vsel %vm2765, %v2817, %v2819
      %v2821 = vrot.slane %v2348, 3
      %v2822 = vrot.slane %v2349, 3
      %v2823 = vsel %vm2765, %v2821, %v2822
      %v2824 = vrot.slane %v2350, 3
      %v2825 = vsel %vm2765, %v2822, %v2824
      %v2826 = vrot.slane %v2351, 3
      %v2827 = vrot.slane %v2352, 3
      %v2828 = vsel %vm2765, %v2826, %v2827
      %v2829 = vrot.slane %v2353, 3
      %v2830 = vsel %vm2765, %v2827, %v2829
      %v2831 = vrot.slane %v2354, 3
      %v2832 = vrot.slane %v2355, 3
      %v2833 = vsel %vm2765, %v2831, %v2832
      %v2834 = vrot.slane %v2356, 3
      %v2835 = vsel %vm2765, %v2832, %v2834
      %v2836 = vrot.slane %v2357, 3
      %v2837 = vrot.slane %v2358, 3
      %v2838 = vsel %vm2765, %v2836, %v2837
      %v2839 = vrot.slane %v2359, 3
      %v2840 = vsel %vm2765, %v2837, %v2839
      %v2841 = vrot.slane %v2360, 3
      %v2842 = vrot.slane %v2361, 3
      %v2843 = vsel %vm2765, %v2841, %v2842
      %v2844 = vrot.slane %v2362, 3
      %v2845 = vsel %vm2765, %v2842, %v2844
      %2846 = vrot.lane.b32.xlu0 %v2768, 84
      %v2847 = vpop.permute.xlu0 %2846
      %2848 = vrot.lane.b32.xlu0 %v2770, 84
      %v2849 = vpop.permute.xlu0 %2848
      %2850 = vrot.lane.b32.xlu0 %v2773, 84
      %v2851 = vpop.permute.xlu0 %2850
      %2852 = vrot.lane.b32.xlu0 %v2775, 84
      %v2853 = vpop.permute.xlu0 %2852
      %2854 = vrot.lane.b32.xlu0 %v2778, 84
      %v2855 = vpop.permute.xlu0 %2854
      %2856 = vrot.lane.b32.xlu0 %v2780, 84
      %v2857 = vpop.permute.xlu0 %2856
      %2858 = vrot.lane.b32.xlu0 %v2783, 84
      %v2859 = vpop.permute.xlu0 %2858
      %2860 = vrot.lane.b32.xlu0 %v2785, 84
      %v2861 = vpop.permute.xlu0 %2860
      %2862 = vrot.lane.b32.xlu0 %v2788, 84
      %v2863 = vpop.permute.xlu0 %2862
      %2864 = vrot.lane.b32.xlu0 %v2790, 84
      %v2865 = vpop.permute.xlu0 %2864
      %2866 = vrot.lane.b32.xlu0 %v2793, 84
      %v2867 = vpop.permute.xlu0 %2866
      %2868 = vrot.lane.b32.xlu0 %v2795, 84
      %v2869 = vpop.permute.xlu0 %2868
      %2870 = vrot.lane.b32.xlu0 %v2798, 84
      %v2871 = vpop.permute.xlu0 %2870
      %2872 = vrot.lane.b32.xlu0 %v2800, 84
      %v2873 = vpop.permute.xlu0 %2872
      %2874 = vrot.lane.b32.xlu0 %v2803, 84
      %v2875 = vpop.permute.xlu0 %2874
      %2876 = vrot.lane.b32.xlu0 %v2805, 84
      %v2877 = vpop.permute.xlu0 %2876
      %2878 = vrot.lane.b32.xlu0 %v2808, 84
      %v2879 = vpop.permute.xlu0 %2878
      %2880 = vrot.lane.b32.xlu0 %v2810, 84
      %v2881 = vpop.permute.xlu0 %2880
      %2882 = vrot.lane.b32.xlu0 %v2813, 84
      %v2883 = vpop.permute.xlu0 %2882
      %2884 = vrot.lane.b32.xlu0 %v2815, 84
      %v2885 = vpop.permute.xlu0 %2884
      %2886 = vrot.lane.b32.xlu0 %v2818, 84
      %v2887 = vpop.permute.xlu0 %2886
      %2888 = vrot.lane.b32.xlu0 %v2820, 84
      %v2889 = vpop.permute.xlu0 %2888
      %2890 = vrot.lane.b32.xlu0 %v2823, 84
      %v2891 = vpop.permute.xlu0 %2890
      %2892 = vrot.lane.b32.xlu0 %v2825, 84
      %v2893 = vpop.permute.xlu0 %2892
      %2894 = vrot.lane.b32.xlu0 %v2828, 84
      %v2895 = vpop.permute.xlu0 %2894
      %2896 = vrot.lane.b32.xlu0 %v2830, 84
      %v2897 = vpop.permute.xlu0 %2896
      %2898 = vrot.lane.b32.xlu0 %v2833, 84
      %v2899 = vpop.permute.xlu0 %2898
      %2900 = vrot.lane.b32.xlu0 %v2835, 84
      %v2901 = vpop.permute.xlu0 %2900
      %2902 = vrot.lane.b32.xlu0 %v2838, 84
      %v2903 = vpop.permute.xlu0 %2902
      %2904 = vrot.lane.b32.xlu0 %v2840, 84
      %v2905 = vpop.permute.xlu0 %2904
      %2906 = vrot.lane.b32.xlu0 %v2843, 84
      %v2907 = vpop.permute.xlu0 %2906
      %2908 = vrot.lane.b32.xlu0 %v2845, 84
      %v2909 = vpop.permute.xlu0 %2908
      %vm2942 = vcmask 1043456
      %v2943 = vrot.slane %v2315, 4
      %v2944 = vrot.slane %v2316, 4
      %v2945 = vsel %vm2942, %v2943, %v2944
      %v2946 = vrot.slane %v2317, 4
      %v2947 = vsel %vm2942, %v2944, %v2946
      %v2948 = vrot.slane %v2318, 4
      %v2949 = vrot.slane %v2319, 4
      %v2950 = vsel %vm2942, %v2948, %v2949
      %v2951 = vrot.slane %v2320, 4
      %v2952 = vsel %vm2942, %v2949, %v2951
      %v2953 = vrot.slane %v2321, 4
      %v2954 = vrot.slane %v2322, 4
      %v2955 = vsel %vm2942, %v2953, %v2954
      %v2956 = vrot.slane %v2323, 4
      %v2957 = vsel %vm2942, %v2954, %v2956
      %v2958 = vrot.slane %v2324, 4
      %v2959 = vrot.slane %v2325, 4
      %v2960 = vsel %vm2942, %v2958, %v2959
      %v2961 = vrot.slane %v2326, 4
      %v2962 = vsel %vm2942, %v2959, %v2961
      %v2963 = vrot.slane %v2327, 4
      %v2964 = vrot.slane %v2328, 4
      %v2965 = vsel %vm2942, %v2963, %v2964
      %v2966 = vrot.slane %v2329, 4
      %v2967 = vsel %vm2942, %v2964, %v2966
      %v2968 = vrot.slane %v2330, 4
      %v2969 = vrot.slane %v2331, 4
      %v2970 = vsel %vm2942, %v2968, %v2969
      %v2971 = vrot.slane %v2332, 4
      %v2972 = vsel %vm2942, %v2969, %v2971
      %v2973 = vrot.slane %v2333, 4
      %v2974 = vrot.slane %v2334, 4
      %v2975 = vsel %vm2942, %v2973, %v2974
      %v2976 = vrot.slane %v2335, 4
      %v2977 = vsel %vm2942, %v2974, %v2976
      %v2978 = vrot.slane %v2336, 4
      %v2979 = vrot.slane %v2337, 4
      %v2980 = vsel %vm2942, %v2978, %v2979
      %v2981 = vrot.slane %v2338, 4
      %v2982 = vsel %vm2942, %v2979, %v2981
      %v2983 = vrot.slane %v2339, 4
      %v2984 = vrot.slane %v2340, 4
      %v2985 = vsel %vm2942, %v2983, %v2984
      %v2986 = vrot.slane %v2341, 4
      %v2987 = vsel %vm2942, %v2984, %v2986
      %v2988 = vrot.slane %v2342, 4
      %v2989 = vrot.slane %v2343, 4
      %v2990 = vsel %vm2942, %v2988, %v2989
      %v2991 = vrot.slane %v2344, 4
      %v2992 = vsel %vm2942, %v2989, %v2991
      %v2993 = vrot.slane %v2345, 4
      %v2994 = vrot.slane %v2346, 4
      %v2995 = vsel %vm2942, %v2993, %v2994
      %v2996 = vrot.slane %v2347, 4
      %v2997 = vsel %vm2942, %v2994, %v2996
      %v2998 = vrot.slane %v2348, 4
      %v2999 = vrot.slane %v2349, 4
      %v3000 = vsel %vm2942, %v2998, %v2999
      %v3001 = vrot.slane %v2350, 4
      %v3002 = vsel %vm2942, %v2999, %v3001
      %v3003 = vrot.slane %v2351, 4
      %v3004 = vrot.slane %v2352, 4
      %v3005 = vsel %vm2942, %v3003, %v3004
      %v3006 = vrot.slane %v2353, 4
      %v3007 = vsel %vm2942, %v3004, %v3006
      %v3008 = vrot.slane %v2354, 4
      %v3009 = vrot.slane %v2355, 4
      %v3010 = vsel %vm2942, %v3008, %v3009
      %v3011 = vrot.slane %v2356, 4
      %v3012 = vsel %vm2942, %v3009, %v3011
      %v3013 = vrot.slane %v2357, 4
      %v3014 = vrot.slane %v2358, 4
      %v3015 = vsel %vm2942, %v3013, %v3014
      %v3016 = vrot.slane %v2359, 4
      %v3017 = vsel %vm2942, %v3014, %v3016
      %v3018 = vrot.slane %v2360, 4
      %v3019 = vrot.slane %v2361, 4
      %v3020 = vsel %vm2942, %v3018, %v3019
      %v3021 = vrot.slane %v2362, 4
      %v3022 = vsel %vm2942, %v3019, %v3021
      %3023 = vrot.lane.b32.xlu0 %v2945, 112
      %v3024 = vpop.permute.xlu0 %3023
      %3025 = vrot.lane.b32.xlu0 %v2947, 112
      %v3026 = vpop.permute.xlu0 %3025
      %3027 = vrot.lane.b32.xlu0 %v2950, 112
      %v3028 = vpop.permute.xlu0 %3027
      %3029 = vrot.lane.b32.xlu0 %v2952, 112
      %v3030 = vpop.permute.xlu0 %3029
      %3031 = vrot.lane.b32.xlu0 %v2955, 112
      %v3032 = vpop.permute.xlu0 %3031
      %3033 = vrot.lane.b32.xlu0 %v2957, 112
      %v3034 = vpop.permute.xlu0 %3033
      %3035 = vrot.lane.b32.xlu0 %v2960, 112
      %v3036 = vpop.permute.xlu0 %3035
      %3037 = vrot.lane.b32.xlu0 %v2962, 112
      %v3038 = vpop.permute.xlu0 %3037
      %3039 = vrot.lane.b32.xlu0 %v2965, 112
      %v3040 = vpop.permute.xlu0 %3039
      %3041 = vrot.lane.b32.xlu0 %v2967, 112
      %v3042 = vpop.permute.xlu0 %3041
      %3043 = vrot.lane.b32.xlu0 %v2970, 112
      %v3044 = vpop.permute.xlu0 %3043
      %3045 = vrot.lane.b32.xlu0 %v2972, 112
      %v3046 = vpop.permute.xlu0 %3045
      %3047 = vrot.lane.b32.xlu0 %v2975, 112
      %v3048 = vpop.permute.xlu0 %3047
      %3049 = vrot.lane.b32.xlu0 %v2977, 112
      %v3050 = vpop.permute.xlu0 %3049
      %3051 = vrot.lane.b32.xlu0 %v2980, 112
      %v3052 = vpop.permute.xlu0 %3051
      %3053 = vrot.lane.b32.xlu0 %v2982, 112
      %v3054 = vpop.permute.xlu0 %3053
      %3055 = vrot.lane.b32.xlu0 %v2985, 112
      %v3056 = vpop.permute.xlu0 %3055
      %3057 = vrot.lane.b32.xlu0 %v2987, 112
      %v3058 = vpop.permute.xlu0 %3057
      %3059 = vrot.lane.b32.xlu0 %v2990, 112
      %v3060 = vpop.permute.xlu0 %3059
      %3061 = vrot.lane.b32.xlu0 %v2992, 112
      %v3062 = vpop.permute.xlu0 %3061
      %3063 = vrot.lane.b32.xlu0 %v2995, 112
      %v3064 = vpop.permute.xlu0 %3063
      %3065 = vrot.lane.b32.xlu0 %v2997, 112
      %v3066 = vpop.permute.xlu0 %3065
      %3067 = vrot.lane.b32.xlu0 %v3000, 112
      %v3068 = vpop.permute.xlu0 %3067
      %3069 = vrot.lane.b32.xlu0 %v3002, 112
      %v3070 = vpop.permute.xlu0 %3069
      %3071 = vrot.lane.b32.xlu0 %v3005, 112
      %v3072 = vpop.permute.xlu0 %3071
      %3073 = vrot.lane.b32.xlu0 %v3007, 112
      %v3074 = vpop.permute.xlu0 %3073
      %3075 = vrot.lane.b32.xlu0 %v3010, 112
      %v3076 = vpop.permute.xlu0 %3075
      %3077 = vrot.lane.b32.xlu0 %v3012, 112
      %v3078 = vpop.permute.xlu0 %3077
      %3079 = vrot.lane.b32.xlu0 %v3015, 112
      %v3080 = vpop.permute.xlu0 %3079
      %3081 = vrot.lane.b32.xlu0 %v3017, 112
      %v3082 = vpop.permute.xlu0 %3081
      %3083 = vrot.lane.b32.xlu0 %v3020, 112
      %v3084 = vpop.permute.xlu0 %3083
      %3085 = vrot.lane.b32.xlu0 %v3022, 112
      %v3086 = vpop.permute.xlu0 %3085
      %v3119 = vrot.slane %v2315, 5
      %v3120 = vrot.slane %v2316, 5
      %v3121 = vsel %vm1078, %v3119, %v3120
      %v3122 = vrot.slane %v2317, 5
      %v3123 = vsel %vm1078, %v3120, %v3122
      %v3124 = vrot.slane %v2318, 5
      %v3125 = vrot.slane %v2319, 5
      %v3126 = vsel %vm1078, %v3124, %v3125
      %v3127 = vrot.slane %v2320, 5
      %v3128 = vsel %vm1078, %v3125, %v3127
      %v3129 = vrot.slane %v2321, 5
      %v3130 = vrot.slane %v2322, 5
      %v3131 = vsel %vm1078, %v3129, %v3130
      %v3132 = vrot.slane %v2323, 5
      %v3133 = vsel %vm1078, %v3130, %v3132
      %v3134 = vrot.slane %v2324, 5
      %v3135 = vrot.slane %v2325, 5
      %v3136 = vsel %vm1078, %v3134, %v3135
      %v3137 = vrot.slane %v2326, 5
      %v3138 = vsel %vm1078, %v3135, %v3137
      %v3139 = vrot.slane %v2327, 5
      %v3140 = vrot.slane %v2328, 5
      %v3141 = vsel %vm1078, %v3139, %v3140
      %v3142 = vrot.slane %v2329, 5
      %v3143 = vsel %vm1078, %v3140, %v3142
      %v3144 = vrot.slane %v2330, 5
      %v3145 = vrot.slane %v2331, 5
      %v3146 = vsel %vm1078, %v3144, %v3145
      %v3147 = vrot.slane %v2332, 5
      %v3148 = vsel %vm1078, %v3145, %v3147
      %v3149 = vrot.slane %v2333, 5
      %v3150 = vrot.slane %v2334, 5
      %v3151 = vsel %vm1078, %v3149, %v3150
      %v3152 = vrot.slane %v2335, 5
      %v3153 = vsel %vm1078, %v3150, %v3152
      %v3154 = vrot.slane %v2336, 5
      %v3155 = vrot.slane %v2337, 5
      %v3156 = vsel %vm1078, %v3154, %v3155
      %v3157 = vrot.slane %v2338, 5
      %v3158 = vsel %vm1078, %v3155, %v3157
      %v3159 = vrot.slane %v2339, 5
      %v3160 = vrot.slane %v2340, 5
      %v3161 = vsel %vm1078, %v3159, %v3160
      %v3162 = vrot.slane %v2341, 5
      %v3163 = vsel %vm1078, %v3160, %v3162
      %v3164 = vrot.slane %v2342, 5
      %v3165 = vrot.slane %v2343, 5
      %v3166 = vsel %vm1078, %v3164, %v3165
      %v3167 = vrot.slane %v2344, 5
      %v3168 = vsel %vm1078, %v3165, %v3167
      %v3169 = vrot.slane %v2345, 5
      %v3170 = vrot.slane %v2346, 5
      %v3171 = vsel %vm1078, %v3169, %v3170
      %v3172 = vrot.slane %v2347, 5
      %v3173 = vsel %vm1078, %v3170, %v3172
      %v3174 = vrot.slane %v2348, 5
      %v3175 = vrot.slane %v2349, 5
      %v3176 = vsel %vm1078, %v3174, %v3175
      %v3177 = vrot.slane %v2350, 5
      %v3178 = vsel %vm1078, %v3175, %v3177
      %v3179 = vrot.slane %v2351, 5
      %v3180 = vrot.slane %v2352, 5
      %v3181 = vsel %vm1078, %v3179, %v3180
      %v3182 = vrot.slane %v2353, 5
      %v3183 = vsel %vm1078, %v3180, %v3182
      %v3184 = vrot.slane %v2354, 5
      %v3185 = vrot.slane %v2355, 5
      %v3186 = vsel %vm1078, %v3184, %v3185
      %v3187 = vrot.slane %v2356, 5
      %v3188 = vsel %vm1078, %v3185, %v3187
      %v3189 = vrot.slane %v2357, 5
      %v3190 = vrot.slane %v2358, 5
      %v3191 = vsel %vm1078, %v3189, %v3190
      %v3192 = vrot.slane %v2359, 5
      %v3193 = vsel %vm1078, %v3190, %v3192
      %v3194 = vrot.slane %v2360, 5
      %v3195 = vrot.slane %v2361, 5
      %v3196 = vsel %vm1078, %v3194, %v3195
      %v3197 = vrot.slane %v2362, 5
      %v3198 = vsel %vm1078, %v3195, %v3197
      %3199 = vrot.lane.b32.xlu0 %v3121, 12
      %v3200 = vpop.permute.xlu0 %3199
      %3201 = vrot.lane.b32.xlu0 %v3123, 12
      %v3202 = vpop.permute.xlu0 %3201
      %3203 = vrot.lane.b32.xlu0 %v3126, 12
      %v3204 = vpop.permute.xlu0 %3203
      %3205 = vrot.lane.b32.xlu0 %v3128, 12
      %v3206 = vpop.permute.xlu0 %3205
      %3207 = vrot.lane.b32.xlu0 %v3131, 12
      %v3208 = vpop.permute.xlu0 %3207
      %3209 = vrot.lane.b32.xlu0 %v3133, 12
      %v3210 = vpop.permute.xlu0 %3209
      %3211 = vrot.lane.b32.xlu0 %v3136, 12
      %v3212 = vpop.permute.xlu0 %3211
      %3213 = vrot.lane.b32.xlu0 %v3138, 12
      %v3214 = vpop.permute.xlu0 %3213
      %3215 = vrot.lane.b32.xlu0 %v3141, 12
      %v3216 = vpop.permute.xlu0 %3215
      %3217 = vrot.lane.b32.xlu0 %v3143, 12
      %v3218 = vpop.permute.xlu0 %3217
      %3219 = vrot.lane.b32.xlu0 %v3146, 12
      %v3220 = vpop.permute.xlu0 %3219
      %3221 = vrot.lane.b32.xlu0 %v3148, 12
      %v3222 = vpop.permute.xlu0 %3221
      %3223 = vrot.lane.b32.xlu0 %v3151, 12
      %v3224 = vpop.permute.xlu0 %3223
      %3225 = vrot.lane.b32.xlu0 %v3153, 12
      %v3226 = vpop.permute.xlu0 %3225
      %3227 = vrot.lane.b32.xlu0 %v3156, 12
      %v3228 = vpop.permute.xlu0 %3227
      %3229 = vrot.lane.b32.xlu0 %v3158, 12
      %v3230 = vpop.permute.xlu0 %3229
      %3231 = vrot.lane.b32.xlu0 %v3161, 12
      %v3232 = vpop.permute.xlu0 %3231
      %3233 = vrot.lane.b32.xlu0 %v3163, 12
      %v3234 = vpop.permute.xlu0 %3233
      %3235 = vrot.lane.b32.xlu0 %v3166, 12
      %v3236 = vpop.permute.xlu0 %3235
      %3237 = vrot.lane.b32.xlu0 %v3168, 12
      %v3238 = vpop.permute.xlu0 %3237
      %3239 = vrot.lane.b32.xlu0 %v3171, 12
      %v3240 = vpop.permute.xlu0 %3239
      %3241 = vrot.lane.b32.xlu0 %v3173, 12
      %v3242 = vpop.permute.xlu0 %3241
      %3243 = vrot.lane.b32.xlu0 %v3176, 12
      %v3244 = vpop.permute.xlu0 %3243
      %3245 = vrot.lane.b32.xlu0 %v3178, 12
      %v3246 = vpop.permute.xlu0 %3245
      %3247 = vrot.lane.b32.xlu0 %v3181, 12
      %v3248 = vpop.permute.xlu0 %3247
      %3249 = vrot.lane.b32.xlu0 %v3183, 12
      %v3250 = vpop.permute.xlu0 %3249
      %3251 = vrot.lane.b32.xlu0 %v3186, 12
      %v3252 = vpop.permute.xlu0 %3251
      %3253 = vrot.lane.b32.xlu0 %v3188, 12
      %v3254 = vpop.permute.xlu0 %3253
      %3255 = vrot.lane.b32.xlu0 %v3191, 12
      %v3256 = vpop.permute.xlu0 %3255
      %3257 = vrot.lane.b32.xlu0 %v3193, 12
      %v3258 = vpop.permute.xlu0 %3257
      %3259 = vrot.lane.b32.xlu0 %v3196, 12
      %v3260 = vpop.permute.xlu0 %3259
      %3261 = vrot.lane.b32.xlu0 %v3198, 12
      %v3262 = vpop.permute.xlu0 %3261
      %vm3295 = vcmask 1041408
      %v3296 = vrot.slane %v2315, 6
      %v3297 = vrot.slane %v2316, 6
      %v3298 = vsel %vm3295, %v3296, %v3297
      %v3299 = vrot.slane %v2317, 6
      %v3300 = vsel %vm3295, %v3297, %v3299
      %v3301 = vrot.slane %v2318, 6
      %v3302 = vrot.slane %v2319, 6
      %v3303 = vsel %vm3295, %v3301, %v3302
      %v3304 = vrot.slane %v2320, 6
      %v3305 = vsel %vm3295, %v3302, %v3304
      %v3306 = vrot.slane %v2321, 6
      %v3307 = vrot.slane %v2322, 6
      %v3308 = vsel %vm3295, %v3306, %v3307
      %v3309 = vrot.slane %v2323, 6
      %v3310 = vsel %vm3295, %v3307, %v3309
      %v3311 = vrot.slane %v2324, 6
      %v3312 = vrot.slane %v2325, 6
      %v3313 = vsel %vm3295, %v3311, %v3312
      %v3314 = vrot.slane %v2326, 6
      %v3315 = vsel %vm3295, %v3312, %v3314
      %v3316 = vrot.slane %v2327, 6
      %v3317 = vrot.slane %v2328, 6
      %v3318 = vsel %vm3295, %v3316, %v3317
      %v3319 = vrot.slane %v2329, 6
      %v3320 = vsel %vm3295, %v3317, %v3319
      %v3321 = vrot.slane %v2330, 6
      %v3322 = vrot.slane %v2331, 6
      %v3323 = vsel %vm3295, %v3321, %v3322
      %v3324 = vrot.slane %v2332, 6
      %v3325 = vsel %vm3295, %v3322, %v3324
      %v3326 = vrot.slane %v2333, 6
      %v3327 = vrot.slane %v2334, 6
      %v3328 = vsel %vm3295, %v3326, %v3327
      %v3329 = vrot.slane %v2335, 6
      %v3330 = vsel %vm3295, %v3327, %v3329
      %v3331 = vrot.slane %v2336, 6
      %v3332 = vrot.slane %v2337, 6
      %v3333 = vsel %vm3295, %v3331, %v3332
      %v3334 = vrot.slane %v2338, 6
      %v3335 = vsel %vm3295, %v3332, %v3334
      %v3336 = vrot.slane %v2339, 6
      %v3337 = vrot.slane %v2340, 6
      %v3338 = vsel %vm3295, %v3336, %v3337
      %v3339 = vrot.slane %v2341, 6
      %v3340 = vsel %vm3295, %v3337, %v3339
      %v3341 = vrot.slane %v2342, 6
      %v3342 = vrot.slane %v2343, 6
      %v3343 = vsel %vm3295, %v3341, %v3342
      %v3344 = vrot.slane %v2344, 6
      %v3345 = vsel %vm3295, %v3342, %v3344
      %v3346 = vrot.slane %v2345, 6
      %v3347 = vrot.slane %v2346, 6
      %v3348 = vsel %vm3295, %v3346, %v3347
      %v3349 = vrot.slane %v2347, 6
      %v3350 = vsel %vm3295, %v3347, %v3349
      %v3351 = vrot.slane %v2348, 6
      %v3352 = vrot.slane %v2349, 6
      %v3353 = vsel %vm3295, %v3351, %v3352
      %v3354 = vrot.slane %v2350, 6
      %v3355 = vsel %vm3295, %v3352, %v3354
      %v3356 = vrot.slane %v2351, 6
      %v3357 = vrot.slane %v2352, 6
      %v3358 = vsel %vm3295, %v3356, %v3357
      %v3359 = vrot.slane %v2353, 6
      %v3360 = vsel %vm3295, %v3357, %v3359
      %v3361 = vrot.slane %v2354, 6
      %v3362 = vrot.slane %v2355, 6
      %v3363 = vsel %vm3295, %v3361, %v3362
      %v3364 = vrot.slane %v2356, 6
      %v3365 = vsel %vm3295, %v3362, %v3364
      %v3366 = vrot.slane %v2357, 6
      %v3367 = vrot.slane %v2358, 6
      %v3368 = vsel %vm3295, %v3366, %v3367
      %v3369 = vrot.slane %v2359, 6
      %v3370 = vsel %vm3295, %v3367, %v3369
      %v3371 = vrot.slane %v2360, 6
      %v3372 = vrot.slane %v2361, 6
      %v3373 = vsel %vm3295, %v3371, %v3372
      %v3374 = vrot.slane %v2362, 6
      %v3375 = vsel %vm3295, %v3372, %v3374
      %3376 = vrot.lane.b32.xlu0 %v3298, 40
      %v3377 = vpop.permute.xlu0 %3376
      %3378 = vrot.lane.b32.xlu0 %v3300, 40
      %v3379 = vpop.permute.xlu0 %3378
      %3380 = vrot.lane.b32.xlu0 %v3303, 40
      %v3381 = vpop.permute.xlu0 %3380
      %3382 = vrot.lane.b32.xlu0 %v3305, 40
      %v3383 = vpop.permute.xlu0 %3382
      %3384 = vrot.lane.b32.xlu0 %v3308, 40
      %v3385 = vpop.permute.xlu0 %3384
      %3386 = vrot.lane.b32.xlu0 %v3310, 40
      %v3387 = vpop.permute.xlu0 %3386
      %3388 = vrot.lane.b32.xlu0 %v3313, 40
      %v3389 = vpop.permute.xlu0 %3388
      %3390 = vrot.lane.b32.xlu0 %v3315, 40
      %v3391 = vpop.permute.xlu0 %3390
      %3392 = vrot.lane.b32.xlu0 %v3318, 40
      %v3393 = vpop.permute.xlu0 %3392
      %3394 = vrot.lane.b32.xlu0 %v3320, 40
      %v3395 = vpop.permute.xlu0 %3394
      %3396 = vrot.lane.b32.xlu0 %v3323, 40
      %v3397 = vpop.permute.xlu0 %3396
      %3398 = vrot.lane.b32.xlu0 %v3325, 40
      %v3399 = vpop.permute.xlu0 %3398
      %3400 = vrot.lane.b32.xlu0 %v3328, 40
      %v3401 = vpop.permute.xlu0 %3400
      %3402 = vrot.lane.b32.xlu0 %v3330, 40
      %v3403 = vpop.permute.xlu0 %3402
      %3404 = vrot.lane.b32.xlu0 %v3333, 40
      %v3405 = vpop.permute.xlu0 %3404
      %3406 = vrot.lane.b32.xlu0 %v3335, 40
      %v3407 = vpop.permute.xlu0 %3406
      %3408 = vrot.lane.b32.xlu0 %v3338, 40
      %v3409 = vpop.permute.xlu0 %3408
      %3410 = vrot.lane.b32.xlu0 %v3340, 40
      %v3411 = vpop.permute.xlu0 %3410
      %3412 = vrot.lane.b32.xlu0 %v3343, 40
      %v3413 = vpop.permute.xlu0 %3412
      %3414 = vrot.lane.b32.xlu0 %v3345, 40
      %v3415 = vpop.permute.xlu0 %3414
      %3416 = vrot.lane.b32.xlu0 %v3348, 40
      %v3417 = vpop.permute.xlu0 %3416
      %3418 = vrot.lane.b32.xlu0 %v3350, 40
      %v3419 = vpop.permute.xlu0 %3418
      %3420 = vrot.lane.b32.xlu0 %v3353, 40
      %v3421 = vpop.permute.xlu0 %3420
      %3422 = vrot.lane.b32.xlu0 %v3355, 40
      %v3423 = vpop.permute.xlu0 %3422
      %3424 = vrot.lane.b32.xlu0 %v3358, 40
      %v3425 = vpop.permute.xlu0 %3424
      %3426 = vrot.lane.b32.xlu0 %v3360, 40
      %v3427 = vpop.permute.xlu0 %3426
      %3428 = vrot.lane.b32.xlu0 %v3363, 40
      %v3429 = vpop.permute.xlu0 %3428
      %3430 = vrot.lane.b32.xlu0 %v3365, 40
      %v3431 = vpop.permute.xlu0 %3430
      %3432 = vrot.lane.b32.xlu0 %v3368, 40
      %v3433 = vpop.permute.xlu0 %3432
      %3434 = vrot.lane.b32.xlu0 %v3370, 40
      %v3435 = vpop.permute.xlu0 %3434
      %3436 = vrot.lane.b32.xlu0 %v3373, 40
      %v3437 = vpop.permute.xlu0 %3436
      %3438 = vrot.lane.b32.xlu0 %v3375, 40
      %v3439 = vpop.permute.xlu0 %3438
      %vm3472 = vcmask 228352
      %v3473 = vsel %vm3472, %v2315, %v2493
      %v3474 = vsel %vm3472, %v2316, %v2495
      %v3475 = vsel %vm3472, %v2318, %v2497
      %v3476 = vsel %vm3472, %v2319, %v2499
      %v3477 = vsel %vm3472, %v2321, %v2501
      %v3478 = vsel %vm3472, %v2322, %v2503
      %v3479 = vsel %vm3472, %v2324, %v2505
      %v3480 = vsel %vm3472, %v2325, %v2507
      %v3481 = vsel %vm3472, %v2327, %v2509
      %v3482 = vsel %vm3472, %v2328, %v2511
      %v3483 = vsel %vm3472, %v2330, %v2513
      %v3484 = vsel %vm3472, %v2331, %v2515
      %v3485 = vsel %vm3472, %v2333, %v2517
      %v3486 = vsel %vm3472, %v2334, %v2519
      %v3487 = vsel %vm3472, %v2336, %v2521
      %v3488 = vsel %vm3472, %v2337, %v2523
      %v3489 = vsel %vm3472, %v2339, %v2525
      %v3490 = vsel %vm3472, %v2340, %v2527
      %v3491 = vsel %vm3472, %v2342, %v2529
      %v3492 = vsel %vm3472, %v2343, %v2531
      %v3493 = vsel %vm3472, %v2345, %v2533
      %v3494 = vsel %vm3472, %v2346, %v2535
      %v3495 = vsel %vm3472, %v2348, %v2537
      %v3496 = vsel %vm3472, %v2349, %v2539
      %v3497 = vsel %vm3472, %v2351, %v2541
      %v3498 = vsel %vm3472, %v2352, %v2543
      %v3499 = vsel %vm3472, %v2354, %v2545
      %v3500 = vsel %vm3472, %v2355, %v2547
      %v3501 = vsel %vm3472, %v2357, %v2549
      %v3502 = vsel %vm3472, %v2358, %v2551
      %v3503 = vsel %vm3472, %v2360, %v2553
      %v3504 = vsel %vm3472, %v2361, %v2555
      %vm3505 = vcmask 457728
      %v3506 = vsel %vm3505, %v3473, %v2670
      %v3507 = vsel %vm3505, %v3474, %v2672
      %v3508 = vsel %vm3505, %v3475, %v2674
      %v3509 = vsel %vm3505, %v3476, %v2676
      %v3510 = vsel %vm3505, %v3477, %v2678
      %v3511 = vsel %vm3505, %v3478, %v2680
      %v3512 = vsel %vm3505, %v3479, %v2682
      %v3513 = vsel %vm3505, %v3480, %v2684
      %v3514 = vsel %vm3505, %v3481, %v2686
      %v3515 = vsel %vm3505, %v3482, %v2688
      %v3516 = vsel %vm3505, %v3483, %v2690
      %v3517 = vsel %vm3505, %v3484, %v2692
      %v3518 = vsel %vm3505, %v3485, %v2694
      %v3519 = vsel %vm3505, %v3486, %v2696
      %v3520 = vsel %vm3505, %v3487, %v2698
      %v3521 = vsel %vm3505, %v3488, %v2700
      %v3522 = vsel %vm3505, %v3489, %v2702
      %v3523 = vsel %vm3505, %v3490, %v2704
      %v3524 = vsel %vm3505, %v3491, %v2706
      %v3525 = vsel %vm3505, %v3492, %v2708
      %v3526 = vsel %vm3505, %v3493, %v2710
      %v3527 = vsel %vm3505, %v3494, %v2712
      %v3528 = vsel %vm3505, %v3495, %v2714
      %v3529 = vsel %vm3505, %v3496, %v2716
      %v3530 = vsel %vm3505, %v3497, %v2718
      %v3531 = vsel %vm3505, %v3498, %v2720
      %v3532 = vsel %vm3505, %v3499, %v2722
      %v3533 = vsel %vm3505, %v3500, %v2724
      %v3534 = vsel %vm3505, %v3501, %v2726
      %v3535 = vsel %vm3505, %v3502, %v2728
      %v3536 = vsel %vm3505, %v3503, %v2730
      %v3537 = vsel %vm3505, %v3504, %v2732
      %vm3538 = vcmask 687104
      %v3539 = vsel %vm3538, %v3506, %v2847
      %v3540 = vsel %vm3538, %v3507, %v2849
      %v3541 = vsel %vm3538, %v3508, %v2851
      %v3542 = vsel %vm3538, %v3509, %v2853
      %v3543 = vsel %vm3538, %v3510, %v2855
      %v3544 = vsel %vm3538, %v3511, %v2857
      %v3545 = vsel %vm3538, %v3512, %v2859
      %v3546 = vsel %vm3538, %v3513, %v2861
      %v3547 = vsel %vm3538, %v3514, %v2863
      %v3548 = vsel %vm3538, %v3515, %v2865
      %v3549 = vsel %vm3538, %v3516, %v2867
      %v3550 = vsel %vm3538, %v3517, %v2869
      %v3551 = vsel %vm3538, %v3518, %v2871
      %v3552 = vsel %vm3538, %v3519, %v2873
      %v3553 = vsel %vm3538, %v3520, %v2875
      %v3554 = vsel %vm3538, %v3521, %v2877
      %v3555 = vsel %vm3538, %v3522, %v2879
      %v3556 = vsel %vm3538, %v3523, %v2881
      %v3557 = vsel %vm3538, %v3524, %v2883
      %v3558 = vsel %vm3538, %v3525, %v2885
      %v3559 = vsel %vm3538, %v3526, %v2887
      %v3560 = vsel %vm3538, %v3527, %v2889
      %v3561 = vsel %vm3538, %v3528, %v2891
      %v3562 = vsel %vm3538, %v3529, %v2893
      %v3563 = vsel %vm3538, %v3530, %v2895
      %v3564 = vsel %vm3538, %v3531, %v2897
      %v3565 = vsel %vm3538, %v3532, %v2899
      %v3566 = vsel %vm3538, %v3533, %v2901
      %v3567 = vsel %vm3538, %v3534, %v2903
      %v3568 = vsel %vm3538, %v3535, %v2905
      %v3569 = vsel %vm3538, %v3536, %v2907
      %v3570 = vsel %vm3538, %v3537, %v2909
      %vm3571 = vcmask 916480
      %v3572 = vsel %vm3571, %v3539, %v3024
      %v3573 = vsel %vm3571, %v3540, %v3026
      %v3574 = vsel %vm3571, %v3541, %v3028
      %v3575 = vsel %vm3571, %v3542, %v3030
      %v3576 = vsel %vm3571, %v3543, %v3032
      %v3577 = vsel %vm3571, %v3544, %v3034
      %v3578 = vsel %vm3571, %v3545, %v3036
      %v3579 = vsel %vm3571, %v3546, %v3038
      %v3580 = vsel %vm3571, %v3547, %v3040
      %v3581 = vsel %vm3571, %v3548, %v3042
      %v3582 = vsel %vm3571, %v3549, %v3044
      %v3583 = vsel %vm3571, %v3550, %v3046
      %v3584 = vsel %vm3571, %v3551, %v3048
      %v3585 = vsel %vm3571, %v3552, %v3050
      %v3586 = vsel %vm3571, %v3553, %v3052
      %v3587 = vsel %vm3571, %v3554, %v3054
      %v3588 = vsel %vm3571, %v3555, %v3056
      %v3589 = vsel %vm3571, %v3556, %v3058
      %v3590 = vsel %vm3571, %v3557, %v3060
      %v3591 = vsel %vm3571, %v3558, %v3062
      %v3592 = vsel %vm3571, %v3559, %v3064
      %v3593 = vsel %vm3571, %v3560, %v3066
      %v3594 = vsel %vm3571, %v3561, %v3068
      %v3595 = vsel %vm3571, %v3562, %v3070
      %v3596 = vsel %vm3571, %v3563, %v3072
      %v3597 = vsel %vm3571, %v3564, %v3074
      %v3598 = vsel %vm3571, %v3565, %v3076
      %v3599 = vsel %vm3571, %v3566, %v3078
      %v3600 = vsel %vm3571, %v3567, %v3080
      %v3601 = vsel %vm3571, %v3568, %v3082
      %v3602 = vsel %vm3571, %v3569, %v3084
      %v3603 = vsel %vm3571, %v3570, %v3086
      %v3604 = vsel %vm2167, %v3024, %v3200
      %v3605 = vsel %vm2167, %v3026, %v3202
      %v3606 = vsel %vm2167, %v3028, %v3204
      %v3607 = vsel %vm2167, %v3030, %v3206
      %v3608 = vsel %vm2167, %v3032, %v3208
      %v3609 = vsel %vm2167, %v3034, %v3210
      %v3610 = vsel %vm2167, %v3036, %v3212
      %v3611 = vsel %vm2167, %v3038, %v3214
      %v3612 = vsel %vm2167, %v3040, %v3216
      %v3613 = vsel %vm2167, %v3042, %v3218
      %v3614 = vsel %vm2167, %v3044, %v3220
      %v3615 = vsel %vm2167, %v3046, %v3222
      %v3616 = vsel %vm2167, %v3048, %v3224
      %v3617 = vsel %vm2167, %v3050, %v3226
      %v3618 = vsel %vm2167, %v3052, %v3228
      %v3619 = vsel %vm2167, %v3054, %v3230
      %v3620 = vsel %vm2167, %v3056, %v3232
      %v3621 = vsel %vm2167, %v3058, %v3234
      %v3622 = vsel %vm2167, %v3060, %v3236
      %v3623 = vsel %vm2167, %v3062, %v3238
      %v3624 = vsel %vm2167, %v3064, %v3240
      %v3625 = vsel %vm2167, %v3066, %v3242
      %v3626 = vsel %vm2167, %v3068, %v3244
      %v3627 = vsel %vm2167, %v3070, %v3246
      %v3628 = vsel %vm2167, %v3072, %v3248
      %v3629 = vsel %vm2167, %v3074, %v3250
      %v3630 = vsel %vm2167, %v3076, %v3252
      %v3631 = vsel %vm2167, %v3078, %v3254
      %v3632 = vsel %vm2167, %v3080, %v3256
      %v3633 = vsel %vm2167, %v3082, %v3258
      %v3634 = vsel %vm2167, %v3084, %v3260
      %v3635 = vsel %vm2167, %v3086, %v3262
      %vm3636 = vcmask 326656
      %v3637 = vsel %vm3636, %v3604, %v3377
      %v3638 = vsel %vm3636, %v3605, %v3379
      %v3639 = vsel %vm3636, %v3606, %v3381
      %v3640 = vsel %vm3636, %v3607, %v3383
      %v3641 = vsel %vm3636, %v3608, %v3385
      %v3642 = vsel %vm3636, %v3609, %v3387
      %v3643 = vsel %vm3636, %v3610, %v3389
      %v3644 = vsel %vm3636, %v3611, %v3391
      %v3645 = vsel %vm3636, %v3612, %v3393
      %v3646 = vsel %vm3636, %v3613, %v3395
      %v3647 = vsel %vm3636, %v3614, %v3397
      %v3648 = vsel %vm3636, %v3615, %v3399
      %v3649 = vsel %vm3636, %v3616, %v3401
      %v3650 = vsel %vm3636, %v3617, %v3403
      %v3651 = vsel %vm3636, %v3618, %v3405
      %v3652 = vsel %vm3636, %v3619, %v3407
      %v3653 = vsel %vm3636, %v3620, %v3409
      %v3654 = vsel %vm3636, %v3621, %v3411
      %v3655 = vsel %vm3636, %v3622, %v3413
      %v3656 = vsel %vm3636, %v3623, %v3415
      %v3657 = vsel %vm3636, %v3624, %v3417
      %v3658 = vsel %vm3636, %v3625, %v3419
      %v3659 = vsel %vm3636, %v3626, %v3421
      %v3660 = vsel %vm3636, %v3627, %v3423
      %v3661 = vsel %vm3636, %v3628, %v3425
      %v3662 = vsel %vm3636, %v3629, %v3427
      %v3663 = vsel %vm3636, %v3630, %v3429
      %v3664 = vsel %vm3636, %v3631, %v3431
      %v3665 = vsel %vm3636, %v3632, %v3433
      %v3666 = vsel %vm3636, %v3633, %v3435
      %v3667 = vsel %vm3636, %v3634, %v3437
      %v3668 = vsel %vm3636, %v3635, %v3439
      %v3669 = vld [vmem:[%s2] sm:$0xff]
      %v3670 = vld [vmem:[%s2 + $0x8] sm:$0xff]
      %v3671 = vld [vmem:[%s2 + $0x10] sm:$0xff]
      %v3672 = vld [vmem:[%s2 + $0x18] sm:$0xff]
      %v3673 = vld [vmem:[%s2 + $0x20] sm:$0xff]
      %v3674 = vld [vmem:[%s2 + $0x28] sm:$0xff]
      %v3675 = vld [vmem:[%s2 + $0x30] sm:$0xff]
      %v3676 = vld [vmem:[%s2 + $0x38] sm:$0xff]
      %v3677 = vld [vmem:[%s2 + $0x40] sm:$0xff]
      %v3678 = vld [vmem:[%s2 + $0x48] sm:$0xff]
      %v3679 = vld [vmem:[%s2 + $0x50] sm:$0xff]
      %v3680 = vld [vmem:[%s2 + $0x58] sm:$0xff]
      %v3681 = vld [vmem:[%s2 + $0x60] sm:$0xff]
      %v3682 = vld [vmem:[%s2 + $0x68] sm:$0xff]
      %v3683 = vld [vmem:[%s2 + $0x70] sm:$0xff]
      %v3684 = vld [vmem:[%s2 + $0x78] sm:$0xff]
      %v3685 = vld [vmem:[%s2 + $0x80] sm:$0xff]
      %v3686 = vld [vmem:[%s2 + $0x88] sm:$0xff]
      %v3687 = vld [vmem:[%s2 + $0x90] sm:$0xff]
      %v3688 = vld [vmem:[%s2 + $0x98] sm:$0xff]
      %v3689 = vld [vmem:[%s2 + $0xa0] sm:$0xff]
      %v3690 = vld [vmem:[%s2 + $0xa8] sm:$0xff]
      %v3691 = vld [vmem:[%s2 + $0xb0] sm:$0xff]
      %v3692 = vld [vmem:[%s2 + $0xb8] sm:$0xff]
      %v3693 = vld [vmem:[%s2 + $0xc0] sm:$0xf]
      %v3694 = vld [vmem:[%s3] sm:$0x1]
      %v3696 = vlaneseq
      %v3697 = vshrl.u32 %v3696, 7
      %v3698 = vsub.s32 0, %v3697
      %v3699 = vrot.slane %v3694, %v3698
      %vm3701 = vcmask 556032
      %v3703 = vsel %vm3701, %v3637, 0
      %v3706 = vsel %vm3701, %v3638, 0
      %v3709 = vsel %vm3701, %v3639, 0
      %v3712 = vsel %vm3701, %v3640, 0
      %v3715 = vsel %vm3701, %v3641, 0
      %v3718 = vsel %vm3701, %v3642, 0
      %v3721 = vsel %vm3701, %v3643, 0
      %v3724 = vsel %vm3701, %v3644, 0
      %v3727 = vsel %vm3701, %v3645, 0
      %v3730 = vsel %vm3701, %v3646, 0
      %v3733 = vsel %vm3701, %v3647, 0
      %v3736 = vsel %vm3701, %v3648, 0
      %v3739 = vsel %vm3701, %v3649, 0
      %v3742 = vsel %vm3701, %v3650, 0
      %v3745 = vsel %vm3701, %v3651, 0
      %v3748 = vsel %vm3701, %v3652, 0
      %v3751 = vsel %vm3701, %v3653, 0
      %v3754 = vsel %vm3701, %v3654, 0
      %v3757 = vsel %vm3701, %v3655, 0
      %v3760 = vsel %vm3701, %v3656, 0
      %v3763 = vsel %vm3701, %v3657, 0
      %v3766 = vsel %vm3701, %v3658, 0
      %v3769 = vsel %vm3701, %v3659, 0
      %v3772 = vsel %vm3701, %v3660, 0
      %v3775 = vsel %vm3701, %v3661, 0
      %v3778 = vsel %vm3701, %v3662, 0
      %v3781 = vsel %vm3701, %v3663, 0
      %v3784 = vsel %vm3701, %v3664, 0
      %v3787 = vsel %vm3701, %v3665, 0
      %v3790 = vsel %vm3701, %v3666, 0
      %v3793 = vsel %vm3701, %v3667, 0
      %v3796 = vsel %vm3701, %v3668, 0
      %v3799 = vsel %vm2942, %v3693, 0
      %3801 = vmatprep.subr.mxu0 0.0
      %3802 = vmatpush1.msra.mxu0 %v3669
      %3803 = vmatprep.subr.mxu0 0.0
      %3804 = vmatpush1.msra.mxu0 %v3670
      %3805 = vmatprep.subr.mxu0 0.0
      %3806 = vmatpush1.msra.mxu0 %v3671
      %3807 = vmatprep.subr.mxu0 0.0
      %3808 = vmatpush1.msra.mxu0 %v3672
      %3809 = vmatprep.subr.mxu0 0.0
      %3810 = vmatpush1.msra.mxu0 %v3673
      %3811 = vmatprep.subr.mxu0 0.0
      %3812 = vmatpush1.msra.mxu0 %v3674
      %3813 = vmatprep.subr.mxu0 0.0
      %3814 = vmatpush1.msra.mxu0 %v3675
      %3815 = vmatprep.subr.mxu0 0.0
      %3816 = vmatpush1.msra.mxu0 %v3676
      %3817 = vmatprep.subr.mxu0 0.0
      %3818 = vmatpush1.msra.mxu0 %v3677
      %3819 = vmatprep.subr.mxu0 0.0
      %3820 = vmatpush1.msra.mxu0 %v3678
      %3821 = vmatprep.subr.mxu0 0.0
      %3822 = vmatpush1.msra.mxu0 %v3679
      %3823 = vmatprep.subr.mxu0 0.0
      %3824 = vmatpush1.msra.mxu0 %v3680
      %3825 = vmatprep.subr.mxu0 0.0
      %3826 = vmatpush1.msra.mxu0 %v3681
      %3827 = vmatprep.subr.mxu0 0.0
      %3828 = vmatpush1.msra.mxu0 %v3682
      %3829 = vmatprep.subr.mxu0 0.0
      %3830 = vmatpush1.msra.mxu0 %v3683
      %3831 = vmatprep.subr.mxu0 0.0
      %3832 = vmatpush1.msra.mxu0 %v3684
      %3833 = vmatprep.subr.mxu0 0.0
      %3834 = vmatpush1.msra.mxu0 %v3685
      %3835 = vmatprep.subr.mxu0 0.0
      %3836 = vmatpush1.msra.mxu0 %v3686
      %3837 = vmatprep.subr.mxu0 0.0
      %3838 = vmatpush1.msra.mxu0 %v3687
      %3839 = vmatprep.subr.mxu0 0.0
      %3840 = vmatpush1.msra.mxu0 %v3688
      %3841 = vmatprep.subr.mxu0 0.0
      %3842 = vmatpush1.msra.mxu0 %v3689
      %3843 = vmatprep.subr.mxu0 0.0
      %3844 = vmatpush1.msra.mxu0 %v3690
      %3845 = vmatprep.subr.mxu0 0.0
      %3846 = vmatpush1.msra.mxu0 %v3691
      %3847 = vmatprep.subr.mxu0 0.0
      %3848 = vmatpush1.msra.mxu0 %v3692
      %3849 = vmatprep.subr.mxu0 0.0
      %3850 = vmatpush1.msra.mxu0 %v3799
      %3851 = vmatprep.subr.mxu0 0.0
      %3852 = vmatpush1.msra.mxu0 0.0
      %3853 = vmatprep.subr.mxu0 0.0
      %3854 = vmatpush1.msra.mxu0 0.0
      %3855 = vmatprep.subr.mxu0 0.0
      %3856 = vmatpush1.msra.mxu0 0.0
      %3857 = vmatprep.subr.mxu0 0.0
      %3858 = vmatpush1.msra.mxu0 0.0
      %3859 = vmatprep.subr.mxu0 0.0
      %3860 = vmatpush1.msra.mxu0 0.0
      %3861 = vmatprep.subr.mxu0 0.0
      %3862 = vmatpush1.msra.mxu0 0.0
      %3863 = vmatprep.subr.mxu0 0.0
      %3864 = vmatpush1.msra.mxu0 0.0
      %3865 = vmatprep.mubr.f32.mxu0 %v3703
      %3866 = vmatmul.mubr.f32.gmra.mrb[0].mxu0 %v3572
      %v3867 = vpop.f32.mrb[0].mxu0
      %v3868 = vadd.f32 %v3699, %v3867
      %v3869 = vpop.f32.mrb[0].mxu0
      %3870 = vmatprep.mubr.f32.mxu0 %v3706
      %3871 = vmatmul.mubr.f32.gmra.mrb[0].mxu0 %v3573
      %v3872 = vpop.f32.mrb[0].mxu0
      %v3873 = vadd.f32 %v3699, %v3872
      %v3874 = vpop.f32.mrb[0].mxu0
      %3875 = vmatprep.mubr.f32.mxu0 %v3709
      %3876 = vmatmul.mubr.f32.gmra.mrb[0].mxu0 %v3574
      %v3877 = vpop.f32.mrb[0].mxu0
      %v3878 = vadd.f32 %v3699, %v3877
      %v3879 = vpop.f32.mrb[0].mxu0
      %3880 = vmatprep.mubr.f32.mxu0 %v3712
      %3881 = vmatmul.mubr.f32.gmra.mrb[0].mxu0 %v3575
      %v3882 = vpop.f32.mrb[0].mxu0
      %v3883 = vadd.f32 %v3699, %v3882
      %v3884 = vpop.f32.mrb[0].mxu0
      %3885 = vmatprep.mubr.f32.mxu0 %v3715
      %3886 = vmatmul.mubr.f32.gmra.mrb[0].mxu0 %v3576
      %v3887 = vpop.f32.mrb[0].mxu0
      %v3888 = vadd.f32 %v3699, %v3887
      %v3889 = vpop.f32.mrb[0].mxu0
      %3890 = vmatprep.mubr.f32.mxu0 %v3718
      %3891 = vmatmul.mubr.f32.gmra.mrb[0].mxu0 %v3577
      %v3892 = vpop.f32.mrb[0].mxu0
      %v3893 = vadd.f32 %v3699, %v3892
      %v3894 = vpop.f32.mrb[0].mxu0
      %3895 = vmatprep.mubr.f32.mxu0 %v3721
      %3896 = vmatmul.mubr.f32.gmra.mrb[0].mxu0 %v3578
      %v3897 = vpop.f32.mrb[0].mxu0
      %v3898 = vadd.f32 %v3699, %v3897
      %v3899 = vpop.f32.mrb[0].mxu0
      %3900 = vmatprep.mubr.f32.mxu0 %v3724
      %3901 = vmatmul.mubr.f32.gmra.mrb[0].mxu0 %v3579
      %v3902 = vpop.f32.mrb[0].mxu0
      %v3903 = vadd.f32 %v3699, %v3902
      %v3904 = vpop.f32.mrb[0].mxu0
      %3905 = vmatprep.mubr.f32.mxu0 %v3727
      %3906 = vmatmul.mubr.f32.gmra.mrb[0].mxu0 %v3580
      %v3907 = vpop.f32.mrb[0].mxu0
      %v3908 = vadd.f32 %v3699, %v3907
      %v3909 = vpop.f32.mrb[0].mxu0
      %3910 = vmatprep.mubr.f32.mxu0 %v3730
      %3911 = vmatmul.mubr.f32.gmra.mrb[0].mxu0 %v3581
      %v3912 = vpop.f32.mrb[0].mxu0
      %v3913 = vadd.f32 %v3699, %v3912
      %v3914 = vpop.f32.mrb[0].mxu0
      %3915 = vmatprep.mubr.f32.mxu0 %v3733
      %3916 = vmatmul.mubr.f32.gmra.mrb[0].mxu0 %v3582
      %v3917 = vpop.f32.mrb[0].mxu0
      %v3918 = vadd.f32 %v3699, %v3917
      %v3919 = vpop.f32.mrb[0].mxu0
      %3920 = vmatprep.mubr.f32.mxu0 %v3736
      %3921 = vmatmul.mubr.f32.gmra.mrb[0].mxu0 %v3583
      %v3922 = vpop.f32.mrb[0].mxu0
      %v3923 = vadd.f32 %v3699, %v3922
      %v3924 = vpop.f32.mrb[0].mxu0
      %3925 = vmatprep.mubr.f32.mxu0 %v3739
      %3926 = vmatmul.mubr.f32.gmra.mrb[0].mxu0 %v3584
      %v3927 = vpop.f32.mrb[0].mxu0
      %v3928 = vadd.f32 %v3699, %v3927
      %v3929 = vpop.f32.mrb[0].mxu0
      %3930 = vmatprep.mubr.f32.mxu0 %v3742
      %3931 = vmatmul.mubr.f32.gmra.mrb[0].mxu0 %v3585
      %v3932 = vpop.f32.mrb[0].mxu0
      %v3933 = vadd.f32 %v3699, %v3932
      %v3934 = vpop.f32.mrb[0].mxu0
      %3935 = vmatprep.mubr.f32.mxu0 %v3745
      %3936 = vmatmul.mubr.f32.gmra.mrb[0].mxu0 %v3586
      %v3937 = vpop.f32.mrb[0].mxu0
      %v3938 = vadd.f32 %v3699, %v3937
      %v3939 = vpop.f32.mrb[0].mxu0
      %3940 = vmatprep.mubr.f32.mxu0 %v3748
      %3941 = vmatmul.mubr.f32.gmra.mrb[0].mxu0 %v3587
      %v3942 = vpop.f32.mrb[0].mxu0
      %v3943 = vadd.f32 %v3699, %v3942
      %v3944 = vpop.f32.mrb[0].mxu0
      %3945 = vmatprep.mubr.f32.mxu0 %v3751
      %3946 = vmatmul.mubr.f32.gmra.mrb[0].mxu0 %v3588
      %v3947 = vpop.f32.mrb[0].mxu0
      %v3948 = vadd.f32 %v3699, %v3947
      %v3949 = vpop.f32.mrb[0].mxu0
      %3950 = vmatprep.mubr.f32.mxu0 %v3754
      %3951 = vmatmul.mubr.f32.gmra.mrb[0].mxu0 %v3589
      %v3952 = vpop.f32.mrb[0].mxu0
      %v3953 = vadd.f32 %v3699, %v3952
      %v3954 = vpop.f32.mrb[0].mxu0
      %3955 = vmatprep.mubr.f32.mxu0 %v3757
      %3956 = vmatmul.mubr.f32.gmra.mrb[0].mxu0 %v3590
      %v3957 = vpop.f32.mrb[0].mxu0
      %v3958 = vadd.f32 %v3699, %v3957
      %v3959 = vpop.f32.mrb[0].mxu0
      %3960 = vmatprep.mubr.f32.mxu0 %v3760
      %3961 = vmatmul.mubr.f32.gmra.mrb[0].mxu0 %v3591
      %v3962 = vpop.f32.mrb[0].mxu0
      %v3963 = vadd.f32 %v3699, %v3962
      %v3964 = vpop.f32.mrb[0].mxu0
      %3965 = vmatprep.mubr.f32.mxu0 %v3763
      %3966 = vmatmul.mubr.f32.gmra.mrb[0].mxu0 %v3592
      %v3967 = vpop.f32.mrb[0].mxu0
      %v3968 = vadd.f32 %v3699, %v3967
      %v3969 = vpop.f32.mrb[0].mxu0
      %3970 = vmatprep.mubr.f32.mxu0 %v3766
      %3971 = vmatmul.mubr.f32.gmra.mrb[0].mxu0 %v3593
      %v3972 = vpop.f32.mrb[0].mxu0
      %v3973 = vadd.f32 %v3699, %v3972
      %v3974 = vpop.f32.mrb[0].mxu0
      %3975 = vmatprep.mubr.f32.mxu0 %v3769
      %3976 = vmatmul.mubr.f32.gmra.mrb[0].mxu0 %v3594
      %v3977 = vpop.f32.mrb[0].mxu0
      %v3978 = vadd.f32 %v3699, %v3977
      %v3979 = vpop.f32.mrb[0].mxu0
      %3980 = vmatprep.mubr.f32.mxu0 %v3772
      %3981 = vmatmul.mubr.f32.gmra.mrb[0].mxu0 %v3595
      %v3982 = vpop.f32.mrb[0].mxu0
      %v3983 = vadd.f32 %v3699, %v3982
      %v3984 = vpop.f32.mrb[0].mxu0
      %3985 = vmatprep.mubr.f32.mxu0 %v3775
      %3986 = vmatmul.mubr.f32.gmra.mrb[0].mxu0 %v3596
      %v3987 = vpop.f32.mrb[0].mxu0
      %v3988 = vadd.f32 %v3699, %v3987
      %v3989 = vpop.f32.mrb[0].mxu0
      %3990 = vmatprep.mubr.f32.mxu0 %v3778
      %3991 = vmatmul.mubr.f32.gmra.mrb[0].mxu0 %v3597
      %v3992 = vpop.f32.mrb[0].mxu0
      %v3993 = vadd.f32 %v3699, %v3992
      %v3994 = vpop.f32.mrb[0].mxu0
      %3995 = vmatprep.mubr.f32.mxu0 %v3781
      %3996 = vmatmul.mubr.f32.gmra.mrb[0].mxu0 %v3598
      %v3997 = vpop.f32.mrb[0].mxu0
      %v3998 = vadd.f32 %v3699, %v3997
      %v3999 = vpop.f32.mrb[0].mxu0
      %4000 = vmatprep.mubr.f32.mxu0 %v3784
      %4001 = vmatmul.mubr.f32.gmra.mrb[0].mxu0 %v3599
      %v4002 = vpop.f32.mrb[0].mxu0
      %v4003 = vadd.f32 %v3699, %v4002
      %v4004 = vpop.f32.mrb[0].mxu0
      %4005 = vmatprep.mubr.f32.mxu0 %v3787
      %4006 = vmatmul.mubr.f32.gmra.mrb[0].mxu0 %v3600
      %v4007 = vpop.f32.mrb[0].mxu0
      %v4008 = vadd.f32 %v3699, %v4007
      %v4009 = vpop.f32.mrb[0].mxu0
      %4010 = vmatprep.mubr.f32.mxu0 %v3790
      %4011 = vmatmul.mubr.f32.gmra.mrb[0].mxu0 %v3601
      %v4012 = vpop.f32.mrb[0].mxu0
      %v4013 = vadd.f32 %v3699, %v4012
      %v4014 = vpop.f32.mrb[0].mxu0
      %4015 = vmatprep.mubr.f32.mxu0 %v3793
      %4016 = vmatmul.mubr.f32.gmra.mrb[0].mxu0 %v3602
      %v4017 = vpop.f32.mrb[0].mxu0
      %v4018 = vadd.f32 %v3699, %v4017
      %v4019 = vpop.f32.mrb[0].mxu0
      %4020 = vmatprep.mubr.f32.mxu0 %v3796
      %4021 = vmatmul.mubr.f32.gmra.mrb[0].mxu0 %v3603
      %v4022 = vpop.f32.mrb[0].mxu0
      %v4023 = vadd.f32 %v3699, %v4022
      %v4024 = vpop.f32.mrb[0].mxu0
      %4025 = vdwg.mxu0
      %v4026 = vlaneseq
      %v4027 = vand.u32 %v4026, 127
      %vm4028 = vcmp.lt.s32.totalorder %v4027, 24
      %v4029 = vmax.f32 %v3868, 0.0
      %v4030 = vmax.f32 %v3873, 0.0
      %v4031 = vmax.f32 %v3878, 0.0
      %v4032 = vmax.f32 %v3883, 0.0
      %v4033 = vmax.f32 %v3888, 0.0
      %v4034 = vmax.f32 %v3893, 0.0
      %v4035 = vmax.f32 %v3898, 0.0
      %v4036 = vmax.f32 %v3903, 0.0
      %v4037 = vmax.f32 %v3908, 0.0
      %v4038 = vmax.f32 %v3913, 0.0
      %v4039 = vmax.f32 %v3918, 0.0
      %v4040 = vmax.f32 %v3923, 0.0
      %v4041 = vmax.f32 %v3928, 0.0
      %v4042 = vmax.f32 %v3933, 0.0
      %v4043 = vmax.f32 %v3938, 0.0
      %v4044 = vmax.f32 %v3943, 0.0
      %v4045 = vmax.f32 %v3948, 0.0
      %v4046 = vmax.f32 %v3953, 0.0
      %v4047 = vmax.f32 %v3958, 0.0
      %v4048 = vmax.f32 %v3963, 0.0
      %v4049 = vmax.f32 %v3968, 0.0
      %v4050 = vmax.f32 %v3973, 0.0
      %v4051 = vmax.f32 %v3978, 0.0
      %v4052 = vmax.f32 %v3983, 0.0
      %v4053 = vmax.f32 %v3988, 0.0
      %v4054 = vmax.f32 %v3993, 0.0
      %v4055 = vmax.f32 %v3998, 0.0
      %v4056 = vmax.f32 %v4003, 0.0
      %v4057 = vmax.f32 %v4008, 0.0
      %v4058 = vmax.f32 %v4013, 0.0
      %v4059 = vmax.f32 %v4018, 0.0
      %v4060 = vmax.f32 %v4023, 0.0
      %v4061 = vsel %vm4028, %v3868, %v4029
      %v4062 = vsel %vm4028, %v3873, %v4030
      %v4063 = vsel %vm4028, %v3878, %v4031
      %v4064 = vsel %vm4028, %v3883, %v4032
      %v4065 = vsel %vm4028, %v3888, %v4033
      %v4066 = vsel %vm4028, %v3893, %v4034
      %v4067 = vsel %vm4028, %v3898, %v4035
      %v4068 = vsel %vm4028, %v3903, %v4036
      %v4069 = vsel %vm4028, %v3908, %v4037
      %v4070 = vsel %vm4028, %v3913, %v4038
      %v4071 = vsel %vm4028, %v3918, %v4039
      %v4072 = vsel %vm4028, %v3923, %v4040
      %v4073 = vsel %vm4028, %v3928, %v4041
      %v4074 = vsel %vm4028, %v3933, %v4042
      %v4075 = vsel %vm4028, %v3938, %v4043
      %v4076 = vsel %vm4028, %v3943, %v4044
      %v4077 = vsel %vm4028, %v3948, %v4045
      %v4078 = vsel %vm4028, %v3953, %v4046
      %v4079 = vsel %vm4028, %v3958, %v4047
      %v4080 = vsel %vm4028, %v3963, %v4048
      %v4081 = vsel %vm4028, %v3968, %v4049
      %v4082 = vsel %vm4028, %v3973, %v4050
      %v4083 = vsel %vm4028, %v3978, %v4051
      %v4084 = vsel %vm4028, %v3983, %v4052
      %v4085 = vsel %vm4028, %v3988, %v4053
      %v4086 = vsel %vm4028, %v3993, %v4054
      %v4087 = vsel %vm4028, %v3998, %v4055
      %v4088 = vsel %vm4028, %v4003, %v4056
      %v4089 = vsel %vm4028, %v4008, %v4057
      %v4090 = vsel %vm4028, %v4013, %v4058
      %v4091 = vsel %vm4028, %v4018, %v4059
      %v4092 = vsel %vm4028, %v4023, %v4060
      %v4093 = vsel %vm2072, %v1013, 0.0
      %v4094 = vsel %vm2072, %v1014, 0.0
      %v4095 = vadd.f32 %v4093, %v4094
      %v4096 = vsel %vm2072, %v1015, 0.0
      %v4097 = vadd.f32 %v4095, %v4096
      %v4098 = vsel %vm2072, %v1016, 0.0
      %v4099 = vadd.f32 %v4097, %v4098
      %v4100 = vsel %vm2072, %v1017, 0.0
      %v4101 = vadd.f32 %v4099, %v4100
      %v4102 = vsel %vm2072, %v1018, 0.0
      %v4103 = vadd.f32 %v4101, %v4102
      %v4104 = vsel %vm2072, %v1019, 0.0
      %v4105 = vadd.f32 %v4103, %v4104
      %v4106 = vsel %vm2072, %v1020, 0.0
      %v4107 = vadd.f32 %v4105, %v4106
      %v4108 = vsel %vm2072, %v1021, 0.0
      %v4109 = vadd.f32 %v4107, %v4108
      %v4110 = vsel %vm2072, %v1022, 0.0
      %v4111 = vadd.f32 %v4109, %v4110
      %v4112 = vsel %vm2072, %v1023, 0.0
      %v4113 = vadd.f32 %v4111, %v4112
      %v4114 = vsel %vm2072, %v1024, 0.0
      %v4115 = vadd.f32 %v4113, %v4114
      %v4116 = vsel %vm2072, %v1025, 0.0
      %v4117 = vadd.f32 %v4115, %v4116
      %v4118 = vsel %vm2072, %v1026, 0.0
      %v4119 = vadd.f32 %v4117, %v4118
      %v4120 = vsel %vm2072, %v1027, 0.0
      %v4121 = vadd.f32 %v4119, %v4120
      %v4122 = vsel %vm2072, %v1028, 0.0
      %v4123 = vadd.f32 %v4121, %v4122
      %v4124 = vsel %vm2072, %v1029, 0.0
      %v4125 = vadd.f32 %v4123, %v4124
      %v4126 = vsel %vm2072, %v1030, 0.0
      %v4127 = vadd.f32 %v4125, %v4126
      %v4128 = vsel %vm2072, %v1031, 0.0
      %v4129 = vadd.f32 %v4127, %v4128
      %v4130 = vsel %vm2072, %v1032, 0.0
      %v4131 = vadd.f32 %v4129, %v4130
      %v4132 = vsel %vm2072, %v1033, 0.0
      %v4133 = vadd.f32 %v4131, %v4132
      %v4134 = vsel %vm2072, %v1034, 0.0
      %v4135 = vadd.f32 %v4133, %v4134
      %v4136 = vsel %vm2072, %v1035, 0.0
      %v4137 = vadd.f32 %v4135, %v4136
      %v4138 = vsel %vm2072, %v1036, 0.0
      %v4139 = vadd.f32 %v4137, %v4138
      %v4140 = vsel %vm2072, %v1037, 0.0
      %v4141 = vadd.f32 %v4139, %v4140
      %v4142 = vsel %vm2072, %v1038, 0.0
      %v4143 = vadd.f32 %v4141, %v4142
      %v4144 = vsel %vm2072, %v1039, 0.0
      %v4145 = vadd.f32 %v4143, %v4144
      %v4146 = vsel %vm2072, %v1040, 0.0
      %v4147 = vadd.f32 %v4145, %v4146
      %v4148 = vsel %vm2072, %v1041, 0.0
      %v4149 = vadd.f32 %v4147, %v4148
      %v4150 = vsel %vm2072, %v1042, 0.0
      %v4151 = vadd.f32 %v4149, %v4150
      %v4152 = vsel %vm2072, %v1043, 0.0
      %v4153 = vadd.f32 %v4151, %v4152
      %v4154 = vsel %vm2072, %v1044, 0.0
      %v4155 = vadd.f32 %v4153, %v4154
      %v4156 = vrot.slane %v4155, 4
      %v4157 = vadd.f32 %v4155, %v4156
      %v4158 = vrot.slane %v4157, 2
      %v4159 = vadd.f32 %v4157, %v4158
      %v4160 = vrot.slane %v4159, 1
      %v4161 = vadd.f32 %v4159, %v4160
      %v4162 = vrcp.pop 256.0
      %v4163 = vmul.f32 %v4161, %v4162
      %v4164 = vld [vmem:[%s4] sm:$0xf]
      %v4165 = vld [vmem:[%s5] sm:$0x1]
      %v4167 = vsel %vm2072, %v4163, 0
      %v4170 = vsel %vm2942, %v4164, 0
      %4172 = vmatprep.subr.mxu0 0.0
      %4173 = vmatpush1.msra.mxu0 %v4170
      %4174 = vmatprep.subr.mxu0 0.0
      %4175 = vmatpush1.msra.mxu0 0.0
      %4176 = vmatprep.subr.mxu0 0.0
      %4177 = vmatpush1.msra.mxu0 0.0
      %4178 = vmatprep.subr.mxu0 0.0
      %4179 = vmatpush1.msra.mxu0 0.0
      %4180 = vmatprep.subr.mxu0 0.0
      %4181 = vmatpush1.msra.mxu0 0.0
      %4182 = vmatprep.subr.mxu0 0.0
      %4183 = vmatpush1.msra.mxu0 0.0
      %4184 = vmatprep.subr.mxu0 0.0
      %4185 = vmatpush1.msra.mxu0 0.0
      %4186 = vmatprep.subr.mxu0 0.0
      %4187 = vmatpush1.msra.mxu0 0.0
      %4188 = vmatprep.subr.mxu0 0.0
      %4189 = vmatpush1.msra.mxu0 0.0
      %4190 = vmatprep.subr.mxu0 0.0
      %4191 = vmatpush1.msra.mxu0 0.0
      %4192 = vmatprep.subr.mxu0 0.0
      %4193 = vmatpush1.msra.mxu0 0.0
      %4194 = vmatprep.subr.mxu0 0.0
      %4195 = vmatpush1.msra.mxu0 0.0
      %4196 = vmatprep.subr.mxu0 0.0
      %4197 = vmatpush1.msra.mxu0 0.0
      %4198 = vmatprep.subr.mxu0 0.0
      %4199 = vmatpush1.msra.mxu0 0.0
      %4200 = vmatprep.subr.mxu0 0.0
      %4201 = vmatpush1.msra.mxu0 0.0
      %4202 = vmatprep.subr.mxu0 0.0
      %4203 = vmatpush1.msra.mxu0 0.0
      %4204 = vmatprep.subr.mxu0 0.0
      %4205 = vmatpush1.msra.mxu0 0.0
      %4206 = vmatprep.subr.mxu0 0.0
      %4207 = vmatpush1.msra.mxu0 0.0
      %4208 = vmatprep.subr.mxu0 0.0
      %4209 = vmatpush1.msra.mxu0 0.0
      %4210 = vmatprep.subr.mxu0 0.0
      %4211 = vmatpush1.msra.mxu0 0.0
      %4212 = vmatprep.subr.mxu0 0.0
      %4213 = vmatpush1.msra.mxu0 0.0
      %4214 = vmatprep.subr.mxu0 0.0
      %4215 = vmatpush1.msra.mxu0 0.0
      %4216 = vmatprep.subr.mxu0 0.0
      %4217 = vmatpush1.msra.mxu0 0.0
      %4218 = vmatprep.subr.mxu0 0.0
      %4219 = vmatpush1.msra.mxu0 0.0
      %4220 = vmatprep.subr.mxu0 0.0
      %4221 = vmatpush1.msra.mxu0 0.0
      %4222 = vmatprep.subr.mxu0 0.0
      %4223 = vmatpush1.msra.mxu0 0.0
      %4224 = vmatprep.subr.mxu0 0.0
      %4225 = vmatpush1.msra.mxu0 0.0
      %4226 = vmatprep.subr.mxu0 0.0
      %4227 = vmatpush1.msra.mxu0 0.0
      %4228 = vmatprep.subr.mxu0 0.0
      %4229 = vmatpush1.msra.mxu0 0.0
      %4230 = vmatprep.subr.mxu0 0.0
      %4231 = vmatpush1.msra.mxu0 0.0
      %4232 = vmatprep.subr.mxu0 0.0
      %4233 = vmatpush1.msra.mxu0 0.0
      %4234 = vmatprep.subr.mxu0 0.0
      %4235 = vmatpush1.msra.mxu0 0.0
      %4236 = vmatprep.mubr.f32.mxu0 0.0
      %4237 = vmatmul.mubr.f32.gmra.mrb[0].mxu0 %v4167
      %v4238 = vpop.f32.mrb[0].mxu0
      %v4239 = vadd.f32 %v4165, %v4238
      %v4240 = vpop.f32.mrb[0].mxu0
      %4241 = vdwg.mxu0
      %v4242 = vmax.f32 %v4239, 0.0
      %v4243 = vld [vmem:[%s6] sm:$0xff]
      %v4245 = vsel %vm2118, %v4242, 0
      %4247 = vmatprep.subr.mxu0 0.0
      %4248 = vmatpush1.msra.mxu0 %v4243
      %4249 = vmatprep.subr.mxu0 0.0
      %4250 = vmatpush1.msra.mxu0 0.0
      %4251 = vmatprep.subr.mxu0 0.0
      %4252 = vmatpush1.msra.mxu0 0.0
      %4253 = vmatprep.subr.mxu0 0.0
      %4254 = vmatpush1.msra.mxu0 0.0
      %4255 = vmatprep.subr.mxu0 0.0
      %4256 = vmatpush1.msra.mxu0 0.0
      %4257 = vmatprep.subr.mxu0 0.0
      %4258 = vmatpush1.msra.mxu0 0.0
      %4259 = vmatprep.subr.mxu0 0.0
      %4260 = vmatpush1.msra.mxu0 0.0
      %4261 = vmatprep.subr.mxu0 0.0
      %4262 = vmatpush1.msra.mxu0 0.0
      %4263 = vmatprep.subr.mxu0 0.0
      %4264 = vmatpush1.msra.mxu0 0.0
      %4265 = vmatprep.subr.mxu0 0.0
      %4266 = vmatpush1.msra.mxu0 0.0
      %4267 = vmatprep.subr.mxu0 0.0
      %4268 = vmatpush1.msra.mxu0 0.0
      %4269 = vmatprep.subr.mxu0 0.0
      %4270 = vmatpush1.msra.mxu0 0.0
      %4271 = vmatprep.subr.mxu0 0.0
      %4272 = vmatpush1.msra.mxu0 0.0
      %4273 = vmatprep.subr.mxu0 0.0
      %4274 = vmatpush1.msra.mxu0 0.0
      %4275 = vmatprep.subr.mxu0 0.0
      %4276 = vmatpush1.msra.mxu0 0.0
      %4277 = vmatprep.subr.mxu0 0.0
      %4278 = vmatpush1.msra.mxu0 0.0
      %4279 = vmatprep.subr.mxu0 0.0
      %4280 = vmatpush1.msra.mxu0 0.0
      %4281 = vmatprep.subr.mxu0 0.0
      %4282 = vmatpush1.msra.mxu0 0.0
      %4283 = vmatprep.subr.mxu0 0.0
      %4284 = vmatpush1.msra.mxu0 0.0
      %4285 = vmatprep.subr.mxu0 0.0
      %4286 = vmatpush1.msra.mxu0 0.0
      %4287 = vmatprep.subr.mxu0 0.0
      %4288 = vmatpush1.msra.mxu0 0.0
      %4289 = vmatprep.subr.mxu0 0.0
      %4290 = vmatpush1.msra.mxu0 0.0
      %4291 = vmatprep.subr.mxu0 0.0
      %4292 = vmatpush1.msra.mxu0 0.0
      %4293 = vmatprep.subr.mxu0 0.0
      %4294 = vmatpush1.msra.mxu0 0.0
      %4295 = vmatprep.subr.mxu0 0.0
      %4296 = vmatpush1.msra.mxu0 0.0
      %4297 = vmatprep.subr.mxu0 0.0
      %4298 = vmatpush1.msra.mxu0 0.0
      %4299 = vmatprep.subr.mxu0 0.0
      %4300 = vmatpush1.msra.mxu0 0.0
      %4301 = vmatprep.subr.mxu0 0.0
      %4302 = vmatpush1.msra.mxu0 0.0
      %4303 = vmatprep.subr.mxu0 0.0
      %4304 = vmatpush1.msra.mxu0 0.0
      %4305 = vmatprep.subr.mxu0 0.0
      %4306 = vmatpush1.msra.mxu0 0.0
      %4307 = vmatprep.subr.mxu0 0.0
      %4308 = vmatpush1.msra.mxu0 0.0
      %4309 = vmatprep.subr.mxu0 0.0
      %4310 = vmatpush1.msra.mxu0 0.0
      %4311 = vmatprep.mubr.f32.mxu0 0.0
      %4312 = vmatmul.mubr.f32.gmra.mrb[0].mxu0 %v4245
      %v4313 = vpop.f32.mrb[0].mxu0
      %v4314 = vadd.f32 0.0, %v4313
      %v4315 = vpop.f32.mrb[0].mxu0
      %4316 = vdwg.mxu0
      %v4317 = vld [vmem:[%s8] sm:$0x1]
      %v4318 = vsel %vm496, %v4314, 0.0
      %v4319 = vadd.f32 %v4317, %v4318
      %v4320 = vld [vmem:[%s7] sm:$0xff]
      %v4321 = vld [vmem:[%s7 + $0x8] sm:$0xff]
      %v4322 = vld [vmem:[%s7 + $0x10] sm:$0xff]
      %v4323 = vld [vmem:[%s7 + $0x18] sm:$0xff]
      %v4324 = vld [vmem:[%s7 + $0x20] sm:$0xff]
      %v4326 = vlaneseq
      %v4327 = vshrl.u32 %v4326, 7
      %v4328 = vsub.s32 0, %v4327
      %v4329 = vrot.slane %v4319, %v4328
      %v4332 = vsel %vm3636, %v4061, 0
      %v4335 = vsel %vm3636, %v4062, 0
      %v4338 = vsel %vm3636, %v4063, 0
      %v4341 = vsel %vm3636, %v4064, 0
      %v4344 = vsel %vm3636, %v4065, 0
      %v4347 = vsel %vm3636, %v4066, 0
      %v4350 = vsel %vm3636, %v4067, 0
      %v4353 = vsel %vm3636, %v4068, 0
      %v4356 = vsel %vm3636, %v4069, 0
      %v4359 = vsel %vm3636, %v4070, 0
      %v4362 = vsel %vm3636, %v4071, 0
      %v4365 = vsel %vm3636, %v4072, 0
      %v4368 = vsel %vm3636, %v4073, 0
      %v4371 = vsel %vm3636, %v4074, 0
      %v4374 = vsel %vm3636, %v4075, 0
      %v4377 = vsel %vm3636, %v4076, 0
      %v4380 = vsel %vm3636, %v4077, 0
      %v4383 = vsel %vm3636, %v4078, 0
      %v4386 = vsel %vm3636, %v4079, 0
      %v4389 = vsel %vm3636, %v4080, 0
      %v4392 = vsel %vm3636, %v4081, 0
      %v4395 = vsel %vm3636, %v4082, 0
      %v4398 = vsel %vm3636, %v4083, 0
      %v4401 = vsel %vm3636, %v4084, 0
      %v4404 = vsel %vm3636, %v4085, 0
      %v4407 = vsel %vm3636, %v4086, 0
      %v4410 = vsel %vm3636, %v4087, 0
      %v4413 = vsel %vm3636, %v4088, 0
      %v4416 = vsel %vm3636, %v4089, 0
      %v4419 = vsel %vm3636, %v4090, 0
      %v4422 = vsel %vm3636, %v4091, 0
      %v4425 = vsel %vm3636, %v4092, 0
      %4427 = vmatprep.subr.mxu0 0.0
      %4428 = vmatpush1.msra.mxu0 %v4320
      %4429 = vmatprep.subr.mxu0 0.0
      %4430 = vmatpush1.msra.mxu0 %v4321
      %4431 = vmatprep.subr.mxu0 0.0
      %4432 = vmatpush1.msra.mxu0 %v4322
      %4433 = vmatprep.subr.mxu0 0.0
      %4434 = vmatpush1.msra.mxu0 %v4323
      %4435 = vmatprep.subr.mxu0 0.0
      %4436 = vmatpush1.msra.mxu0 %v4324
      %4437 = vmatprep.subr.mxu0 0.0
      %4438 = vmatpush1.msra.mxu0 0.0
      %4439 = vmatprep.subr.mxu0 0.0
      %4440 = vmatpush1.msra.mxu0 0.0
      %4441 = vmatprep.subr.mxu0 0.0
      %4442 = vmatpush1.msra.mxu0 0.0
      %4443 = vmatprep.subr.mxu0 0.0
      %4444 = vmatpush1.msra.mxu0 0.0
      %4445 = vmatprep.subr.mxu0 0.0
      %4446 = vmatpush1.msra.mxu0 0.0
      %4447 = vmatprep.subr.mxu0 0.0
      %4448 = vmatpush1.msra.mxu0 0.0
      %4449 = vmatprep.subr.mxu0 0.0
      %4450 = vmatpush1.msra.mxu0 0.0
      %4451 = vmatprep.subr.mxu0 0.0
      %4452 = vmatpush1.msra.mxu0 0.0
      %4453 = vmatprep.subr.mxu0 0.0
      %4454 = vmatpush1.msra.mxu0 0.0
      %4455 = vmatprep.subr.mxu0 0.0
      %4456 = vmatpush1.msra.mxu0 0.0
      %4457 = vmatprep.subr.mxu0 0.0
      %4458 = vmatpush1.msra.mxu0 0.0
      %4459 = vmatprep.subr.mxu0 0.0
      %4460 = vmatpush1.msra.mxu0 0.0
      %4461 = vmatprep.subr.mxu0 0.0
      %4462 = vmatpush1.msra.mxu0 0.0
      %4463 = vmatprep.subr.mxu0 0.0
      %4464 = vmatpush1.msra.mxu0 0.0
      %4465 = vmatprep.subr.mxu0 0.0
      %4466 = vmatpush1.msra.mxu0 0.0
      %4467 = vmatprep.subr.mxu0 0.0
      %4468 = vmatpush1.msra.mxu0 0.0
      %4469 = vmatprep.subr.mxu0 0.0
      %4470 = vmatpush1.msra.mxu0 0.0
      %4471 = vmatprep.subr.mxu0 0.0
      %4472 = vmatpush1.msra.mxu0 0.0
      %4473 = vmatprep.subr.mxu0 0.0
      %4474 = vmatpush1.msra.mxu0 0.0
      %4475 = vmatprep.subr.mxu0 0.0
      %4476 = vmatpush1.msra.mxu0 0.0
      %4477 = vmatprep.subr.mxu0 0.0
      %4478 = vmatpush1.msra.mxu0 0.0
      %4479 = vmatprep.subr.mxu0 0.0
      %4480 = vmatpush1.msra.mxu0 0.0
      %4481 = vmatprep.subr.mxu0 0.0
      %4482 = vmatpush1.msra.mxu0 0.0
      %4483 = vmatprep.subr.mxu0 0.0
      %4484 = vmatpush1.msra.mxu0 0.0
      %4485 = vmatprep.subr.mxu0 0.0
      %4486 = vmatpush1.msra.mxu0 0.0
      %4487 = vmatprep.subr.mxu0 0.0
      %4488 = vmatpush1.msra.mxu0 0.0
      %4489 = vmatprep.subr.mxu0 0.0
      %4490 = vmatpush1.msra.mxu0 0.0
      %4491 = vmatprep.mubr.f32.mxu0 0.0
      %4492 = vmatmul.mubr.f32.gmra.mrb[0].mxu0 %v4332
      %v4493 = vpop.f32.mrb[0].mxu0
      %v4494 = vadd.f32 %v4329, %v4493
      %v4495 = vpop.f32.mrb[0].mxu0
      %4496 = vmatprep.mubr.f32.mxu0 0.0
      %4497 = vmatmul.mubr.f32.gmra.mrb[0].mxu0 %v4335
      %v4498 = vpop.f32.mrb[0].mxu0
      %v4499 = vadd.f32 %v4329, %v4498
      %v4500 = vpop.f32.mrb[0].mxu0
      %4501 = vmatprep.mubr.f32.mxu0 0.0
      %4502 = vmatmul.mubr.f32.gmra.mrb[0].mxu0 %v4338
      %v4503 = vpop.f32.mrb[0].mxu0
      %v4504 = vadd.f32 %v4329, %v4503
      %v4505 = vpop.f32.mrb[0].mxu0
      %4506 = vmatprep.mubr.f32.mxu0 0.0
      %4507 = vmatmul.mubr.f32.gmra.mrb[0].mxu0 %v4341
      %v4508 = vpop.f32.mrb[0].mxu0
      %v4509 = vadd.f32 %v4329, %v4508
      %v4510 = vpop.f32.mrb[0].mxu0
      %4511 = vmatprep.mubr.f32.mxu0 0.0
      %4512 = vmatmul.mubr.f32.gmra.mrb[0].mxu0 %v4344
      %v4513 = vpop.f32.mrb[0].mxu0
      %v4514 = vadd.f32 %v4329, %v4513
      %v4515 = vpop.f32.mrb[0].mxu0
      %4516 = vmatprep.mubr.f32.mxu0 0.0
      %4517 = vmatmul.mubr.f32.gmra.mrb[0].mxu0 %v4347
      %v4518 = vpop.f32.mrb[0].mxu0
      %v4519 = vadd.f32 %v4329, %v4518
      %v4520 = vpop.f32.mrb[0].mxu0
      %4521 = vmatprep.mubr.f32.mxu0 0.0
      %4522 = vmatmul.mubr.f32.gmra.mrb[0].mxu0 %v4350
      %v4523 = vpop.f32.mrb[0].mxu0
      %v4524 = vadd.f32 %v4329, %v4523
      %v4525 = vpop.f32.mrb[0].mxu0
      %4526 = vmatprep.mubr.f32.mxu0 0.0
      %4527 = vmatmul.mubr.f32.gmra.mrb[0].mxu0 %v4353
      %v4528 = vpop.f32.mrb[0].mxu0
      %v4529 = vadd.f32 %v4329, %v4528
      %v4530 = vpop.f32.mrb[0].mxu0
      %4531 = vmatprep.mubr.f32.mxu0 0.0
      %4532 = vmatmul.mubr.f32.gmra.mrb[0].mxu0 %v4356
      %v4533 = vpop.f32.mrb[0].mxu0
      %v4534 = vadd.f32 %v4329, %v4533
      %v4535 = vpop.f32.mrb[0].mxu0
      %4536 = vmatprep.mubr.f32.mxu0 0.0
      %4537 = vmatmul.mubr.f32.gmra.mrb[0].mxu0 %v4359
      %v4538 = vpop.f32.mrb[0].mxu0
      %v4539 = vadd.f32 %v4329, %v4538
      %v4540 = vpop.f32.mrb[0].mxu0
      %4541 = vmatprep.mubr.f32.mxu0 0.0
      %4542 = vmatmul.mubr.f32.gmra.mrb[0].mxu0 %v4362
      %v4543 = vpop.f32.mrb[0].mxu0
      %v4544 = vadd.f32 %v4329, %v4543
      %v4545 = vpop.f32.mrb[0].mxu0
      %4546 = vmatprep.mubr.f32.mxu0 0.0
      %4547 = vmatmul.mubr.f32.gmra.mrb[0].mxu0 %v4365
      %v4548 = vpop.f32.mrb[0].mxu0
      %v4549 = vadd.f32 %v4329, %v4548
      %v4550 = vpop.f32.mrb[0].mxu0
      %4551 = vmatprep.mubr.f32.mxu0 0.0
      %4552 = vmatmul.mubr.f32.gmra.mrb[0].mxu0 %v4368
      %v4553 = vpop.f32.mrb[0].mxu0
      %v4554 = vadd.f32 %v4329, %v4553
      %v4555 = vpop.f32.mrb[0].mxu0
      %4556 = vmatprep.mubr.f32.mxu0 0.0
      %4557 = vmatmul.mubr.f32.gmra.mrb[0].mxu0 %v4371
      %v4558 = vpop.f32.mrb[0].mxu0
      %v4559 = vadd.f32 %v4329, %v4558
      %v4560 = vpop.f32.mrb[0].mxu0
      %4561 = vmatprep.mubr.f32.mxu0 0.0
      %4562 = vmatmul.mubr.f32.gmra.mrb[0].mxu0 %v4374
      %v4563 = vpop.f32.mrb[0].mxu0
      %v4564 = vadd.f32 %v4329, %v4563
      %v4565 = vpop.f32.mrb[0].mxu0
      %4566 = vmatprep.mubr.f32.mxu0 0.0
      %4567 = vmatmul.mubr.f32.gmra.mrb[0].mxu0 %v4377
      %v4568 = vpop.f32.mrb[0].mxu0
      %v4569 = vadd.f32 %v4329, %v4568
      %v4570 = vpop.f32.mrb[0].mxu0
      %4571 = vmatprep.mubr.f32.mxu0 0.0
      %4572 = vmatmul.mubr.f32.gmra.mrb[0].mxu0 %v4380
      %v4573 = vpop.f32.mrb[0].mxu0
      %v4574 = vadd.f32 %v4329, %v4573
      %v4575 = vpop.f32.mrb[0].mxu0
      %4576 = vmatprep.mubr.f32.mxu0 0.0
      %4577 = vmatmul.mubr.f32.gmra.mrb[0].mxu0 %v4383
      %v4578 = vpop.f32.mrb[0].mxu0
      %v4579 = vadd.f32 %v4329, %v4578
      %v4580 = vpop.f32.mrb[0].mxu0
      %4581 = vmatprep.mubr.f32.mxu0 0.0
      %4582 = vmatmul.mubr.f32.gmra.mrb[0].mxu0 %v4386
      %v4583 = vpop.f32.mrb[0].mxu0
      %v4584 = vadd.f32 %v4329, %v4583
      %v4585 = vpop.f32.mrb[0].mxu0
      %4586 = vmatprep.mubr.f32.mxu0 0.0
      %4587 = vmatmul.mubr.f32.gmra.mrb[0].mxu0 %v4389
      %v4588 = vpop.f32.mrb[0].mxu0
      %v4589 = vadd.f32 %v4329, %v4588
      %v4590 = vpop.f32.mrb[0].mxu0
      %4591 = vmatprep.mubr.f32.mxu0 0.0
      %4592 = vmatmul.mubr.f32.gmra.mrb[0].mxu0 %v4392
      %v4593 = vpop.f32.mrb[0].mxu0
      %v4594 = vadd.f32 %v4329, %v4593
      %v4595 = vpop.f32.mrb[0].mxu0
      %4596 = vmatprep.mubr.f32.mxu0 0.0
      %4597 = vmatmul.mubr.f32.gmra.mrb[0].mxu0 %v4395
      %v4598 = vpop.f32.mrb[0].mxu0
      %v4599 = vadd.f32 %v4329, %v4598
      %v4600 = vpop.f32.mrb[0].mxu0
      %4601 = vmatprep.mubr.f32.mxu0 0.0
      %4602 = vmatmul.mubr.f32.gmra.mrb[0].mxu0 %v4398
      %v4603 = vpop.f32.mrb[0].mxu0
      %v4604 = vadd.f32 %v4329, %v4603
      %v4605 = vpop.f32.mrb[0].mxu0
      %4606 = vmatprep.mubr.f32.mxu0 0.0
      %4607 = vmatmul.mubr.f32.gmra.mrb[0].mxu0 %v4401
      %v4608 = vpop.f32.mrb[0].mxu0
      %v4609 = vadd.f32 %v4329, %v4608
      %v4610 = vpop.f32.mrb[0].mxu0
      %4611 = vmatprep.mubr.f32.mxu0 0.0
      %4612 = vmatmul.mubr.f32.gmra.mrb[0].mxu0 %v4404
      %v4613 = vpop.f32.mrb[0].mxu0
      %v4614 = vadd.f32 %v4329, %v4613
      %v4615 = vpop.f32.mrb[0].mxu0
      %4616 = vmatprep.mubr.f32.mxu0 0.0
      %4617 = vmatmul.mubr.f32.gmra.mrb[0].mxu0 %v4407
      %v4618 = vpop.f32.mrb[0].mxu0
      %v4619 = vadd.f32 %v4329, %v4618
      %v4620 = vpop.f32.mrb[0].mxu0
      %4621 = vmatprep.mubr.f32.mxu0 0.0
      %4622 = vmatmul.mubr.f32.gmra.mrb[0].mxu0 %v4410
      %v4623 = vpop.f32.mrb[0].mxu0
      %v4624 = vadd.f32 %v4329, %v4623
      %v4625 = vpop.f32.mrb[0].mxu0
      %4626 = vmatprep.mubr.f32.mxu0 0.0
      %4627 = vmatmul.mubr.f32.gmra.mrb[0].mxu0 %v4413
      %v4628 = vpop.f32.mrb[0].mxu0
      %v4629 = vadd.f32 %v4329, %v4628
      %v4630 = vpop.f32.mrb[0].mxu0
      %4631 = vmatprep.mubr.f32.mxu0 0.0
      %4632 = vmatmul.mubr.f32.gmra.mrb[0].mxu0 %v4416
      %v4633 = vpop.f32.mrb[0].mxu0
      %v4634 = vadd.f32 %v4329, %v4633
      %v4635 = vpop.f32.mrb[0].mxu0
      %4636 = vmatprep.mubr.f32.mxu0 0.0
      %4637 = vmatmul.mubr.f32.gmra.mrb[0].mxu0 %v4419
      %v4638 = vpop.f32.mrb[0].mxu0
      %v4639 = vadd.f32 %v4329, %v4638
      %v4640 = vpop.f32.mrb[0].mxu0
      %4641 = vmatprep.mubr.f32.mxu0 0.0
      %4642 = vmatmul.mubr.f32.gmra.mrb[0].mxu0 %v4422
      %v4643 = vpop.f32.mrb[0].mxu0
      %v4644 = vadd.f32 %v4329, %v4643
      %v4645 = vpop.f32.mrb[0].mxu0
      %4646 = vmatprep.mubr.f32.mxu0 0.0
      %4647 = vmatmul.mubr.f32.gmra.mrb[0].mxu0 %v4425
      %v4648 = vpop.f32.mrb[0].mxu0
      %v4649 = vadd.f32 %v4329, %v4648
      %v4650 = vpop.f32.mrb[0].mxu0
      %4651 = vdwg.mxu0
      %v4652 = vsub.f32 0.0, %v4494
      %v4653 = vsub.f32 0.0, %v4499
      %v4654 = vsub.f32 0.0, %v4504
      %v4655 = vsub.f32 0.0, %v4509
      %v4656 = vsub.f32 0.0, %v4514
      %v4657 = vsub.f32 0.0, %v4519
      %v4658 = vsub.f32 0.0, %v4524
      %v4659 = vsub.f32 0.0, %v4529
      %v4660 = vsub.f32 0.0, %v4534
      %v4661 = vsub.f32 0.0, %v4539
      %v4662 = vsub.f32 0.0, %v4544
      %v4663 = vsub.f32 0.0, %v4549
      %v4664 = vsub.f32 0.0, %v4554
      %v4665 = vsub.f32 0.0, %v4559
      %v4666 = vsub.f32 0.0, %v4564
      %v4667 = vsub.f32 0.0, %v4569
      %v4668 = vsub.f32 0.0, %v4574
      %v4669 = vsub.f32 0.0, %v4579
      %v4670 = vsub.f32 0.0, %v4584
      %v4671 = vsub.f32 0.0, %v4589
      %v4672 = vsub.f32 0.0, %v4594
      %v4673 = vsub.f32 0.0, %v4599
      %v4674 = vsub.f32 0.0, %v4604
      %v4675 = vsub.f32 0.0, %v4609
      %v4676 = vsub.f32 0.0, %v4614
      %v4677 = vsub.f32 0.0, %v4619
      %v4678 = vsub.f32 0.0, %v4624
      %v4679 = vsub.f32 0.0, %v4629
      %v4680 = vsub.f32 0.0, %v4634
      %v4681 = vsub.f32 0.0, %v4639
      %v4682 = vsub.f32 0.0, %v4644
      %v4683 = vsub.f32 0.0, %v4649
      %v4684 = vmul.f32 %v4652, 1.442695
      %v4685 = vpow.pop %v4684
      %v4686 = vmul.f32 %v4653, 1.442695
      %v4687 = vpow.pop %v4686
      %v4688 = vmul.f32 %v4654, 1.442695
      %v4689 = vpow.pop %v4688
      %v4690 = vmul.f32 %v4655, 1.442695
      %v4691 = vpow.pop %v4690
      %v4692 = vmul.f32 %v4656, 1.442695
      %v4693 = vpow.pop %v4692
      %v4694 = vmul.f32 %v4657, 1.442695
      %v4695 = vpow.pop %v4694
      %v4696 = vmul.f32 %v4658, 1.442695
      %v4697 = vpow.pop %v4696
      %v4698 = vmul.f32 %v4659, 1.442695
      %v4699 = vpow.pop %v4698
      %v4700 = vmul.f32 %v4660, 1.442695
      %v4701 = vpow.pop %v4700
      %v4702 = vmul.f32 %v4661, 1.442695
      %v4703 = vpow.pop %v4702
      %v4704 = vmul.f32 %v4662, 1.442695
      %v4705 = vpow.pop %v4704
      %v4706 = vmul.f32 %v4663, 1.442695
      %v4707 = vpow.pop %v4706
      %v4708 = vmul.f32 %v4664, 1.442695
      %v4709 = vpow.pop %v4708
      %v4710 = vmul.f32 %v4665, 1.442695
      %v4711 = vpow.pop %v4710
      %v4712 = vmul.f32 %v4666, 1.442695
      %v4713 = vpow.pop %v4712
      %v4714 = vmul.f32 %v4667, 1.442695
      %v4715 = vpow.pop %v4714
      %v4716 = vmul.f32 %v4668, 1.442695
      %v4717 = vpow.pop %v4716
      %v4718 = vmul.f32 %v4669, 1.442695
      %v4719 = vpow.pop %v4718
      %v4720 = vmul.f32 %v4670, 1.442695
      %v4721 = vpow.pop %v4720
      %v4722 = vmul.f32 %v4671, 1.442695
      %v4723 = vpow.pop %v4722
      %v4724 = vmul.f32 %v4672, 1.442695
      %v4725 = vpow.pop %v4724
      %v4726 = vmul.f32 %v4673, 1.442695
      %v4727 = vpow.pop %v4726
      %v4728 = vmul.f32 %v4674, 1.442695
      %v4729 = vpow.pop %v4728
      %v4730 = vmul.f32 %v4675, 1.442695
      %v4731 = vpow.pop %v4730
      %v4732 = vmul.f32 %v4676, 1.442695
      %v4733 = vpow.pop %v4732
      %v4734 = vmul.f32 %v4677, 1.442695
      %v4735 = vpow.pop %v4734
      %v4736 = vmul.f32 %v4678, 1.442695
      %v4737 = vpow.pop %v4736
      %v4738 = vmul.f32 %v4679, 1.442695
      %v4739 = vpow.pop %v4738
      %v4740 = vmul.f32 %v4680, 1.442695
      %v4741 = vpow.pop %v4740
      %v4742 = vmul.f32 %v4681, 1.442695
      %v4743 = vpow.pop %v4742
      %v4744 = vmul.f32 %v4682, 1.442695
      %v4745 = vpow.pop %v4744
      %v4746 = vmul.f32 %v4683, 1.442695
      %v4747 = vpow.pop %v4746
      %v4748 = vadd.f32 %v4685, 1.0
      %v4749 = vadd.f32 %v4687, 1.0
      %v4750 = vadd.f32 %v4689, 1.0
      %v4751 = vadd.f32 %v4691, 1.0
      %v4752 = vadd.f32 %v4693, 1.0
      %v4753 = vadd.f32 %v4695, 1.0
      %v4754 = vadd.f32 %v4697, 1.0
      %v4755 = vadd.f32 %v4699, 1.0
      %v4756 = vadd.f32 %v4701, 1.0
      %v4757 = vadd.f32 %v4703, 1.0
      %v4758 = vadd.f32 %v4705, 1.0
      %v4759 = vadd.f32 %v4707, 1.0
      %v4760 = vadd.f32 %v4709, 1.0
      %v4761 = vadd.f32 %v4711, 1.0
      %v4762 = vadd.f32 %v4713, 1.0
      %v4763 = vadd.f32 %v4715, 1.0
      %v4764 = vadd.f32 %v4717, 1.0
      %v4765 = vadd.f32 %v4719, 1.0
      %v4766 = vadd.f32 %v4721, 1.0
      %v4767 = vadd.f32 %v4723, 1.0
      %v4768 = vadd.f32 %v4725, 1.0
      %v4769 = vadd.f32 %v4727, 1.0
      %v4770 = vadd.f32 %v4729, 1.0
      %v4771 = vadd.f32 %v4731, 1.0
      %v4772 = vadd.f32 %v4733, 1.0
      %v4773 = vadd.f32 %v4735, 1.0
      %v4774 = vadd.f32 %v4737, 1.0
      %v4775 = vadd.f32 %v4739, 1.0
      %v4776 = vadd.f32 %v4741, 1.0
      %v4777 = vadd.f32 %v4743, 1.0
      %v4778 = vadd.f32 %v4745, 1.0
      %v4779 = vadd.f32 %v4747, 1.0
      %v4780 = vrcp.pop %v4748
      %v4781 = vmul.f32 1.0, %v4780
      %v4782 = vrcp.pop %v4749
      %v4783 = vmul.f32 1.0, %v4782
      %v4784 = vrcp.pop %v4750
      %v4785 = vmul.f32 1.0, %v4784
      %v4786 = vrcp.pop %v4751
      %v4787 = vmul.f32 1.0, %v4786
      %v4788 = vrcp.pop %v4752
      %v4789 = vmul.f32 1.0, %v4788
      %v4790 = vrcp.pop %v4753
      %v4791 = vmul.f32 1.0, %v4790
      %v4792 = vrcp.pop %v4754
      %v4793 = vmul.f32 1.0, %v4792
      %v4794 = vrcp.pop %v4755
      %v4795 = vmul.f32 1.0, %v4794
      %v4796 = vrcp.pop %v4756
      %v4797 = vmul.f32 1.0, %v4796
      %v4798 = vrcp.pop %v4757
      %v4799 = vmul.f32 1.0, %v4798
      %v4800 = vrcp.pop %v4758
      %v4801 = vmul.f32 1.0, %v4800
      %v4802 = vrcp.pop %v4759
      %v4803 = vmul.f32 1.0, %v4802
      %v4804 = vrcp.pop %v4760
      %v4805 = vmul.f32 1.0, %v4804
      %v4806 = vrcp.pop %v4761
      %v4807 = vmul.f32 1.0, %v4806
      %v4808 = vrcp.pop %v4762
      %v4809 = vmul.f32 1.0, %v4808
      %v4810 = vrcp.pop %v4763
      %v4811 = vmul.f32 1.0, %v4810
      %v4812 = vrcp.pop %v4764
      %v4813 = vmul.f32 1.0, %v4812
      %v4814 = vrcp.pop %v4765
      %v4815 = vmul.f32 1.0, %v4814
      %v4816 = vrcp.pop %v4766
      %v4817 = vmul.f32 1.0, %v4816
      %v4818 = vrcp.pop %v4767
      %v4819 = vmul.f32 1.0, %v4818
      %v4820 = vrcp.pop %v4768
      %v4821 = vmul.f32 1.0, %v4820
      %v4822 = vrcp.pop %v4769
      %v4823 = vmul.f32 1.0, %v4822
      %v4824 = vrcp.pop %v4770
      %v4825 = vmul.f32 1.0, %v4824
      %v4826 = vrcp.pop %v4771
      %v4827 = vmul.f32 1.0, %v4826
      %v4828 = vrcp.pop %v4772
      %v4829 = vmul.f32 1.0, %v4828
      %v4830 = vrcp.pop %v4773
      %v4831 = vmul.f32 1.0, %v4830
      %v4832 = vrcp.pop %v4774
      %v4833 = vmul.f32 1.0, %v4832
      %v4834 = vrcp.pop %v4775
      %v4835 = vmul.f32 1.0, %v4834
      %v4836 = vrcp.pop %v4776
      %v4837 = vmul.f32 1.0, %v4836
      %v4838 = vrcp.pop %v4777
      %v4839 = vmul.f32 1.0, %v4838
      %v4840 = vrcp.pop %v4778
      %v4841 = vmul.f32 1.0, %v4840
      %v4842 = vrcp.pop %v4779
      %v4843 = vmul.f32 1.0, %v4842
      %4876 = vrot.lane.b32.xlu0 %v4781, 96
      %v4877 = vpop.permute.xlu0 %4876
      %4878 = vrot.lane.b32.xlu0 %v4783, 96
      %v4879 = vpop.permute.xlu0 %4878
      %4880 = vrot.lane.b32.xlu0 %v4785, 96
      %v4881 = vpop.permute.xlu0 %4880
      %4882 = vrot.lane.b32.xlu0 %v4787, 96
      %v4883 = vpop.permute.xlu0 %4882
      %4884 = vrot.lane.b32.xlu0 %v4789, 96
      %v4885 = vpop.permute.xlu0 %4884
      %4886 = vrot.lane.b32.xlu0 %v4791, 96
      %v4887 = vpop.permute.xlu0 %4886
      %4888 = vrot.lane.b32.xlu0 %v4793, 96
      %v4889 = vpop.permute.xlu0 %4888
      %4890 = vrot.lane.b32.xlu0 %v4795, 96
      %v4891 = vpop.permute.xlu0 %4890
      %4892 = vrot.lane.b32.xlu0 %v4797, 96
      %v4893 = vpop.permute.xlu0 %4892
      %4894 = vrot.lane.b32.xlu0 %v4799, 96
      %v4895 = vpop.permute.xlu0 %4894
      %4896 = vrot.lane.b32.xlu0 %v4801, 96
      %v4897 = vpop.permute.xlu0 %4896
      %4898 = vrot.lane.b32.xlu0 %v4803, 96
      %v4899 = vpop.permute.xlu0 %4898
      %4900 = vrot.lane.b32.xlu0 %v4805, 96
      %v4901 = vpop.permute.xlu0 %4900
      %4902 = vrot.lane.b32.xlu0 %v4807, 96
      %v4903 = vpop.permute.xlu0 %4902
      %4904 = vrot.lane.b32.xlu0 %v4809, 96
      %v4905 = vpop.permute.xlu0 %4904
      %4906 = vrot.lane.b32.xlu0 %v4811, 96
      %v4907 = vpop.permute.xlu0 %4906
      %4908 = vrot.lane.b32.xlu0 %v4813, 96
      %v4909 = vpop.permute.xlu0 %4908
      %4910 = vrot.lane.b32.xlu0 %v4815, 96
      %v4911 = vpop.permute.xlu0 %4910
      %4912 = vrot.lane.b32.xlu0 %v4817, 96
      %v4913 = vpop.permute.xlu0 %4912
      %4914 = vrot.lane.b32.xlu0 %v4819, 96
      %v4915 = vpop.permute.xlu0 %4914
      %4916 = vrot.lane.b32.xlu0 %v4821, 96
      %v4917 = vpop.permute.xlu0 %4916
      %4918 = vrot.lane.b32.xlu0 %v4823, 96
      %v4919 = vpop.permute.xlu0 %4918
      %4920 = vrot.lane.b32.xlu0 %v4825, 96
      %v4921 = vpop.permute.xlu0 %4920
      %4922 = vrot.lane.b32.xlu0 %v4827, 96
      %v4923 = vpop.permute.xlu0 %4922
      %4924 = vrot.lane.b32.xlu0 %v4829, 96
      %v4925 = vpop.permute.xlu0 %4924
      %4926 = vrot.lane.b32.xlu0 %v4831, 96
      %v4927 = vpop.permute.xlu0 %4926
      %4928 = vrot.lane.b32.xlu0 %v4833, 96
      %v4929 = vpop.permute.xlu0 %4928
      %4930 = vrot.lane.b32.xlu0 %v4835, 96
      %v4931 = vpop.permute.xlu0 %4930
      %4932 = vrot.lane.b32.xlu0 %v4837, 96
      %v4933 = vpop.permute.xlu0 %4932
      %4934 = vrot.lane.b32.xlu0 %v4839, 96
      %v4935 = vpop.permute.xlu0 %4934
      %4936 = vrot.lane.b32.xlu0 %v4841, 96
      %v4937 = vpop.permute.xlu0 %4936
      %4938 = vrot.lane.b32.xlu0 %v4843, 96
      %v4939 = vpop.permute.xlu0 %4938
      %v4972 = vmax.f32 %v4781, %v4877
      %v4973 = vmax.f32 %v4783, %v4879
      %v4974 = vmax.f32 %v4785, %v4881
      %v4975 = vmax.f32 %v4787, %v4883
      %v4976 = vmax.f32 %v4789, %v4885
      %v4977 = vmax.f32 %v4791, %v4887
      %v4978 = vmax.f32 %v4793, %v4889
      %v4979 = vmax.f32 %v4795, %v4891
      %v4980 = vmax.f32 %v4797, %v4893
      %v4981 = vmax.f32 %v4799, %v4895
      %v4982 = vmax.f32 %v4801, %v4897
      %v4983 = vmax.f32 %v4803, %v4899
      %v4984 = vmax.f32 %v4805, %v4901
      %v4985 = vmax.f32 %v4807, %v4903
      %v4986 = vmax.f32 %v4809, %v4905
      %v4987 = vmax.f32 %v4811, %v4907
      %v4988 = vmax.f32 %v4813, %v4909
      %v4989 = vmax.f32 %v4815, %v4911
      %v4990 = vmax.f32 %v4817, %v4913
      %v4991 = vmax.f32 %v4819, %v4915
      %v4992 = vmax.f32 %v4821, %v4917
      %v4993 = vmax.f32 %v4823, %v4919
      %v4994 = vmax.f32 %v4825, %v4921
      %v4995 = vmax.f32 %v4827, %v4923
      %v4996 = vmax.f32 %v4829, %v4925
      %v4997 = vmax.f32 %v4831, %v4927
      %v4998 = vmax.f32 %v4833, %v4929
      %v4999 = vmax.f32 %v4835, %v4931
      %v5000 = vmax.f32 %v4837, %v4933
      %v5001 = vmax.f32 %v4839, %v4935
      %v5002 = vmax.f32 %v4841, %v4937
      %v5003 = vmax.f32 %v4843, %v4939
      %5004 = vrot.lane.b32.xlu0 %v4781, 32
      %v5005 = vpop.permute.xlu0 %5004
      %5006 = vrot.lane.b32.xlu0 %v4783, 32
      %v5007 = vpop.permute.xlu0 %5006
      %5008 = vrot.lane.b32.xlu0 %v4785, 32
      %v5009 = vpop.permute.xlu0 %5008
      %5010 = vrot.lane.b32.xlu0 %v4787, 32
      %v5011 = vpop.permute.xlu0 %5010
      %5012 = vrot.lane.b32.xlu0 %v4789, 32
      %v5013 = vpop.permute.xlu0 %5012
      %5014 = vrot.lane.b32.xlu0 %v4791, 32
      %v5015 = vpop.permute.xlu0 %5014
      %5016 = vrot.lane.b32.xlu0 %v4793, 32
      %v5017 = vpop.permute.xlu0 %5016
      %5018 = vrot.lane.b32.xlu0 %v4795, 32
      %v5019 = vpop.permute.xlu0 %5018
      %5020 = vrot.lane.b32.xlu0 %v4797, 32
      %v5021 = vpop.permute.xlu0 %5020
      %5022 = vrot.lane.b32.xlu0 %v4799, 32
      %v5023 = vpop.permute.xlu0 %5022
      %5024 = vrot.lane.b32.xlu0 %v4801, 32
      %v5025 = vpop.permute.xlu0 %5024
      %5026 = vrot.lane.b32.xlu0 %v4803, 32
      %v5027 = vpop.permute.xlu0 %5026
      %5028 = vrot.lane.b32.xlu0 %v4805, 32
      %v5029 = vpop.permute.xlu0 %5028
      %5030 = vrot.lane.b32.xlu0 %v4807, 32
      %v5031 = vpop.permute.xlu0 %5030
      %5032 = vrot.lane.b32.xlu0 %v4809, 32
      %v5033 = vpop.permute.xlu0 %5032
      %5034 = vrot.lane.b32.xlu0 %v4811, 32
      %v5035 = vpop.permute.xlu0 %5034
      %5036 = vrot.lane.b32.xlu0 %v4813, 32
      %v5037 = vpop.permute.xlu0 %5036
      %5038 = vrot.lane.b32.xlu0 %v4815, 32
      %v5039 = vpop.permute.xlu0 %5038
      %5040 = vrot.lane.b32.xlu0 %v4817, 32
      %v5041 = vpop.permute.xlu0 %5040
      %5042 = vrot.lane.b32.xlu0 %v4819, 32
      %v5043 = vpop.permute.xlu0 %5042
      %5044 = vrot.lane.b32.xlu0 %v4821, 32
      %v5045 = vpop.permute.xlu0 %5044
      %5046 = vrot.lane.b32.xlu0 %v4823, 32
      %v5047 = vpop.permute.xlu0 %5046
      %5048 = vrot.lane.b32.xlu0 %v4825, 32
      %v5049 = vpop.permute.xlu0 %5048
      %5050 = vrot.lane.b32.xlu0 %v4827, 32
      %v5051 = vpop.permute.xlu0 %5050
      %5052 = vrot.lane.b32.xlu0 %v4829, 32
      %v5053 = vpop.permute.xlu0 %5052
      %5054 = vrot.lane.b32.xlu0 %v4831, 32
      %v5055 = vpop.permute.xlu0 %5054
      %5056 = vrot.lane.b32.xlu0 %v4833, 32
      %v5057 = vpop.permute.xlu0 %5056
      %5058 = vrot.lane.b32.xlu0 %v4835, 32
      %v5059 = vpop.permute.xlu0 %5058
      %5060 = vrot.lane.b32.xlu0 %v4837, 32
      %v5061 = vpop.permute.xlu0 %5060
      %5062 = vrot.lane.b32.xlu0 %v4839, 32
      %v5063 = vpop.permute.xlu0 %5062
      %5064 = vrot.lane.b32.xlu0 %v4841, 32
      %v5065 = vpop.permute.xlu0 %5064
      %5066 = vrot.lane.b32.xlu0 %v4843, 32
      %v5067 = vpop.permute.xlu0 %5066
      %v5100 = vmax.f32 %v4972, %v5005
      %v5101 = vmax.f32 %v4973, %v5007
      %v5102 = vmax.f32 %v4974, %v5009
      %v5103 = vmax.f32 %v4975, %v5011
      %v5104 = vmax.f32 %v4976, %v5013
      %v5105 = vmax.f32 %v4977, %v5015
      %v5106 = vmax.f32 %v4978, %v5017
      %v5107 = vmax.f32 %v4979, %v5019
      %v5108 = vmax.f32 %v4980, %v5021
      %v5109 = vmax.f32 %v4981, %v5023
      %v5110 = vmax.f32 %v4982, %v5025
      %v5111 = vmax.f32 %v4983, %v5027
      %v5112 = vmax.f32 %v4984, %v5029
      %v5113 = vmax.f32 %v4985, %v5031
      %v5114 = vmax.f32 %v4986, %v5033
      %v5115 = vmax.f32 %v4987, %v5035
      %v5116 = vmax.f32 %v4988, %v5037
      %v5117 = vmax.f32 %v4989, %v5039
      %v5118 = vmax.f32 %v4990, %v5041
      %v5119 = vmax.f32 %v4991, %v5043
      %v5120 = vmax.f32 %v4992, %v5045
      %v5121 = vmax.f32 %v4993, %v5047
      %v5122 = vmax.f32 %v4994, %v5049
      %v5123 = vmax.f32 %v4995, %v5051
      %v5124 = vmax.f32 %v4996, %v5053
      %v5125 = vmax.f32 %v4997, %v5055
      %v5126 = vmax.f32 %v4998, %v5057
      %v5127 = vmax.f32 %v4999, %v5059
      %v5128 = vmax.f32 %v5000, %v5061
      %v5129 = vmax.f32 %v5001, %v5063
      %v5130 = vmax.f32 %v5002, %v5065
      %v5131 = vmax.f32 %v5003, %v5067
      %v5132 = vsub.f32 %v4781, %v5100
      %v5133 = vsub.f32 %v4783, %v5101
      %v5134 = vsub.f32 %v4785, %v5102
      %v5135 = vsub.f32 %v4787, %v5103
      %v5136 = vsub.f32 %v4789, %v5104
      %v5137 = vsub.f32 %v4791, %v5105
      %v5138 = vsub.f32 %v4793, %v5106
      %v5139 = vsub.f32 %v4795, %v5107
      %v5140 = vsub.f32 %v4797, %v5108
      %v5141 = vsub.f32 %v4799, %v5109
      %v5142 = vsub.f32 %v4801, %v5110
      %v5143 = vsub.f32 %v4803, %v5111
      %v5144 = vsub.f32 %v4805, %v5112
      %v5145 = vsub.f32 %v4807, %v5113
      %v5146 = vsub.f32 %v4809, %v5114
      %v5147 = vsub.f32 %v4811, %v5115
      %v5148 = vsub.f32 %v4813, %v5116
      %v5149 = vsub.f32 %v4815, %v5117
      %v5150 = vsub.f32 %v4817, %v5118
      %v5151 = vsub.f32 %v4819, %v5119
      %v5152 = vsub.f32 %v4821, %v5120
      %v5153 = vsub.f32 %v4823, %v5121
      %v5154 = vsub.f32 %v4825, %v5122
      %v5155 = vsub.f32 %v4827, %v5123
      %v5156 = vsub.f32 %v4829, %v5124
      %v5157 = vsub.f32 %v4831, %v5125
      %v5158 = vsub.f32 %v4833, %v5126
      %v5159 = vsub.f32 %v4835, %v5127
      %v5160 = vsub.f32 %v4837, %v5128
      %v5161 = vsub.f32 %v4839, %v5129
      %v5162 = vsub.f32 %v4841, %v5130
      %v5163 = vsub.f32 %v4843, %v5131
      %v5164 = vmul.f32 %v5132, 1.442695
      %v5165 = vpow.pop %v5164
      %v5166 = vmul.f32 %v5133, 1.442695
      %v5167 = vpow.pop %v5166
      %v5168 = vmul.f32 %v5134, 1.442695
      %v5169 = vpow.pop %v5168
      %v5170 = vmul.f32 %v5135, 1.442695
      %v5171 = vpow.pop %v5170
      %v5172 = vmul.f32 %v5136, 1.442695
      %v5173 = vpow.pop %v5172
      %v5174 = vmul.f32 %v5137, 1.442695
      %v5175 = vpow.pop %v5174
      %v5176 = vmul.f32 %v5138, 1.442695
      %v5177 = vpow.pop %v5176
      %v5178 = vmul.f32 %v5139, 1.442695
      %v5179 = vpow.pop %v5178
      %v5180 = vmul.f32 %v5140, 1.442695
      %v5181 = vpow.pop %v5180
      %v5182 = vmul.f32 %v5141, 1.442695
      %v5183 = vpow.pop %v5182
      %v5184 = vmul.f32 %v5142, 1.442695
      %v5185 = vpow.pop %v5184
      %v5186 = vmul.f32 %v5143, 1.442695
      %v5187 = vpow.pop %v5186
      %v5188 = vmul.f32 %v5144, 1.442695
      %v5189 = vpow.pop %v5188
      %v5190 = vmul.f32 %v5145, 1.442695
      %v5191 = vpow.pop %v5190
      %v5192 = vmul.f32 %v5146, 1.442695
      %v5193 = vpow.pop %v5192
      %v5194 = vmul.f32 %v5147, 1.442695
      %v5195 = vpow.pop %v5194
      %v5196 = vmul.f32 %v5148, 1.442695
      %v5197 = vpow.pop %v5196
      %v5198 = vmul.f32 %v5149, 1.442695
      %v5199 = vpow.pop %v5198
      %v5200 = vmul.f32 %v5150, 1.442695
      %v5201 = vpow.pop %v5200
      %v5202 = vmul.f32 %v5151, 1.442695
      %v5203 = vpow.pop %v5202
      %v5204 = vmul.f32 %v5152, 1.442695
      %v5205 = vpow.pop %v5204
      %v5206 = vmul.f32 %v5153, 1.442695
      %v5207 = vpow.pop %v5206
      %v5208 = vmul.f32 %v5154, 1.442695
      %v5209 = vpow.pop %v5208
      %v5210 = vmul.f32 %v5155, 1.442695
      %v5211 = vpow.pop %v5210
      %v5212 = vmul.f32 %v5156, 1.442695
      %v5213 = vpow.pop %v5212
      %v5214 = vmul.f32 %v5157, 1.442695
      %v5215 = vpow.pop %v5214
      %v5216 = vmul.f32 %v5158, 1.442695
      %v5217 = vpow.pop %v5216
      %v5218 = vmul.f32 %v5159, 1.442695
      %v5219 = vpow.pop %v5218
      %v5220 = vmul.f32 %v5160, 1.442695
      %v5221 = vpow.pop %v5220
      %v5222 = vmul.f32 %v5161, 1.442695
      %v5223 = vpow.pop %v5222
      %v5224 = vmul.f32 %v5162, 1.442695
      %v5225 = vpow.pop %v5224
      %v5226 = vmul.f32 %v5163, 1.442695
      %v5227 = vpow.pop %v5226
      %5260 = vrot.lane.b32.xlu0 %v5100, 32
      %v5261 = vpop.permute.xlu0 %5260
      %5262 = vrot.lane.b32.xlu0 %v5101, 32
      %v5263 = vpop.permute.xlu0 %5262
      %5264 = vrot.lane.b32.xlu0 %v5102, 32
      %v5265 = vpop.permute.xlu0 %5264
      %5266 = vrot.lane.b32.xlu0 %v5103, 32
      %v5267 = vpop.permute.xlu0 %5266
      %5268 = vrot.lane.b32.xlu0 %v5104, 32
      %v5269 = vpop.permute.xlu0 %5268
      %5270 = vrot.lane.b32.xlu0 %v5105, 32
      %v5271 = vpop.permute.xlu0 %5270
      %5272 = vrot.lane.b32.xlu0 %v5106, 32
      %v5273 = vpop.permute.xlu0 %5272
      %5274 = vrot.lane.b32.xlu0 %v5107, 32
      %v5275 = vpop.permute.xlu0 %5274
      %5276 = vrot.lane.b32.xlu0 %v5108, 32
      %v5277 = vpop.permute.xlu0 %5276
      %5278 = vrot.lane.b32.xlu0 %v5109, 32
      %v5279 = vpop.permute.xlu0 %5278
      %5280 = vrot.lane.b32.xlu0 %v5110, 32
      %v5281 = vpop.permute.xlu0 %5280
      %5282 = vrot.lane.b32.xlu0 %v5111, 32
      %v5283 = vpop.permute.xlu0 %5282
      %5284 = vrot.lane.b32.xlu0 %v5112, 32
      %v5285 = vpop.permute.xlu0 %5284
      %5286 = vrot.lane.b32.xlu0 %v5113, 32
      %v5287 = vpop.permute.xlu0 %5286
      %5288 = vrot.lane.b32.xlu0 %v5114, 32
      %v5289 = vpop.permute.xlu0 %5288
      %5290 = vrot.lane.b32.xlu0 %v5115, 32
      %v5291 = vpop.permute.xlu0 %5290
      %5292 = vrot.lane.b32.xlu0 %v5116, 32
      %v5293 = vpop.permute.xlu0 %5292
      %5294 = vrot.lane.b32.xlu0 %v5117, 32
      %v5295 = vpop.permute.xlu0 %5294
      %5296 = vrot.lane.b32.xlu0 %v5118, 32
      %v5297 = vpop.permute.xlu0 %5296
      %5298 = vrot.lane.b32.xlu0 %v5119, 32
      %v5299 = vpop.permute.xlu0 %5298
      %5300 = vrot.lane.b32.xlu0 %v5120, 32
      %v5301 = vpop.permute.xlu0 %5300
      %5302 = vrot.lane.b32.xlu0 %v5121, 32
      %v5303 = vpop.permute.xlu0 %5302
      %5304 = vrot.lane.b32.xlu0 %v5122, 32
      %v5305 = vpop.permute.xlu0 %5304
      %5306 = vrot.lane.b32.xlu0 %v5123, 32
      %v5307 = vpop.permute.xlu0 %5306
      %5308 = vrot.lane.b32.xlu0 %v5124, 32
      %v5309 = vpop.permute.xlu0 %5308
      %5310 = vrot.lane.b32.xlu0 %v5125, 32
      %v5311 = vpop.permute.xlu0 %5310
      %5312 = vrot.lane.b32.xlu0 %v5126, 32
      %v5313 = vpop.permute.xlu0 %5312
      %5314 = vrot.lane.b32.xlu0 %v5127, 32
      %v5315 = vpop.permute.xlu0 %5314
      %5316 = vrot.lane.b32.xlu0 %v5128, 32
      %v5317 = vpop.permute.xlu0 %5316
      %5318 = vrot.lane.b32.xlu0 %v5129, 32
      %v5319 = vpop.permute.xlu0 %5318
      %5320 = vrot.lane.b32.xlu0 %v5130, 32
      %v5321 = vpop.permute.xlu0 %5320
      %5322 = vrot.lane.b32.xlu0 %v5131, 32
      %v5323 = vpop.permute.xlu0 %5322
      %v5356 = vsub.f32 %v4781, %v5261
      %v5357 = vsub.f32 %v4783, %v5263
      %v5358 = vsub.f32 %v4785, %v5265
      %v5359 = vsub.f32 %v4787, %v5267
      %v5360 = vsub.f32 %v4789, %v5269
      %v5361 = vsub.f32 %v4791, %v5271
      %v5362 = vsub.f32 %v4793, %v5273
      %v5363 = vsub.f32 %v4795, %v5275
      %v5364 = vsub.f32 %v4797, %v5277
      %v5365 = vsub.f32 %v4799, %v5279
      %v5366 = vsub.f32 %v4801, %v5281
      %v5367 = vsub.f32 %v4803, %v5283
      %v5368 = vsub.f32 %v4805, %v5285
      %v5369 = vsub.f32 %v4807, %v5287
      %v5370 = vsub.f32 %v4809, %v5289
      %v5371 = vsub.f32 %v4811, %v5291
      %v5372 = vsub.f32 %v4813, %v5293
      %v5373 = vsub.f32 %v4815, %v5295
      %v5374 = vsub.f32 %v4817, %v5297
      %v5375 = vsub.f32 %v4819, %v5299
      %v5376 = vsub.f32 %v4821, %v5301
      %v5377 = vsub.f32 %v4823, %v5303
      %v5378 = vsub.f32 %v4825, %v5305
      %v5379 = vsub.f32 %v4827, %v5307
      %v5380 = vsub.f32 %v4829, %v5309
      %v5381 = vsub.f32 %v4831, %v5311
      %v5382 = vsub.f32 %v4833, %v5313
      %v5383 = vsub.f32 %v4835, %v5315
      %v5384 = vsub.f32 %v4837, %v5317
      %v5385 = vsub.f32 %v4839, %v5319
      %v5386 = vsub.f32 %v4841, %v5321
      %v5387 = vsub.f32 %v4843, %v5323
      %v5388 = vmul.f32 %v5356, 1.442695
      %v5389 = vpow.pop %v5388
      %v5390 = vmul.f32 %v5357, 1.442695
      %v5391 = vpow.pop %v5390
      %v5392 = vmul.f32 %v5358, 1.442695
      %v5393 = vpow.pop %v5392
      %v5394 = vmul.f32 %v5359, 1.442695
      %v5395 = vpow.pop %v5394
      %v5396 = vmul.f32 %v5360, 1.442695
      %v5397 = vpow.pop %v5396
      %v5398 = vmul.f32 %v5361, 1.442695
      %v5399 = vpow.pop %v5398
      %v5400 = vmul.f32 %v5362, 1.442695
      %v5401 = vpow.pop %v5400
      %v5402 = vmul.f32 %v5363, 1.442695
      %v5403 = vpow.pop %v5402
      %v5404 = vmul.f32 %v5364, 1.442695
      %v5405 = vpow.pop %v5404
      %v5406 = vmul.f32 %v5365, 1.442695
      %v5407 = vpow.pop %v5406
      %v5408 = vmul.f32 %v5366, 1.442695
      %v5409 = vpow.pop %v5408
      %v5410 = vmul.f32 %v5367, 1.442695
      %v5411 = vpow.pop %v5410
      %v5412 = vmul.f32 %v5368, 1.442695
      %v5413 = vpow.pop %v5412
      %v5414 = vmul.f32 %v5369, 1.442695
      %v5415 = vpow.pop %v5414
      %v5416 = vmul.f32 %v5370, 1.442695
      %v5417 = vpow.pop %v5416
      %v5418 = vmul.f32 %v5371, 1.442695
      %v5419 = vpow.pop %v5418
      %v5420 = vmul.f32 %v5372, 1.442695
      %v5421 = vpow.pop %v5420
      %v5422 = vmul.f32 %v5373, 1.442695
      %v5423 = vpow.pop %v5422
      %v5424 = vmul.f32 %v5374, 1.442695
      %v5425 = vpow.pop %v5424
      %v5426 = vmul.f32 %v5375, 1.442695
      %v5427 = vpow.pop %v5426
      %v5428 = vmul.f32 %v5376, 1.442695
      %v5429 = vpow.pop %v5428
      %v5430 = vmul.f32 %v5377, 1.442695
      %v5431 = vpow.pop %v5430
      %v5432 = vmul.f32 %v5378, 1.442695
      %v5433 = vpow.pop %v5432
      %v5434 = vmul.f32 %v5379, 1.442695
      %v5435 = vpow.pop %v5434
      %v5436 = vmul.f32 %v5380, 1.442695
      %v5437 = vpow.pop %v5436
      %v5438 = vmul.f32 %v5381, 1.442695
      %v5439 = vpow.pop %v5438
      %v5440 = vmul.f32 %v5382, 1.442695
      %v5441 = vpow.pop %v5440
      %v5442 = vmul.f32 %v5383, 1.442695
      %v5443 = vpow.pop %v5442
      %v5444 = vmul.f32 %v5384, 1.442695
      %v5445 = vpow.pop %v5444
      %v5446 = vmul.f32 %v5385, 1.442695
      %v5447 = vpow.pop %v5446
      %v5448 = vmul.f32 %v5386, 1.442695
      %v5449 = vpow.pop %v5448
      %v5450 = vmul.f32 %v5387, 1.442695
      %v5451 = vpow.pop %v5450
      %5452 = vrot.lane.b32.xlu0 %v5100, 96
      %v5453 = vpop.permute.xlu0 %5452
      %5454 = vrot.lane.b32.xlu0 %v5101, 96
      %v5455 = vpop.permute.xlu0 %5454
      %5456 = vrot.lane.b32.xlu0 %v5102, 96
      %v5457 = vpop.permute.xlu0 %5456
      %5458 = vrot.lane.b32.xlu0 %v5103, 96
      %v5459 = vpop.permute.xlu0 %5458
      %5460 = vrot.lane.b32.xlu0 %v5104, 96
      %v5461 = vpop.permute.xlu0 %5460
      %5462 = vrot.lane.b32.xlu0 %v5105, 96
      %v5463 = vpop.permute.xlu0 %5462
      %5464 = vrot.lane.b32.xlu0 %v5106, 96
      %v5465 = vpop.permute.xlu0 %5464
      %5466 = vrot.lane.b32.xlu0 %v5107, 96
      %v5467 = vpop.permute.xlu0 %5466
      %5468 = vrot.lane.b32.xlu0 %v5108, 96
      %v5469 = vpop.permute.xlu0 %5468
      %5470 = vrot.lane.b32.xlu0 %v5109, 96
      %v5471 = vpop.permute.xlu0 %5470
      %5472 = vrot.lane.b32.xlu0 %v5110, 96
      %v5473 = vpop.permute.xlu0 %5472
      %5474 = vrot.lane.b32.xlu0 %v5111, 96
      %v5475 = vpop.permute.xlu0 %5474
      %5476 = vrot.lane.b32.xlu0 %v5112, 96
      %v5477 = vpop.permute.xlu0 %5476
      %5478 = vrot.lane.b32.xlu0 %v5113, 96
      %v5479 = vpop.permute.xlu0 %5478
      %5480 = vrot.lane.b32.xlu0 %v5114, 96
      %v5481 = vpop.permute.xlu0 %5480
      %5482 = vrot.lane.b32.xlu0 %v5115, 96
      %v5483 = vpop.permute.xlu0 %5482
      %5484 = vrot.lane.b32.xlu0 %v5116, 96
      %v5485 = vpop.permute.xlu0 %5484
      %5486 = vrot.lane.b32.xlu0 %v5117, 96
      %v5487 = vpop.permute.xlu0 %5486
      %5488 = vrot.lane.b32.xlu0 %v5118, 96
      %v5489 = vpop.permute.xlu0 %5488
      %5490 = vrot.lane.b32.xlu0 %v5119, 96
      %v5491 = vpop.permute.xlu0 %5490
      %5492 = vrot.lane.b32.xlu0 %v5120, 96
      %v5493 = vpop.permute.xlu0 %5492
      %5494 = vrot.lane.b32.xlu0 %v5121, 96
      %v5495 = vpop.permute.xlu0 %5494
      %5496 = vrot.lane.b32.xlu0 %v5122, 96
      %v5497 = vpop.permute.xlu0 %5496
      %5498 = vrot.lane.b32.xlu0 %v5123, 96
      %v5499 = vpop.permute.xlu0 %5498
      %5500 = vrot.lane.b32.xlu0 %v5124, 96
      %v5501 = vpop.permute.xlu0 %5500
      %5502 = vrot.lane.b32.xlu0 %v5125, 96
      %v5503 = vpop.permute.xlu0 %5502
      %5504 = vrot.lane.b32.xlu0 %v5126, 96
      %v5505 = vpop.permute.xlu0 %5504
      %5506 = vrot.lane.b32.xlu0 %v5127, 96
      %v5507 = vpop.permute.xlu0 %5506
      %5508 = vrot.lane.b32.xlu0 %v5128, 96
      %v5509 = vpop.permute.xlu0 %5508
      %5510 = vrot.lane.b32.xlu0 %v5129, 96
      %v5511 = vpop.permute.xlu0 %5510
      %5512 = vrot.lane.b32.xlu0 %v5130, 96
      %v5513 = vpop.permute.xlu0 %5512
      %5514 = vrot.lane.b32.xlu0 %v5131, 96
      %v5515 = vpop.permute.xlu0 %5514
      %v5548 = vsub.f32 %v4781, %v5453
      %v5549 = vsub.f32 %v4783, %v5455
      %v5550 = vsub.f32 %v4785, %v5457
      %v5551 = vsub.f32 %v4787, %v5459
      %v5552 = vsub.f32 %v4789, %v5461
      %v5553 = vsub.f32 %v4791, %v5463
      %v5554 = vsub.f32 %v4793, %v5465
      %v5555 = vsub.f32 %v4795, %v5467
      %v5556 = vsub.f32 %v4797, %v5469
      %v5557 = vsub.f32 %v4799, %v5471
      %v5558 = vsub.f32 %v4801, %v5473
      %v5559 = vsub.f32 %v4803, %v5475
      %v5560 = vsub.f32 %v4805, %v5477
      %v5561 = vsub.f32 %v4807, %v5479
      %v5562 = vsub.f32 %v4809, %v5481
      %v5563 = vsub.f32 %v4811, %v5483
      %v5564 = vsub.f32 %v4813, %v5485
      %v5565 = vsub.f32 %v4815, %v5487
      %v5566 = vsub.f32 %v4817, %v5489
      %v5567 = vsub.f32 %v4819, %v5491
      %v5568 = vsub.f32 %v4821, %v5493
      %v5569 = vsub.f32 %v4823, %v5495
      %v5570 = vsub.f32 %v4825, %v5497
      %v5571 = vsub.f32 %v4827, %v5499
      %v5572 = vsub.f32 %v4829, %v5501
      %v5573 = vsub.f32 %v4831, %v5503
      %v5574 = vsub.f32 %v4833, %v5505
      %v5575 = vsub.f32 %v4835, %v5507
      %v5576 = vsub.f32 %v4837, %v5509
      %v5577 = vsub.f32 %v4839, %v5511
      %v5578 = vsub.f32 %v4841, %v5513
      %v5579 = vsub.f32 %v4843, %v5515
      %v5580 = vmul.f32 %v5548, 1.442695
      %v5581 = vpow.pop %v5580
      %v5582 = vmul.f32 %v5549, 1.442695
      %v5583 = vpow.pop %v5582
      %v5584 = vmul.f32 %v5550, 1.442695
      %v5585 = vpow.pop %v5584
      %v5586 = vmul.f32 %v5551, 1.442695
      %v5587 = vpow.pop %v5586
      %v5588 = vmul.f32 %v5552, 1.442695
      %v5589 = vpow.pop %v5588
      %v5590 = vmul.f32 %v5553, 1.442695
      %v5591 = vpow.pop %v5590
      %v5592 = vmul.f32 %v5554, 1.442695
      %v5593 = vpow.pop %v5592
      %v5594 = vmul.f32 %v5555, 1.442695
      %v5595 = vpow.pop %v5594
      %v5596 = vmul.f32 %v5556, 1.442695
      %v5597 = vpow.pop %v5596
      %v5598 = vmul.f32 %v5557, 1.442695
      %v5599 = vpow.pop %v5598
      %v5600 = vmul.f32 %v5558, 1.442695
      %v5601 = vpow.pop %v5600
      %v5602 = vmul.f32 %v5559, 1.442695
      %v5603 = vpow.pop %v5602
      %v5604 = vmul.f32 %v5560, 1.442695
      %v5605 = vpow.pop %v5604
      %v5606 = vmul.f32 %v5561, 1.442695
      %v5607 = vpow.pop %v5606
      %v5608 = vmul.f32 %v5562, 1.442695
      %v5609 = vpow.pop %v5608
      %v5610 = vmul.f32 %v5563, 1.442695
      %v5611 = vpow.pop %v5610
      %v5612 = vmul.f32 %v5564, 1.442695
      %v5613 = vpow.pop %v5612
      %v5614 = vmul.f32 %v5565, 1.442695
      %v5615 = vpow.pop %v5614
      %v5616 = vmul.f32 %v5566, 1.442695
      %v5617 = vpow.pop %v5616
      %v5618 = vmul.f32 %v5567, 1.442695
      %v5619 = vpow.pop %v5618
      %v5620 = vmul.f32 %v5568, 1.442695
      %v5621 = vpow.pop %v5620
      %v5622 = vmul.f32 %v5569, 1.442695
      %v5623 = vpow.pop %v5622
      %v5624 = vmul.f32 %v5570, 1.442695
      %v5625 = vpow.pop %v5624
      %v5626 = vmul.f32 %v5571, 1.442695
      %v5627 = vpow.pop %v5626
      %v5628 = vmul.f32 %v5572, 1.442695
      %v5629 = vpow.pop %v5628
      %v5630 = vmul.f32 %v5573, 1.442695
      %v5631 = vpow.pop %v5630
      %v5632 = vmul.f32 %v5574, 1.442695
      %v5633 = vpow.pop %v5632
      %v5634 = vmul.f32 %v5575, 1.442695
      %v5635 = vpow.pop %v5634
      %v5636 = vmul.f32 %v5576, 1.442695
      %v5637 = vpow.pop %v5636
      %v5638 = vmul.f32 %v5577, 1.442695
      %v5639 = vpow.pop %v5638
      %v5640 = vmul.f32 %v5578, 1.442695
      %v5641 = vpow.pop %v5640
      %v5642 = vmul.f32 %v5579, 1.442695
      %v5643 = vpow.pop %v5642
      %5676 = vrot.lane.b32.xlu0 %v5389, 96
      %v5677 = vpop.permute.xlu0 %5676
      %5678 = vrot.lane.b32.xlu0 %v5391, 96
      %v5679 = vpop.permute.xlu0 %5678
      %5680 = vrot.lane.b32.xlu0 %v5393, 96
      %v5681 = vpop.permute.xlu0 %5680
      %5682 = vrot.lane.b32.xlu0 %v5395, 96
      %v5683 = vpop.permute.xlu0 %5682
      %5684 = vrot.lane.b32.xlu0 %v5397, 96
      %v5685 = vpop.permute.xlu0 %5684
      %5686 = vrot.lane.b32.xlu0 %v5399, 96
      %v5687 = vpop.permute.xlu0 %5686
      %5688 = vrot.lane.b32.xlu0 %v5401, 96
      %v5689 = vpop.permute.xlu0 %5688
      %5690 = vrot.lane.b32.xlu0 %v5403, 96
      %v5691 = vpop.permute.xlu0 %5690
      %5692 = vrot.lane.b32.xlu0 %v5405, 96
      %v5693 = vpop.permute.xlu0 %5692
      %5694 = vrot.lane.b32.xlu0 %v5407, 96
      %v5695 = vpop.permute.xlu0 %5694
      %5696 = vrot.lane.b32.xlu0 %v5409, 96
      %v5697 = vpop.permute.xlu0 %5696
      %5698 = vrot.lane.b32.xlu0 %v5411, 96
      %v5699 = vpop.permute.xlu0 %5698
      %5700 = vrot.lane.b32.xlu0 %v5413, 96
      %v5701 = vpop.permute.xlu0 %5700
      %5702 = vrot.lane.b32.xlu0 %v5415, 96
      %v5703 = vpop.permute.xlu0 %5702
      %5704 = vrot.lane.b32.xlu0 %v5417, 96
      %v5705 = vpop.permute.xlu0 %5704
      %5706 = vrot.lane.b32.xlu0 %v5419, 96
      %v5707 = vpop.permute.xlu0 %5706
      %5708 = vrot.lane.b32.xlu0 %v5421, 96
      %v5709 = vpop.permute.xlu0 %5708
      %5710 = vrot.lane.b32.xlu0 %v5423, 96
      %v5711 = vpop.permute.xlu0 %5710
      %5712 = vrot.lane.b32.xlu0 %v5425, 96
      %v5713 = vpop.permute.xlu0 %5712
      %5714 = vrot.lane.b32.xlu0 %v5427, 96
      %v5715 = vpop.permute.xlu0 %5714
      %5716 = vrot.lane.b32.xlu0 %v5429, 96
      %v5717 = vpop.permute.xlu0 %5716
      %5718 = vrot.lane.b32.xlu0 %v5431, 96
      %v5719 = vpop.permute.xlu0 %5718
      %5720 = vrot.lane.b32.xlu0 %v5433, 96
      %v5721 = vpop.permute.xlu0 %5720
      %5722 = vrot.lane.b32.xlu0 %v5435, 96
      %v5723 = vpop.permute.xlu0 %5722
      %5724 = vrot.lane.b32.xlu0 %v5437, 96
      %v5725 = vpop.permute.xlu0 %5724
      %5726 = vrot.lane.b32.xlu0 %v5439, 96
      %v5727 = vpop.permute.xlu0 %5726
      %5728 = vrot.lane.b32.xlu0 %v5441, 96
      %v5729 = vpop.permute.xlu0 %5728
      %5730 = vrot.lane.b32.xlu0 %v5443, 96
      %v5731 = vpop.permute.xlu0 %5730
      %5732 = vrot.lane.b32.xlu0 %v5445, 96
      %v5733 = vpop.permute.xlu0 %5732
      %5734 = vrot.lane.b32.xlu0 %v5447, 96
      %v5735 = vpop.permute.xlu0 %5734
      %5736 = vrot.lane.b32.xlu0 %v5449, 96
      %v5737 = vpop.permute.xlu0 %5736
      %5738 = vrot.lane.b32.xlu0 %v5451, 96
      %v5739 = vpop.permute.xlu0 %5738
      %v5772 = vadd.f32 %v5165, %v5677
      %v5773 = vadd.f32 %v5167, %v5679
      %v5774 = vadd.f32 %v5169, %v5681
      %v5775 = vadd.f32 %v5171, %v5683
      %v5776 = vadd.f32 %v5173, %v5685
      %v5777 = vadd.f32 %v5175, %v5687
      %v5778 = vadd.f32 %v5177, %v5689
      %v5779 = vadd.f32 %v5179, %v5691
      %v5780 = vadd.f32 %v5181, %v5693
      %v5781 = vadd.f32 %v5183, %v5695
      %v5782 = vadd.f32 %v5185, %v5697
      %v5783 = vadd.f32 %v5187, %v5699
      %v5784 = vadd.f32 %v5189, %v5701
      %v5785 = vadd.f32 %v5191, %v5703
      %v5786 = vadd.f32 %v5193, %v5705
      %v5787 = vadd.f32 %v5195, %v5707
      %v5788 = vadd.f32 %v5197, %v5709
      %v5789 = vadd.f32 %v5199, %v5711
      %v5790 = vadd.f32 %v5201, %v5713
      %v5791 = vadd.f32 %v5203, %v5715
      %v5792 = vadd.f32 %v5205, %v5717
      %v5793 = vadd.f32 %v5207, %v5719
      %v5794 = vadd.f32 %v5209, %v5721
      %v5795 = vadd.f32 %v5211, %v5723
      %v5796 = vadd.f32 %v5213, %v5725
      %v5797 = vadd.f32 %v5215, %v5727
      %v5798 = vadd.f32 %v5217, %v5729
      %v5799 = vadd.f32 %v5219, %v5731
      %v5800 = vadd.f32 %v5221, %v5733
      %v5801 = vadd.f32 %v5223, %v5735
      %v5802 = vadd.f32 %v5225, %v5737
      %v5803 = vadd.f32 %v5227, %v5739
      %5836 = vrot.lane.b32.xlu0 %v5581, 32
      %v5837 = vpop.permute.xlu0 %5836
      %5838 = vrot.lane.b32.xlu0 %v5583, 32
      %v5839 = vpop.permute.xlu0 %5838
      %5840 = vrot.lane.b32.xlu0 %v5585, 32
      %v5841 = vpop.permute.xlu0 %5840
      %5842 = vrot.lane.b32.xlu0 %v5587, 32
      %v5843 = vpop.permute.xlu0 %5842
      %5844 = vrot.lane.b32.xlu0 %v5589, 32
      %v5845 = vpop.permute.xlu0 %5844
      %5846 = vrot.lane.b32.xlu0 %v5591, 32
      %v5847 = vpop.permute.xlu0 %5846
      %5848 = vrot.lane.b32.xlu0 %v5593, 32
      %v5849 = vpop.permute.xlu0 %5848
      %5850 = vrot.lane.b32.xlu0 %v5595, 32
      %v5851 = vpop.permute.xlu0 %5850
      %5852 = vrot.lane.b32.xlu0 %v5597, 32
      %v5853 = vpop.permute.xlu0 %5852
      %5854 = vrot.lane.b32.xlu0 %v5599, 32
      %v5855 = vpop.permute.xlu0 %5854
      %5856 = vrot.lane.b32.xlu0 %v5601, 32
      %v5857 = vpop.permute.xlu0 %5856
      %5858 = vrot.lane.b32.xlu0 %v5603, 32
      %v5859 = vpop.permute.xlu0 %5858
      %5860 = vrot.lane.b32.xlu0 %v5605, 32
      %v5861 = vpop.permute.xlu0 %5860
      %5862 = vrot.lane.b32.xlu0 %v5607, 32
      %v5863 = vpop.permute.xlu0 %5862
      %5864 = vrot.lane.b32.xlu0 %v5609, 32
      %v5865 = vpop.permute.xlu0 %5864
      %5866 = vrot.lane.b32.xlu0 %v5611, 32
      %v5867 = vpop.permute.xlu0 %5866
      %5868 = vrot.lane.b32.xlu0 %v5613, 32
      %v5869 = vpop.permute.xlu0 %5868
      %5870 = vrot.lane.b32.xlu0 %v5615, 32
      %v5871 = vpop.permute.xlu0 %5870
      %5872 = vrot.lane.b32.xlu0 %v5617, 32
      %v5873 = vpop.permute.xlu0 %5872
      %5874 = vrot.lane.b32.xlu0 %v5619, 32
      %v5875 = vpop.permute.xlu0 %5874
      %5876 = vrot.lane.b32.xlu0 %v5621, 32
      %v5877 = vpop.permute.xlu0 %5876
      %5878 = vrot.lane.b32.xlu0 %v5623, 32
      %v5879 = vpop.permute.xlu0 %5878
      %5880 = vrot.lane.b32.xlu0 %v5625, 32
      %v5881 = vpop.permute.xlu0 %5880
      %5882 = vrot.lane.b32.xlu0 %v5627, 32
      %v5883 = vpop.permute.xlu0 %5882
      %5884 = vrot.lane.b32.xlu0 %v5629, 32
      %v5885 = vpop.permute.xlu0 %5884
      %5886 = vrot.lane.b32.xlu0 %v5631, 32
      %v5887 = vpop.permute.xlu0 %5886
      %5888 = vrot.lane.b32.xlu0 %v5633, 32
      %v5889 = vpop.permute.xlu0 %5888
      %5890 = vrot.lane.b32.xlu0 %v5635, 32
      %v5891 = vpop.permute.xlu0 %5890
      %5892 = vrot.lane.b32.xlu0 %v5637, 32
      %v5893 = vpop.permute.xlu0 %5892
      %5894 = vrot.lane.b32.xlu0 %v5639, 32
      %v5895 = vpop.permute.xlu0 %5894
      %5896 = vrot.lane.b32.xlu0 %v5641, 32
      %v5897 = vpop.permute.xlu0 %5896
      %5898 = vrot.lane.b32.xlu0 %v5643, 32
      %v5899 = vpop.permute.xlu0 %5898
      %v5932 = vadd.f32 %v5772, %v5837
      %v5933 = vadd.f32 %v5773, %v5839
      %v5934 = vadd.f32 %v5774, %v5841
      %v5935 = vadd.f32 %v5775, %v5843
      %v5936 = vadd.f32 %v5776, %v5845
      %v5937 = vadd.f32 %v5777, %v5847
      %v5938 = vadd.f32 %v5778, %v5849
      %v5939 = vadd.f32 %v5779, %v5851
      %v5940 = vadd.f32 %v5780, %v5853
      %v5941 = vadd.f32 %v5781, %v5855
      %v5942 = vadd.f32 %v5782, %v5857
      %v5943 = vadd.f32 %v5783, %v5859
      %v5944 = vadd.f32 %v5784, %v5861
      %v5945 = vadd.f32 %v5785, %v5863
      %v5946 = vadd.f32 %v5786, %v5865
      %v5947 = vadd.f32 %v5787, %v5867
      %v5948 = vadd.f32 %v5788, %v5869
      %v5949 = vadd.f32 %v5789, %v5871
      %v5950 = vadd.f32 %v5790, %v5873
      %v5951 = vadd.f32 %v5791, %v5875
      %v5952 = vadd.f32 %v5792, %v5877
      %v5953 = vadd.f32 %v5793, %v5879
      %v5954 = vadd.f32 %v5794, %v5881
      %v5955 = vadd.f32 %v5795, %v5883
      %v5956 = vadd.f32 %v5796, %v5885
      %v5957 = vadd.f32 %v5797, %v5887
      %v5958 = vadd.f32 %v5798, %v5889
      %v5959 = vadd.f32 %v5799, %v5891
      %v5960 = vadd.f32 %v5800, %v5893
      %v5961 = vadd.f32 %v5801, %v5895
      %v5962 = vadd.f32 %v5802, %v5897
      %v5963 = vadd.f32 %v5803, %v5899
      %v5964 = vrcp.pop %v5932
      %v5965 = vmul.f32 1.0, %v5964
      %v5966 = vrcp.pop %v5933
      %v5967 = vmul.f32 1.0, %v5966
      %v5968 = vrcp.pop %v5934
      %v5969 = vmul.f32 1.0, %v5968
      %v5970 = vrcp.pop %v5935
      %v5971 = vmul.f32 1.0, %v5970
      %v5972 = vrcp.pop %v5936
      %v5973 = vmul.f32 1.0, %v5972
      %v5974 = vrcp.pop %v5937
      %v5975 = vmul.f32 1.0, %v5974
      %v5976 = vrcp.pop %v5938
      %v5977 = vmul.f32 1.0, %v5976
      %v5978 = vrcp.pop %v5939
      %v5979 = vmul.f32 1.0, %v5978
      %v5980 = vrcp.pop %v5940
      %v5981 = vmul.f32 1.0, %v5980
      %v5982 = vrcp.pop %v5941
      %v5983 = vmul.f32 1.0, %v5982
      %v5984 = vrcp.pop %v5942
      %v5985 = vmul.f32 1.0, %v5984
      %v5986 = vrcp.pop %v5943
      %v5987 = vmul.f32 1.0, %v5986
      %v5988 = vrcp.pop %v5944
      %v5989 = vmul.f32 1.0, %v5988
      %v5990 = vrcp.pop %v5945
      %v5991 = vmul.f32 1.0, %v5990
      %v5992 = vrcp.pop %v5946
      %v5993 = vmul.f32 1.0, %v5992
      %v5994 = vrcp.pop %v5947
      %v5995 = vmul.f32 1.0, %v5994
      %v5996 = vrcp.pop %v5948
      %v5997 = vmul.f32 1.0, %v5996
      %v5998 = vrcp.pop %v5949
      %v5999 = vmul.f32 1.0, %v5998
      %v6000 = vrcp.pop %v5950
      %v6001 = vmul.f32 1.0, %v6000
      %v6002 = vrcp.pop %v5951
      %v6003 = vmul.f32 1.0, %v6002
      %v6004 = vrcp.pop %v5952
      %v6005 = vmul.f32 1.0, %v6004
      %v6006 = vrcp.pop %v5953
      %v6007 = vmul.f32 1.0, %v6006
      %v6008 = vrcp.pop %v5954
      %v6009 = vmul.f32 1.0, %v6008
      %v6010 = vrcp.pop %v5955
      %v6011 = vmul.f32 1.0, %v6010
      %v6012 = vrcp.pop %v5956
      %v6013 = vmul.f32 1.0, %v6012
      %v6014 = vrcp.pop %v5957
      %v6015 = vmul.f32 1.0, %v6014
      %v6016 = vrcp.pop %v5958
      %v6017 = vmul.f32 1.0, %v6016
      %v6018 = vrcp.pop %v5959
      %v6019 = vmul.f32 1.0, %v6018
      %v6020 = vrcp.pop %v5960
      %v6021 = vmul.f32 1.0, %v6020
      %v6022 = vrcp.pop %v5961
      %v6023 = vmul.f32 1.0, %v6022
      %v6024 = vrcp.pop %v5962
      %v6025 = vmul.f32 1.0, %v6024
      %v6026 = vrcp.pop %v5963
      %v6027 = vmul.f32 1.0, %v6026
      %v6028 = vmul.f32 %v5165, %v5965
      %v6029 = vmul.f32 %v5167, %v5967
      %v6030 = vmul.f32 %v5169, %v5969
      %v6031 = vmul.f32 %v5171, %v5971
      %v6032 = vmul.f32 %v5173, %v5973
      %v6033 = vmul.f32 %v5175, %v5975
      %v6034 = vmul.f32 %v5177, %v5977
      %v6035 = vmul.f32 %v5179, %v5979
      %v6036 = vmul.f32 %v5181, %v5981
      %v6037 = vmul.f32 %v5183, %v5983
      %v6038 = vmul.f32 %v5185, %v5985
      %v6039 = vmul.f32 %v5187, %v5987
      %v6040 = vmul.f32 %v5189, %v5989
      %v6041 = vmul.f32 %v5191, %v5991
      %v6042 = vmul.f32 %v5193, %v5993
      %v6043 = vmul.f32 %v5195, %v5995
      %v6044 = vmul.f32 %v5197, %v5997
      %v6045 = vmul.f32 %v5199, %v5999
      %v6046 = vmul.f32 %v5201, %v6001
      %v6047 = vmul.f32 %v5203, %v6003
      %v6048 = vmul.f32 %v5205, %v6005
      %v6049 = vmul.f32 %v5207, %v6007
      %v6050 = vmul.f32 %v5209, %v6009
      %v6051 = vmul.f32 %v5211, %v6011
      %v6052 = vmul.f32 %v5213, %v6013
      %v6053 = vmul.f32 %v5215, %v6015
      %v6054 = vmul.f32 %v5217, %v6017
      %v6055 = vmul.f32 %v5219, %v6019
      %v6056 = vmul.f32 %v5221, %v6021
      %v6057 = vmul.f32 %v5223, %v6023
      %v6058 = vmul.f32 %v5225, %v6025
      %v6059 = vmul.f32 %v5227, %v6027
      %6092 = vrot.lane.b32.xlu0 %v5965, 32
      %v6093 = vpop.permute.xlu0 %6092
      %6094 = vrot.lane.b32.xlu0 %v5967, 32
      %v6095 = vpop.permute.xlu0 %6094
      %6096 = vrot.lane.b32.xlu0 %v5969, 32
      %v6097 = vpop.permute.xlu0 %6096
      %6098 = vrot.lane.b32.xlu0 %v5971, 32
      %v6099 = vpop.permute.xlu0 %6098
      %6100 = vrot.lane.b32.xlu0 %v5973, 32
      %v6101 = vpop.permute.xlu0 %6100
      %6102 = vrot.lane.b32.xlu0 %v5975, 32
      %v6103 = vpop.permute.xlu0 %6102
      %6104 = vrot.lane.b32.xlu0 %v5977, 32
      %v6105 = vpop.permute.xlu0 %6104
      %6106 = vrot.lane.b32.xlu0 %v5979, 32
      %v6107 = vpop.permute.xlu0 %6106
      %6108 = vrot.lane.b32.xlu0 %v5981, 32
      %v6109 = vpop.permute.xlu0 %6108
      %6110 = vrot.lane.b32.xlu0 %v5983, 32
      %v6111 = vpop.permute.xlu0 %6110
      %6112 = vrot.lane.b32.xlu0 %v5985, 32
      %v6113 = vpop.permute.xlu0 %6112
      %6114 = vrot.lane.b32.xlu0 %v5987, 32
      %v6115 = vpop.permute.xlu0 %6114
      %6116 = vrot.lane.b32.xlu0 %v5989, 32
      %v6117 = vpop.permute.xlu0 %6116
      %6118 = vrot.lane.b32.xlu0 %v5991, 32
      %v6119 = vpop.permute.xlu0 %6118
      %6120 = vrot.lane.b32.xlu0 %v5993, 32
      %v6121 = vpop.permute.xlu0 %6120
      %6122 = vrot.lane.b32.xlu0 %v5995, 32
      %v6123 = vpop.permute.xlu0 %6122
      %6124 = vrot.lane.b32.xlu0 %v5997, 32
      %v6125 = vpop.permute.xlu0 %6124
      %6126 = vrot.lane.b32.xlu0 %v5999, 32
      %v6127 = vpop.permute.xlu0 %6126
      %6128 = vrot.lane.b32.xlu0 %v6001, 32
      %v6129 = vpop.permute.xlu0 %6128
      %6130 = vrot.lane.b32.xlu0 %v6003, 32
      %v6131 = vpop.permute.xlu0 %6130
      %6132 = vrot.lane.b32.xlu0 %v6005, 32
      %v6133 = vpop.permute.xlu0 %6132
      %6134 = vrot.lane.b32.xlu0 %v6007, 32
      %v6135 = vpop.permute.xlu0 %6134
      %6136 = vrot.lane.b32.xlu0 %v6009, 32
      %v6137 = vpop.permute.xlu0 %6136
      %6138 = vrot.lane.b32.xlu0 %v6011, 32
      %v6139 = vpop.permute.xlu0 %6138
      %6140 = vrot.lane.b32.xlu0 %v6013, 32
      %v6141 = vpop.permute.xlu0 %6140
      %6142 = vrot.lane.b32.xlu0 %v6015, 32
      %v6143 = vpop.permute.xlu0 %6142
      %6144 = vrot.lane.b32.xlu0 %v6017, 32
      %v6145 = vpop.permute.xlu0 %6144
      %6146 = vrot.lane.b32.xlu0 %v6019, 32
      %v6147 = vpop.permute.xlu0 %6146
      %6148 = vrot.lane.b32.xlu0 %v6021, 32
      %v6149 = vpop.permute.xlu0 %6148
      %6150 = vrot.lane.b32.xlu0 %v6023, 32
      %v6151 = vpop.permute.xlu0 %6150
      %6152 = vrot.lane.b32.xlu0 %v6025, 32
      %v6153 = vpop.permute.xlu0 %6152
      %6154 = vrot.lane.b32.xlu0 %v6027, 32
      %v6155 = vpop.permute.xlu0 %6154
      %v6188 = vmul.f32 %v5389, %v6093
      %v6189 = vmul.f32 %v5391, %v6095
      %v6190 = vmul.f32 %v5393, %v6097
      %v6191 = vmul.f32 %v5395, %v6099
      %v6192 = vmul.f32 %v5397, %v6101
      %v6193 = vmul.f32 %v5399, %v6103
      %v6194 = vmul.f32 %v5401, %v6105
      %v6195 = vmul.f32 %v5403, %v6107
      %v6196 = vmul.f32 %v5405, %v6109
      %v6197 = vmul.f32 %v5407, %v6111
      %v6198 = vmul.f32 %v5409, %v6113
      %v6199 = vmul.f32 %v5411, %v6115
      %v6200 = vmul.f32 %v5413, %v6117
      %v6201 = vmul.f32 %v5415, %v6119
      %v6202 = vmul.f32 %v5417, %v6121
      %v6203 = vmul.f32 %v5419, %v6123
      %v6204 = vmul.f32 %v5421, %v6125
      %v6205 = vmul.f32 %v5423, %v6127
      %v6206 = vmul.f32 %v5425, %v6129
      %v6207 = vmul.f32 %v5427, %v6131
      %v6208 = vmul.f32 %v5429, %v6133
      %v6209 = vmul.f32 %v5431, %v6135
      %v6210 = vmul.f32 %v5433, %v6137
      %v6211 = vmul.f32 %v5435, %v6139
      %v6212 = vmul.f32 %v5437, %v6141
      %v6213 = vmul.f32 %v5439, %v6143
      %v6214 = vmul.f32 %v5441, %v6145
      %v6215 = vmul.f32 %v5443, %v6147
      %v6216 = vmul.f32 %v5445, %v6149
      %v6217 = vmul.f32 %v5447, %v6151
      %v6218 = vmul.f32 %v5449, %v6153
      %v6219 = vmul.f32 %v5451, %v6155
      %6220 = vrot.lane.b32.xlu0 %v5965, 96
      %v6221 = vpop.permute.xlu0 %6220
      %6222 = vrot.lane.b32.xlu0 %v5967, 96
      %v6223 = vpop.permute.xlu0 %6222
      %6224 = vrot.lane.b32.xlu0 %v5969, 96
      %v6225 = vpop.permute.xlu0 %6224
      %6226 = vrot.lane.b32.xlu0 %v5971, 96
      %v6227 = vpop.permute.xlu0 %6226
      %6228 = vrot.lane.b32.xlu0 %v5973, 96
      %v6229 = vpop.permute.xlu0 %6228
      %6230 = vrot.lane.b32.xlu0 %v5975, 96
      %v6231 = vpop.permute.xlu0 %6230
      %6232 = vrot.lane.b32.xlu0 %v5977, 96
      %v6233 = vpop.permute.xlu0 %6232
      %6234 = vrot.lane.b32.xlu0 %v5979, 96
      %v6235 = vpop.permute.xlu0 %6234
      %6236 = vrot.lane.b32.xlu0 %v5981, 96
      %v6237 = vpop.permute.xlu0 %6236
      %6238 = vrot.lane.b32.xlu0 %v5983, 96
      %v6239 = vpop.permute.xlu0 %6238
      %6240 = vrot.lane.b32.xlu0 %v5985, 96
      %v6241 = vpop.permute.xlu0 %6240
      %6242 = vrot.lane.b32.xlu0 %v5987, 96
      %v6243 = vpop.permute.xlu0 %6242
      %6244 = vrot.lane.b32.xlu0 %v5989, 96
      %v6245 = vpop.permute.xlu0 %6244
      %6246 = vrot.lane.b32.xlu0 %v5991, 96
      %v6247 = vpop.permute.xlu0 %6246
      %6248 = vrot.lane.b32.xlu0 %v5993, 96
      %v6249 = vpop.permute.xlu0 %6248
      %6250 = vrot.lane.b32.xlu0 %v5995, 96
      %v6251 = vpop.permute.xlu0 %6250
      %6252 = vrot.lane.b32.xlu0 %v5997, 96
      %v6253 = vpop.permute.xlu0 %6252
      %6254 = vrot.lane.b32.xlu0 %v5999, 96
      %v6255 = vpop.permute.xlu0 %6254
      %6256 = vrot.lane.b32.xlu0 %v6001, 96
      %v6257 = vpop.permute.xlu0 %6256
      %6258 = vrot.lane.b32.xlu0 %v6003, 96
      %v6259 = vpop.permute.xlu0 %6258
      %6260 = vrot.lane.b32.xlu0 %v6005, 96
      %v6261 = vpop.permute.xlu0 %6260
      %6262 = vrot.lane.b32.xlu0 %v6007, 96
      %v6263 = vpop.permute.xlu0 %6262
      %6264 = vrot.lane.b32.xlu0 %v6009, 96
      %v6265 = vpop.permute.xlu0 %6264
      %6266 = vrot.lane.b32.xlu0 %v6011, 96
      %v6267 = vpop.permute.xlu0 %6266
      %6268 = vrot.lane.b32.xlu0 %v6013, 96
      %v6269 = vpop.permute.xlu0 %6268
      %6270 = vrot.lane.b32.xlu0 %v6015, 96
      %v6271 = vpop.permute.xlu0 %6270
      %6272 = vrot.lane.b32.xlu0 %v6017, 96
      %v6273 = vpop.permute.xlu0 %6272
      %6274 = vrot.lane.b32.xlu0 %v6019, 96
      %v6275 = vpop.permute.xlu0 %6274
      %6276 = vrot.lane.b32.xlu0 %v6021, 96
      %v6277 = vpop.permute.xlu0 %6276
      %6278 = vrot.lane.b32.xlu0 %v6023, 96
      %v6279 = vpop.permute.xlu0 %6278
      %6280 = vrot.lane.b32.xlu0 %v6025, 96
      %v6281 = vpop.permute.xlu0 %6280
      %6282 = vrot.lane.b32.xlu0 %v6027, 96
      %v6283 = vpop.permute.xlu0 %6282
      %v6316 = vmul.f32 %v5581, %v6221
      %v6317 = vmul.f32 %v5583, %v6223
      %v6318 = vmul.f32 %v5585, %v6225
      %v6319 = vmul.f32 %v5587, %v6227
      %v6320 = vmul.f32 %v5589, %v6229
      %v6321 = vmul.f32 %v5591, %v6231
      %v6322 = vmul.f32 %v5593, %v6233
      %v6323 = vmul.f32 %v5595, %v6235
      %v6324 = vmul.f32 %v5597, %v6237
      %v6325 = vmul.f32 %v5599, %v6239
      %v6326 = vmul.f32 %v5601, %v6241
      %v6327 = vmul.f32 %v5603, %v6243
      %v6328 = vmul.f32 %v5605, %v6245
      %v6329 = vmul.f32 %v5607, %v6247
      %v6330 = vmul.f32 %v5609, %v6249
      %v6331 = vmul.f32 %v5611, %v6251
      %v6332 = vmul.f32 %v5613, %v6253
      %v6333 = vmul.f32 %v5615, %v6255
      %v6334 = vmul.f32 %v5617, %v6257
      %v6335 = vmul.f32 %v5619, %v6259
      %v6336 = vmul.f32 %v5621, %v6261
      %v6337 = vmul.f32 %v5623, %v6263
      %v6338 = vmul.f32 %v5625, %v6265
      %v6339 = vmul.f32 %v5627, %v6267
      %v6340 = vmul.f32 %v5629, %v6269
      %v6341 = vmul.f32 %v5631, %v6271
      %v6342 = vmul.f32 %v5633, %v6273
      %v6343 = vmul.f32 %v5635, %v6275
      %v6344 = vmul.f32 %v5637, %v6277
      %v6345 = vmul.f32 %v5639, %v6279
      %v6346 = vmul.f32 %v5641, %v6281
      %v6347 = vmul.f32 %v5643, %v6283
      %6380 = vrot.lane.b32.xlu0 %v6316, 32
      %v6381 = vpop.permute.xlu0 %6380
      %6382 = vrot.lane.b32.xlu0 %v6317, 32
      %v6383 = vpop.permute.xlu0 %6382
      %6384 = vrot.lane.b32.xlu0 %v6318, 32
      %v6385 = vpop.permute.xlu0 %6384
      %6386 = vrot.lane.b32.xlu0 %v6319, 32
      %v6387 = vpop.permute.xlu0 %6386
      %6388 = vrot.lane.b32.xlu0 %v6320, 32
      %v6389 = vpop.permute.xlu0 %6388
      %6390 = vrot.lane.b32.xlu0 %v6321, 32
      %v6391 = vpop.permute.xlu0 %6390
      %6392 = vrot.lane.b32.xlu0 %v6322, 32
      %v6393 = vpop.permute.xlu0 %6392
      %6394 = vrot.lane.b32.xlu0 %v6323, 32
      %v6395 = vpop.permute.xlu0 %6394
      %6396 = vrot.lane.b32.xlu0 %v6324, 32
      %v6397 = vpop.permute.xlu0 %6396
      %6398 = vrot.lane.b32.xlu0 %v6325, 32
      %v6399 = vpop.permute.xlu0 %6398
      %6400 = vrot.lane.b32.xlu0 %v6326, 32
      %v6401 = vpop.permute.xlu0 %6400
      %6402 = vrot.lane.b32.xlu0 %v6327, 32
      %v6403 = vpop.permute.xlu0 %6402
      %6404 = vrot.lane.b32.xlu0 %v6328, 32
      %v6405 = vpop.permute.xlu0 %6404
      %6406 = vrot.lane.b32.xlu0 %v6329, 32
      %v6407 = vpop.permute.xlu0 %6406
      %6408 = vrot.lane.b32.xlu0 %v6330, 32
      %v6409 = vpop.permute.xlu0 %6408
      %6410 = vrot.lane.b32.xlu0 %v6331, 32
      %v6411 = vpop.permute.xlu0 %6410
      %6412 = vrot.lane.b32.xlu0 %v6332, 32
      %v6413 = vpop.permute.xlu0 %6412
      %6414 = vrot.lane.b32.xlu0 %v6333, 32
      %v6415 = vpop.permute.xlu0 %6414
      %6416 = vrot.lane.b32.xlu0 %v6334, 32
      %v6417 = vpop.permute.xlu0 %6416
      %6418 = vrot.lane.b32.xlu0 %v6335, 32
      %v6419 = vpop.permute.xlu0 %6418
      %6420 = vrot.lane.b32.xlu0 %v6336, 32
      %v6421 = vpop.permute.xlu0 %6420
      %6422 = vrot.lane.b32.xlu0 %v6337, 32
      %v6423 = vpop.permute.xlu0 %6422
      %6424 = vrot.lane.b32.xlu0 %v6338, 32
      %v6425 = vpop.permute.xlu0 %6424
      %6426 = vrot.lane.b32.xlu0 %v6339, 32
      %v6427 = vpop.permute.xlu0 %6426
      %6428 = vrot.lane.b32.xlu0 %v6340, 32
      %v6429 = vpop.permute.xlu0 %6428
      %6430 = vrot.lane.b32.xlu0 %v6341, 32
      %v6431 = vpop.permute.xlu0 %6430
      %6432 = vrot.lane.b32.xlu0 %v6342, 32
      %v6433 = vpop.permute.xlu0 %6432
      %6434 = vrot.lane.b32.xlu0 %v6343, 32
      %v6435 = vpop.permute.xlu0 %6434
      %6436 = vrot.lane.b32.xlu0 %v6344, 32
      %v6437 = vpop.permute.xlu0 %6436
      %6438 = vrot.lane.b32.xlu0 %v6345, 32
      %v6439 = vpop.permute.xlu0 %6438
      %6440 = vrot.lane.b32.xlu0 %v6346, 32
      %v6441 = vpop.permute.xlu0 %6440
      %6442 = vrot.lane.b32.xlu0 %v6347, 32
      %v6443 = vpop.permute.xlu0 %6442
      %v6476 = vadd.f32 %v6028, %v6381
      %v6477 = vadd.f32 %v6029, %v6383
      %v6478 = vadd.f32 %v6030, %v6385
      %v6479 = vadd.f32 %v6031, %v6387
      %v6480 = vadd.f32 %v6032, %v6389
      %v6481 = vadd.f32 %v6033, %v6391
      %v6482 = vadd.f32 %v6034, %v6393
      %v6483 = vadd.f32 %v6035, %v6395
      %v6484 = vadd.f32 %v6036, %v6397
      %v6485 = vadd.f32 %v6037, %v6399
      %v6486 = vadd.f32 %v6038, %v6401
      %v6487 = vadd.f32 %v6039, %v6403
      %v6488 = vadd.f32 %v6040, %v6405
      %v6489 = vadd.f32 %v6041, %v6407
      %v6490 = vadd.f32 %v6042, %v6409
      %v6491 = vadd.f32 %v6043, %v6411
      %v6492 = vadd.f32 %v6044, %v6413
      %v6493 = vadd.f32 %v6045, %v6415
      %v6494 = vadd.f32 %v6046, %v6417
      %v6495 = vadd.f32 %v6047, %v6419
      %v6496 = vadd.f32 %v6048, %v6421
      %v6497 = vadd.f32 %v6049, %v6423
      %v6498 = vadd.f32 %v6050, %v6425
      %v6499 = vadd.f32 %v6051, %v6427
      %v6500 = vadd.f32 %v6052, %v6429
      %v6501 = vadd.f32 %v6053, %v6431
      %v6502 = vadd.f32 %v6054, %v6433
      %v6503 = vadd.f32 %v6055, %v6435
      %v6504 = vadd.f32 %v6056, %v6437
      %v6505 = vadd.f32 %v6057, %v6439
      %v6506 = vadd.f32 %v6058, %v6441
      %v6507 = vadd.f32 %v6059, %v6443
      %6540 = vrot.lane.b32.xlu0 %v6476, 96
      %v6541 = vpop.permute.xlu0 %6540
      %6542 = vrot.lane.b32.xlu0 %v6477, 96
      %v6543 = vpop.permute.xlu0 %6542
      %6544 = vrot.lane.b32.xlu0 %v6478, 96
      %v6545 = vpop.permute.xlu0 %6544
      %6546 = vrot.lane.b32.xlu0 %v6479, 96
      %v6547 = vpop.permute.xlu0 %6546
      %6548 = vrot.lane.b32.xlu0 %v6480, 96
      %v6549 = vpop.permute.xlu0 %6548
      %6550 = vrot.lane.b32.xlu0 %v6481, 96
      %v6551 = vpop.permute.xlu0 %6550
      %6552 = vrot.lane.b32.xlu0 %v6482, 96
      %v6553 = vpop.permute.xlu0 %6552
      %6554 = vrot.lane.b32.xlu0 %v6483, 96
      %v6555 = vpop.permute.xlu0 %6554
      %6556 = vrot.lane.b32.xlu0 %v6484, 96
      %v6557 = vpop.permute.xlu0 %6556
      %6558 = vrot.lane.b32.xlu0 %v6485, 96
      %v6559 = vpop.permute.xlu0 %6558
      %6560 = vrot.lane.b32.xlu0 %v6486, 96
      %v6561 = vpop.permute.xlu0 %6560
      %6562 = vrot.lane.b32.xlu0 %v6487, 96
      %v6563 = vpop.permute.xlu0 %6562
      %6564 = vrot.lane.b32.xlu0 %v6488, 96
      %v6565 = vpop.permute.xlu0 %6564
      %6566 = vrot.lane.b32.xlu0 %v6489, 96
      %v6567 = vpop.permute.xlu0 %6566
      %6568 = vrot.lane.b32.xlu0 %v6490, 96
      %v6569 = vpop.permute.xlu0 %6568
      %6570 = vrot.lane.b32.xlu0 %v6491, 96
      %v6571 = vpop.permute.xlu0 %6570
      %6572 = vrot.lane.b32.xlu0 %v6492, 96
      %v6573 = vpop.permute.xlu0 %6572
      %6574 = vrot.lane.b32.xlu0 %v6493, 96
      %v6575 = vpop.permute.xlu0 %6574
      %6576 = vrot.lane.b32.xlu0 %v6494, 96
      %v6577 = vpop.permute.xlu0 %6576
      %6578 = vrot.lane.b32.xlu0 %v6495, 96
      %v6579 = vpop.permute.xlu0 %6578
      %6580 = vrot.lane.b32.xlu0 %v6496, 96
      %v6581 = vpop.permute.xlu0 %6580
      %6582 = vrot.lane.b32.xlu0 %v6497, 96
      %v6583 = vpop.permute.xlu0 %6582
      %6584 = vrot.lane.b32.xlu0 %v6498, 96
      %v6585 = vpop.permute.xlu0 %6584
      %6586 = vrot.lane.b32.xlu0 %v6499, 96
      %v6587 = vpop.permute.xlu0 %6586
      %6588 = vrot.lane.b32.xlu0 %v6500, 96
      %v6589 = vpop.permute.xlu0 %6588
      %6590 = vrot.lane.b32.xlu0 %v6501, 96
      %v6591 = vpop.permute.xlu0 %6590
      %6592 = vrot.lane.b32.xlu0 %v6502, 96
      %v6593 = vpop.permute.xlu0 %6592
      %6594 = vrot.lane.b32.xlu0 %v6503, 96
      %v6595 = vpop.permute.xlu0 %6594
      %6596 = vrot.lane.b32.xlu0 %v6504, 96
      %v6597 = vpop.permute.xlu0 %6596
      %6598 = vrot.lane.b32.xlu0 %v6505, 96
      %v6599 = vpop.permute.xlu0 %6598
      %6600 = vrot.lane.b32.xlu0 %v6506, 96
      %v6601 = vpop.permute.xlu0 %6600
      %6602 = vrot.lane.b32.xlu0 %v6507, 96
      %v6603 = vpop.permute.xlu0 %6602
      %v6636 = vmul.f32 %v432, %v6541
      %v6637 = vmul.f32 %v433, %v6543
      %v6638 = vmul.f32 %v434, %v6545
      %v6639 = vmul.f32 %v435, %v6547
      %v6640 = vmul.f32 %v436, %v6549
      %v6641 = vmul.f32 %v437, %v6551
      %v6642 = vmul.f32 %v438, %v6553
      %v6643 = vmul.f32 %v439, %v6555
      %v6644 = vmul.f32 %v440, %v6557
      %v6645 = vmul.f32 %v441, %v6559
      %v6646 = vmul.f32 %v442, %v6561
      %v6647 = vmul.f32 %v443, %v6563
      %v6648 = vmul.f32 %v444, %v6565
      %v6649 = vmul.f32 %v445, %v6567
      %v6650 = vmul.f32 %v446, %v6569
      %v6651 = vmul.f32 %v447, %v6571
      %v6652 = vmul.f32 %v448, %v6573
      %v6653 = vmul.f32 %v449, %v6575
      %v6654 = vmul.f32 %v450, %v6577
      %v6655 = vmul.f32 %v451, %v6579
      %v6656 = vmul.f32 %v452, %v6581
      %v6657 = vmul.f32 %v453, %v6583
      %v6658 = vmul.f32 %v454, %v6585
      %v6659 = vmul.f32 %v455, %v6587
      %v6660 = vmul.f32 %v456, %v6589
      %v6661 = vmul.f32 %v457, %v6591
      %v6662 = vmul.f32 %v458, %v6593
      %v6663 = vmul.f32 %v459, %v6595
      %v6664 = vmul.f32 %v460, %v6597
      %v6665 = vmul.f32 %v461, %v6599
      %v6666 = vmul.f32 %v462, %v6601
      %v6667 = vmul.f32 %v463, %v6603
      %6668 = vrot.lane.b32.xlu0 %v6316, 64
      %v6669 = vpop.permute.xlu0 %6668
      %6670 = vrot.lane.b32.xlu0 %v6317, 64
      %v6671 = vpop.permute.xlu0 %6670
      %6672 = vrot.lane.b32.xlu0 %v6318, 64
      %v6673 = vpop.permute.xlu0 %6672
      %6674 = vrot.lane.b32.xlu0 %v6319, 64
      %v6675 = vpop.permute.xlu0 %6674
      %6676 = vrot.lane.b32.xlu0 %v6320, 64
      %v6677 = vpop.permute.xlu0 %6676
      %6678 = vrot.lane.b32.xlu0 %v6321, 64
      %v6679 = vpop.permute.xlu0 %6678
      %6680 = vrot.lane.b32.xlu0 %v6322, 64
      %v6681 = vpop.permute.xlu0 %6680
      %6682 = vrot.lane.b32.xlu0 %v6323, 64
      %v6683 = vpop.permute.xlu0 %6682
      %6684 = vrot.lane.b32.xlu0 %v6324, 64
      %v6685 = vpop.permute.xlu0 %6684
      %6686 = vrot.lane.b32.xlu0 %v6325, 64
      %v6687 = vpop.permute.xlu0 %6686
      %6688 = vrot.lane.b32.xlu0 %v6326, 64
      %v6689 = vpop.permute.xlu0 %6688
      %6690 = vrot.lane.b32.xlu0 %v6327, 64
      %v6691 = vpop.permute.xlu0 %6690
      %6692 = vrot.lane.b32.xlu0 %v6328, 64
      %v6693 = vpop.permute.xlu0 %6692
      %6694 = vrot.lane.b32.xlu0 %v6329, 64
      %v6695 = vpop.permute.xlu0 %6694
      %6696 = vrot.lane.b32.xlu0 %v6330, 64
      %v6697 = vpop.permute.xlu0 %6696
      %6698 = vrot.lane.b32.xlu0 %v6331, 64
      %v6699 = vpop.permute.xlu0 %6698
      %6700 = vrot.lane.b32.xlu0 %v6332, 64
      %v6701 = vpop.permute.xlu0 %6700
      %6702 = vrot.lane.b32.xlu0 %v6333, 64
      %v6703 = vpop.permute.xlu0 %6702
      %6704 = vrot.lane.b32.xlu0 %v6334, 64
      %v6705 = vpop.permute.xlu0 %6704
      %6706 = vrot.lane.b32.xlu0 %v6335, 64
      %v6707 = vpop.permute.xlu0 %6706
      %6708 = vrot.lane.b32.xlu0 %v6336, 64
      %v6709 = vpop.permute.xlu0 %6708
      %6710 = vrot.lane.b32.xlu0 %v6337, 64
      %v6711 = vpop.permute.xlu0 %6710
      %6712 = vrot.lane.b32.xlu0 %v6338, 64
      %v6713 = vpop.permute.xlu0 %6712
      %6714 = vrot.lane.b32.xlu0 %v6339, 64
      %v6715 = vpop.permute.xlu0 %6714
      %6716 = vrot.lane.b32.xlu0 %v6340, 64
      %v6717 = vpop.permute.xlu0 %6716
      %6718 = vrot.lane.b32.xlu0 %v6341, 64
      %v6719 = vpop.permute.xlu0 %6718
      %6720 = vrot.lane.b32.xlu0 %v6342, 64
      %v6721 = vpop.permute.xlu0 %6720
      %6722 = vrot.lane.b32.xlu0 %v6343, 64
      %v6723 = vpop.permute.xlu0 %6722
      %6724 = vrot.lane.b32.xlu0 %v6344, 64
      %v6725 = vpop.permute.xlu0 %6724
      %6726 = vrot.lane.b32.xlu0 %v6345, 64
      %v6727 = vpop.permute.xlu0 %6726
      %6728 = vrot.lane.b32.xlu0 %v6346, 64
      %v6729 = vpop.permute.xlu0 %6728
      %6730 = vrot.lane.b32.xlu0 %v6347, 64
      %v6731 = vpop.permute.xlu0 %6730
      %v6764 = vadd.f32 %v6188, %v6669
      %v6765 = vadd.f32 %v6189, %v6671
      %v6766 = vadd.f32 %v6190, %v6673
      %v6767 = vadd.f32 %v6191, %v6675
      %v6768 = vadd.f32 %v6192, %v6677
      %v6769 = vadd.f32 %v6193, %v6679
      %v6770 = vadd.f32 %v6194, %v6681
      %v6771 = vadd.f32 %v6195, %v6683
      %v6772 = vadd.f32 %v6196, %v6685
      %v6773 = vadd.f32 %v6197, %v6687
      %v6774 = vadd.f32 %v6198, %v6689
      %v6775 = vadd.f32 %v6199, %v6691
      %v6776 = vadd.f32 %v6200, %v6693
      %v6777 = vadd.f32 %v6201, %v6695
      %v6778 = vadd.f32 %v6202, %v6697
      %v6779 = vadd.f32 %v6203, %v6699
      %v6780 = vadd.f32 %v6204, %v6701
      %v6781 = vadd.f32 %v6205, %v6703
      %v6782 = vadd.f32 %v6206, %v6705
      %v6783 = vadd.f32 %v6207, %v6707
      %v6784 = vadd.f32 %v6208, %v6709
      %v6785 = vadd.f32 %v6209, %v6711
      %v6786 = vadd.f32 %v6210, %v6713
      %v6787 = vadd.f32 %v6211, %v6715
      %v6788 = vadd.f32 %v6212, %v6717
      %v6789 = vadd.f32 %v6213, %v6719
      %v6790 = vadd.f32 %v6214, %v6721
      %v6791 = vadd.f32 %v6215, %v6723
      %v6792 = vadd.f32 %v6216, %v6725
      %v6793 = vadd.f32 %v6217, %v6727
      %v6794 = vadd.f32 %v6218, %v6729
      %v6795 = vadd.f32 %v6219, %v6731
      %6828 = vrot.lane.b32.xlu0 %v6764, 64
      %v6829 = vpop.permute.xlu0 %6828
      %6830 = vrot.lane.b32.xlu0 %v6765, 64
      %v6831 = vpop.permute.xlu0 %6830
      %6832 = vrot.lane.b32.xlu0 %v6766, 64
      %v6833 = vpop.permute.xlu0 %6832
      %6834 = vrot.lane.b32.xlu0 %v6767, 64
      %v6835 = vpop.permute.xlu0 %6834
      %6836 = vrot.lane.b32.xlu0 %v6768, 64
      %v6837 = vpop.permute.xlu0 %6836
      %6838 = vrot.lane.b32.xlu0 %v6769, 64
      %v6839 = vpop.permute.xlu0 %6838
      %6840 = vrot.lane.b32.xlu0 %v6770, 64
      %v6841 = vpop.permute.xlu0 %6840
      %6842 = vrot.lane.b32.xlu0 %v6771, 64
      %v6843 = vpop.permute.xlu0 %6842
      %6844 = vrot.lane.b32.xlu0 %v6772, 64
      %v6845 = vpop.permute.xlu0 %6844
      %6846 = vrot.lane.b32.xlu0 %v6773, 64
      %v6847 = vpop.permute.xlu0 %6846
      %6848 = vrot.lane.b32.xlu0 %v6774, 64
      %v6849 = vpop.permute.xlu0 %6848
      %6850 = vrot.lane.b32.xlu0 %v6775, 64
      %v6851 = vpop.permute.xlu0 %6850
      %6852 = vrot.lane.b32.xlu0 %v6776, 64
      %v6853 = vpop.permute.xlu0 %6852
      %6854 = vrot.lane.b32.xlu0 %v6777, 64
      %v6855 = vpop.permute.xlu0 %6854
      %6856 = vrot.lane.b32.xlu0 %v6778, 64
      %v6857 = vpop.permute.xlu0 %6856
      %6858 = vrot.lane.b32.xlu0 %v6779, 64
      %v6859 = vpop.permute.xlu0 %6858
      %6860 = vrot.lane.b32.xlu0 %v6780, 64
      %v6861 = vpop.permute.xlu0 %6860
      %6862 = vrot.lane.b32.xlu0 %v6781, 64
      %v6863 = vpop.permute.xlu0 %6862
      %6864 = vrot.lane.b32.xlu0 %v6782, 64
      %v6865 = vpop.permute.xlu0 %6864
      %6866 = vrot.lane.b32.xlu0 %v6783, 64
      %v6867 = vpop.permute.xlu0 %6866
      %6868 = vrot.lane.b32.xlu0 %v6784, 64
      %v6869 = vpop.permute.xlu0 %6868
      %6870 = vrot.lane.b32.xlu0 %v6785, 64
      %v6871 = vpop.permute.xlu0 %6870
      %6872 = vrot.lane.b32.xlu0 %v6786, 64
      %v6873 = vpop.permute.xlu0 %6872
      %6874 = vrot.lane.b32.xlu0 %v6787, 64
      %v6875 = vpop.permute.xlu0 %6874
      %6876 = vrot.lane.b32.xlu0 %v6788, 64
      %v6877 = vpop.permute.xlu0 %6876
      %6878 = vrot.lane.b32.xlu0 %v6789, 64
      %v6879 = vpop.permute.xlu0 %6878
      %6880 = vrot.lane.b32.xlu0 %v6790, 64
      %v6881 = vpop.permute.xlu0 %6880
      %6882 = vrot.lane.b32.xlu0 %v6791, 64
      %v6883 = vpop.permute.xlu0 %6882
      %6884 = vrot.lane.b32.xlu0 %v6792, 64
      %v6885 = vpop.permute.xlu0 %6884
      %6886 = vrot.lane.b32.xlu0 %v6793, 64
      %v6887 = vpop.permute.xlu0 %6886
      %6888 = vrot.lane.b32.xlu0 %v6794, 64
      %v6889 = vpop.permute.xlu0 %6888
      %6890 = vrot.lane.b32.xlu0 %v6795, 64
      %v6891 = vpop.permute.xlu0 %6890
      %v6924 = vmul.f32 %v464, %v6829
      %v6925 = vmul.f32 %v465, %v6831
      %v6926 = vmul.f32 %v466, %v6833
      %v6927 = vmul.f32 %v467, %v6835
      %v6928 = vmul.f32 %v468, %v6837
      %v6929 = vmul.f32 %v469, %v6839
      %v6930 = vmul.f32 %v470, %v6841
      %v6931 = vmul.f32 %v471, %v6843
      %v6932 = vmul.f32 %v472, %v6845
      %v6933 = vmul.f32 %v473, %v6847
      %v6934 = vmul.f32 %v474, %v6849
      %v6935 = vmul.f32 %v475, %v6851
      %v6936 = vmul.f32 %v476, %v6853
      %v6937 = vmul.f32 %v477, %v6855
      %v6938 = vmul.f32 %v478, %v6857
      %v6939 = vmul.f32 %v479, %v6859
      %v6940 = vmul.f32 %v480, %v6861
      %v6941 = vmul.f32 %v481, %v6863
      %v6942 = vmul.f32 %v482, %v6865
      %v6943 = vmul.f32 %v483, %v6867
      %v6944 = vmul.f32 %v484, %v6869
      %v6945 = vmul.f32 %v485, %v6871
      %v6946 = vmul.f32 %v486, %v6873
      %v6947 = vmul.f32 %v487, %v6875
      %v6948 = vmul.f32 %v488, %v6877
      %v6949 = vmul.f32 %v489, %v6879
      %v6950 = vmul.f32 %v490, %v6881
      %v6951 = vmul.f32 %v491, %v6883
      %v6952 = vmul.f32 %v492, %v6885
      %v6953 = vmul.f32 %v493, %v6887
      %v6954 = vmul.f32 %v494, %v6889
      %v6955 = vmul.f32 %v495, %v6891
      %v6956 = vadd.f32 %v6636, %v6924
      %v6957 = vadd.f32 %v6637, %v6925
      %v6958 = vadd.f32 %v6638, %v6926
      %v6959 = vadd.f32 %v6639, %v6927
      %v6960 = vadd.f32 %v6640, %v6928
      %v6961 = vadd.f32 %v6641, %v6929
      %v6962 = vadd.f32 %v6642, %v6930
      %v6963 = vadd.f32 %v6643, %v6931
      %v6964 = vadd.f32 %v6644, %v6932
      %v6965 = vadd.f32 %v6645, %v6933
      %v6966 = vadd.f32 %v6646, %v6934
      %v6967 = vadd.f32 %v6647, %v6935
      %v6968 = vadd.f32 %v6648, %v6936
      %v6969 = vadd.f32 %v6649, %v6937
      %v6970 = vadd.f32 %v6650, %v6938
      %v6971 = vadd.f32 %v6651, %v6939
      %v6972 = vadd.f32 %v6652, %v6940
      %v6973 = vadd.f32 %v6653, %v6941
      %v6974 = vadd.f32 %v6654, %v6942
      %v6975 = vadd.f32 %v6655, %v6943
      %v6976 = vadd.f32 %v6656, %v6944
      %v6977 = vadd.f32 %v6657, %v6945
      %v6978 = vadd.f32 %v6658, %v6946
      %v6979 = vadd.f32 %v6659, %v6947
      %v6980 = vadd.f32 %v6660, %v6948
      %v6981 = vadd.f32 %v6661, %v6949
      %v6982 = vadd.f32 %v6662, %v6950
      %v6983 = vadd.f32 %v6663, %v6951
      %v6984 = vadd.f32 %v6664, %v6952
      %v6985 = vadd.f32 %v6665, %v6953
      %v6986 = vadd.f32 %v6666, %v6954
      %v6987 = vadd.f32 %v6667, %v6955
      %6988 = vst.msk [vmem:[%s431] sm:$0xff] %vm496, %v6956
      %6989 = vst.msk [vmem:[%s431 + $0x8] sm:$0xff] %vm496, %v6957
      %6990 = vst.msk [vmem:[%s431 + $0x10] sm:$0xff] %vm496, %v6958
      %6991 = vst.msk [vmem:[%s431 + $0x18] sm:$0xff] %vm496, %v6959
      %6992 = vst.msk [vmem:[%s431 + $0x20] sm:$0xff] %vm496, %v6960
      %6993 = vst.msk [vmem:[%s431 + $0x28] sm:$0xff] %vm496, %v6961
      %6994 = vst.msk [vmem:[%s431 + $0x30] sm:$0xff] %vm496, %v6962
      %6995 = vst.msk [vmem:[%s431 + $0x38] sm:$0xff] %vm496, %v6963
      %6996 = vst.msk [vmem:[%s431 + $0x40] sm:$0xff] %vm496, %v6964
      %6997 = vst.msk [vmem:[%s431 + $0x48] sm:$0xff] %vm496, %v6965
      %6998 = vst.msk [vmem:[%s431 + $0x50] sm:$0xff] %vm496, %v6966
      %6999 = vst.msk [vmem:[%s431 + $0x58] sm:$0xff] %vm496, %v6967
      %7000 = vst.msk [vmem:[%s431 + $0x60] sm:$0xff] %vm496, %v6968
      %7001 = vst.msk [vmem:[%s431 + $0x68] sm:$0xff] %vm496, %v6969
      %7002 = vst.msk [vmem:[%s431 + $0x70] sm:$0xff] %vm496, %v6970
      %7003 = vst.msk [vmem:[%s431 + $0x78] sm:$0xff] %vm496, %v6971
      %7004 = vst.msk [vmem:[%s431 + $0x80] sm:$0xff] %vm496, %v6972
      %7005 = vst.msk [vmem:[%s431 + $0x88] sm:$0xff] %vm496, %v6973
      %7006 = vst.msk [vmem:[%s431 + $0x90] sm:$0xff] %vm496, %v6974
      %7007 = vst.msk [vmem:[%s431 + $0x98] sm:$0xff] %vm496, %v6975
      %7008 = vst.msk [vmem:[%s431 + $0xa0] sm:$0xff] %vm496, %v6976
      %7009 = vst.msk [vmem:[%s431 + $0xa8] sm:$0xff] %vm496, %v6977
      %7010 = vst.msk [vmem:[%s431 + $0xb0] sm:$0xff] %vm496, %v6978
      %7011 = vst.msk [vmem:[%s431 + $0xb8] sm:$0xff] %vm496, %v6979
      %7012 = vst.msk [vmem:[%s431 + $0xc0] sm:$0xff] %vm496, %v6980
      %7013 = vst.msk [vmem:[%s431 + $0xc8] sm:$0xff] %vm496, %v6981
      %7014 = vst.msk [vmem:[%s431 + $0xd0] sm:$0xff] %vm496, %v6982
      %7015 = vst.msk [vmem:[%s431 + $0xd8] sm:$0xff] %vm496, %v6983
      %7016 = vst.msk [vmem:[%s431 + $0xe0] sm:$0xff] %vm496, %v6984
      %7017 = vst.msk [vmem:[%s431 + $0xe8] sm:$0xff] %vm496, %v6985
      %7018 = vst.msk [vmem:[%s431 + $0xf0] sm:$0xff] %vm496, %v6986
      %7019 = vst.msk [vmem:[%s431 + $0xf8] sm:$0xff] %vm496, %v6987
      %v7020 = vadd.f32 %v432, %v6956
      %v7021 = vadd.f32 %v433, %v6957
      %v7022 = vadd.f32 %v434, %v6958
      %v7023 = vadd.f32 %v435, %v6959
      %v7024 = vadd.f32 %v436, %v6960
      %v7025 = vadd.f32 %v437, %v6961
      %v7026 = vadd.f32 %v438, %v6962
      %v7027 = vadd.f32 %v439, %v6963
      %v7028 = vadd.f32 %v440, %v6964
      %v7029 = vadd.f32 %v441, %v6965
      %v7030 = vadd.f32 %v442, %v6966
      %v7031 = vadd.f32 %v443, %v6967
      %v7032 = vadd.f32 %v444, %v6968
      %v7033 = vadd.f32 %v445, %v6969
      %v7034 = vadd.f32 %v446, %v6970
      %v7035 = vadd.f32 %v447, %v6971
      %v7036 = vadd.f32 %v448, %v6972
      %v7037 = vadd.f32 %v449, %v6973
      %v7038 = vadd.f32 %v450, %v6974
      %v7039 = vadd.f32 %v451, %v6975
      %v7040 = vadd.f32 %v452, %v6976
      %v7041 = vadd.f32 %v453, %v6977
      %v7042 = vadd.f32 %v454, %v6978
      %v7043 = vadd.f32 %v455, %v6979
      %v7044 = vadd.f32 %v456, %v6980
      %v7045 = vadd.f32 %v457, %v6981
      %v7046 = vadd.f32 %v458, %v6982
      %v7047 = vadd.f32 %v459, %v6983
      %v7048 = vadd.f32 %v460, %v6984
      %v7049 = vadd.f32 %v461, %v6985
      %v7050 = vadd.f32 %v462, %v6986
      %v7051 = vadd.f32 %v463, %v6987
      %v7052 = vmul.f32 %v7020, 0.5
      %v7053 = vmul.f32 %v7021, 0.5
      %v7054 = vmul.f32 %v7022, 0.5
      %v7055 = vmul.f32 %v7023, 0.5
      %v7056 = vmul.f32 %v7024, 0.5
      %v7057 = vmul.f32 %v7025, 0.5
      %v7058 = vmul.f32 %v7026, 0.5
      %v7059 = vmul.f32 %v7027, 0.5
      %v7060 = vmul.f32 %v7028, 0.5
      %v7061 = vmul.f32 %v7029, 0.5
      %v7062 = vmul.f32 %v7030, 0.5
      %v7063 = vmul.f32 %v7031, 0.5
      %v7064 = vmul.f32 %v7032, 0.5
      %v7065 = vmul.f32 %v7033, 0.5
      %v7066 = vmul.f32 %v7034, 0.5
      %v7067 = vmul.f32 %v7035, 0.5
      %v7068 = vmul.f32 %v7036, 0.5
      %v7069 = vmul.f32 %v7037, 0.5
      %v7070 = vmul.f32 %v7038, 0.5
      %v7071 = vmul.f32 %v7039, 0.5
      %v7072 = vmul.f32 %v7040, 0.5
      %v7073 = vmul.f32 %v7041, 0.5
      %v7074 = vmul.f32 %v7042, 0.5
      %v7075 = vmul.f32 %v7043, 0.5
      %v7076 = vmul.f32 %v7044, 0.5
      %v7077 = vmul.f32 %v7045, 0.5
      %v7078 = vmul.f32 %v7046, 0.5
      %v7079 = vmul.f32 %v7047, 0.5
      %v7080 = vmul.f32 %v7048, 0.5
      %v7081 = vmul.f32 %v7049, 0.5
      %v7082 = vmul.f32 %v7050, 0.5
      %v7083 = vmul.f32 %v7051, 0.5
      %7084 = vst.msk [vmem:[%s421] sm:$0xff] %vm496, %v7052
      %7085 = vst.msk [vmem:[%s421 + $0x8] sm:$0xff] %vm496, %v7053
      %7086 = vst.msk [vmem:[%s421 + $0x10] sm:$0xff] %vm496, %v7054
      %7087 = vst.msk [vmem:[%s421 + $0x18] sm:$0xff] %vm496, %v7055
      %7088 = vst.msk [vmem:[%s421 + $0x20] sm:$0xff] %vm496, %v7056
      %7089 = vst.msk [vmem:[%s421 + $0x28] sm:$0xff] %vm496, %v7057
      %7090 = vst.msk [vmem:[%s421 + $0x30] sm:$0xff] %vm496, %v7058
      %7091 = vst.msk [vmem:[%s421 + $0x38] sm:$0xff] %vm496, %v7059
      %7092 = vst.msk [vmem:[%s421 + $0x40] sm:$0xff] %vm496, %v7060
      %7093 = vst.msk [vmem:[%s421 + $0x48] sm:$0xff] %vm496, %v7061
      %7094 = vst.msk [vmem:[%s421 + $0x50] sm:$0xff] %vm496, %v7062
      %7095 = vst.msk [vmem:[%s421 + $0x58] sm:$0xff] %vm496, %v7063
      %7096 = vst.msk [vmem:[%s421 + $0x60] sm:$0xff] %vm496, %v7064
      %7097 = vst.msk [vmem:[%s421 + $0x68] sm:$0xff] %vm496, %v7065
      %7098 = vst.msk [vmem:[%s421 + $0x70] sm:$0xff] %vm496, %v7066
      %7099 = vst.msk [vmem:[%s421 + $0x78] sm:$0xff] %vm496, %v7067
      %7100 = vst.msk [vmem:[%s421 + $0x80] sm:$0xff] %vm496, %v7068
      %7101 = vst.msk [vmem:[%s421 + $0x88] sm:$0xff] %vm496, %v7069
      %7102 = vst.msk [vmem:[%s421 + $0x90] sm:$0xff] %vm496, %v7070
      %7103 = vst.msk [vmem:[%s421 + $0x98] sm:$0xff] %vm496, %v7071
      %7104 = vst.msk [vmem:[%s421 + $0xa0] sm:$0xff] %vm496, %v7072
      %7105 = vst.msk [vmem:[%s421 + $0xa8] sm:$0xff] %vm496, %v7073
      %7106 = vst.msk [vmem:[%s421 + $0xb0] sm:$0xff] %vm496, %v7074
      %7107 = vst.msk [vmem:[%s421 + $0xb8] sm:$0xff] %vm496, %v7075
      %7108 = vst.msk [vmem:[%s421 + $0xc0] sm:$0xff] %vm496, %v7076
      %7109 = vst.msk [vmem:[%s421 + $0xc8] sm:$0xff] %vm496, %v7077
      %7110 = vst.msk [vmem:[%s421 + $0xd0] sm:$0xff] %vm496, %v7078
      %7111 = vst.msk [vmem:[%s421 + $0xd8] sm:$0xff] %vm496, %v7079
      %7112 = vst.msk [vmem:[%s421 + $0xe0] sm:$0xff] %vm496, %v7080
      %7113 = vst.msk [vmem:[%s421 + $0xe8] sm:$0xff] %vm496, %v7081
      %7114 = vst.msk [vmem:[%s421 + $0xf0] sm:$0xff] %vm496, %v7082
      %7115 = vst.msk [vmem:[%s421 + $0xf8] sm:$0xff] %vm496, %v7083
      %v7116 = vadd.f32 %v464, %v6956
      %v7117 = vadd.f32 %v465, %v6957
      %v7118 = vadd.f32 %v466, %v6958
      %v7119 = vadd.f32 %v467, %v6959
      %v7120 = vadd.f32 %v468, %v6960
      %v7121 = vadd.f32 %v469, %v6961
      %v7122 = vadd.f32 %v470, %v6962
      %v7123 = vadd.f32 %v471, %v6963
      %v7124 = vadd.f32 %v472, %v6964
      %v7125 = vadd.f32 %v473, %v6965
      %v7126 = vadd.f32 %v474, %v6966
      %v7127 = vadd.f32 %v475, %v6967
      %v7128 = vadd.f32 %v476, %v6968
      %v7129 = vadd.f32 %v477, %v6969
      %v7130 = vadd.f32 %v478, %v6970
      %v7131 = vadd.f32 %v479, %v6971
      %v7132 = vadd.f32 %v480, %v6972
      %v7133 = vadd.f32 %v481, %v6973
      %v7134 = vadd.f32 %v482, %v6974
      %v7135 = vadd.f32 %v483, %v6975
      %v7136 = vadd.f32 %v484, %v6976
      %v7137 = vadd.f32 %v485, %v6977
      %v7138 = vadd.f32 %v486, %v6978
      %v7139 = vadd.f32 %v487, %v6979
      %v7140 = vadd.f32 %v488, %v6980
      %v7141 = vadd.f32 %v489, %v6981
      %v7142 = vadd.f32 %v490, %v6982
      %v7143 = vadd.f32 %v491, %v6983
      %v7144 = vadd.f32 %v492, %v6984
      %v7145 = vadd.f32 %v493, %v6985
      %v7146 = vadd.f32 %v494, %v6986
      %v7147 = vadd.f32 %v495, %v6987
      %v7148 = vmul.f32 %v7116, 0.5
      %v7149 = vmul.f32 %v7117, 0.5
      %v7150 = vmul.f32 %v7118, 0.5
      %v7151 = vmul.f32 %v7119, 0.5
      %v7152 = vmul.f32 %v7120, 0.5
      %v7153 = vmul.f32 %v7121, 0.5
      %v7154 = vmul.f32 %v7122, 0.5
      %v7155 = vmul.f32 %v7123, 0.5
      %v7156 = vmul.f32 %v7124, 0.5
      %v7157 = vmul.f32 %v7125, 0.5
      %v7158 = vmul.f32 %v7126, 0.5
      %v7159 = vmul.f32 %v7127, 0.5
      %v7160 = vmul.f32 %v7128, 0.5
      %v7161 = vmul.f32 %v7129, 0.5
      %v7162 = vmul.f32 %v7130, 0.5
      %v7163 = vmul.f32 %v7131, 0.5
      %v7164 = vmul.f32 %v7132, 0.5
      %v7165 = vmul.f32 %v7133, 0.5
      %v7166 = vmul.f32 %v7134, 0.5
      %v7167 = vmul.f32 %v7135, 0.5
      %v7168 = vmul.f32 %v7136, 0.5
      %v7169 = vmul.f32 %v7137, 0.5
      %v7170 = vmul.f32 %v7138, 0.5
      %v7171 = vmul.f32 %v7139, 0.5
      %v7172 = vmul.f32 %v7140, 0.5
      %v7173 = vmul.f32 %v7141, 0.5
      %v7174 = vmul.f32 %v7142, 0.5
      %v7175 = vmul.f32 %v7143, 0.5
      %v7176 = vmul.f32 %v7144, 0.5
      %v7177 = vmul.f32 %v7145, 0.5
      %v7178 = vmul.f32 %v7146, 0.5
      %v7179 = vmul.f32 %v7147, 0.5
      %7180 = vst.msk [vmem:[%s426] sm:$0xff] %vm496, %v7148
      %7181 = vst.msk [vmem:[%s426 + $0x8] sm:$0xff] %vm496, %v7149
      %7182 = vst.msk [vmem:[%s426 + $0x10] sm:$0xff] %vm496, %v7150
      %7183 = vst.msk [vmem:[%s426 + $0x18] sm:$0xff] %vm496, %v7151
      %7184 = vst.msk [vmem:[%s426 + $0x20] sm:$0xff] %vm496, %v7152
      %7185 = vst.msk [vmem:[%s426 + $0x28] sm:$0xff] %vm496, %v7153
      %7186 = vst.msk [vmem:[%s426 + $0x30] sm:$0xff] %vm496, %v7154
      %7187 = vst.msk [vmem:[%s426 + $0x38] sm:$0xff] %vm496, %v7155
      %7188 = vst.msk [vmem:[%s426 + $0x40] sm:$0xff] %vm496, %v7156
      %7189 = vst.msk [vmem:[%s426 + $0x48] sm:$0xff] %vm496, %v7157
      %7190 = vst.msk [vmem:[%s426 + $0x50] sm:$0xff] %vm496, %v7158
      %7191 = vst.msk [vmem:[%s426 + $0x58] sm:$0xff] %vm496, %v7159
      %7192 = vst.msk [vmem:[%s426 + $0x60] sm:$0xff] %vm496, %v7160
      %7193 = vst.msk [vmem:[%s426 + $0x68] sm:$0xff] %vm496, %v7161
      %7194 = vst.msk [vmem:[%s426 + $0x70] sm:$0xff] %vm496, %v7162
      %7195 = vst.msk [vmem:[%s426 + $0x78] sm:$0xff] %vm496, %v7163
      %7196 = vst.msk [vmem:[%s426 + $0x80] sm:$0xff] %vm496, %v7164
      %7197 = vst.msk [vmem:[%s426 + $0x88] sm:$0xff] %vm496, %v7165
      %7198 = vst.msk [vmem:[%s426 + $0x90] sm:$0xff] %vm496, %v7166
      %7199 = vst.msk [vmem:[%s426 + $0x98] sm:$0xff] %vm496, %v7167
      %7200 = vst.msk [vmem:[%s426 + $0xa0] sm:$0xff] %vm496, %v7168
      %7201 = vst.msk [vmem:[%s426 + $0xa8] sm:$0xff] %vm496, %v7169
      %7202 = vst.msk [vmem:[%s426 + $0xb0] sm:$0xff] %vm496, %v7170
      %7203 = vst.msk [vmem:[%s426 + $0xb8] sm:$0xff] %vm496, %v7171
      %7204 = vst.msk [vmem:[%s426 + $0xc0] sm:$0xff] %vm496, %v7172
      %7205 = vst.msk [vmem:[%s426 + $0xc8] sm:$0xff] %vm496, %v7173
      %7206 = vst.msk [vmem:[%s426 + $0xd0] sm:$0xff] %vm496, %v7174
      %7207 = vst.msk [vmem:[%s426 + $0xd8] sm:$0xff] %vm496, %v7175
      %7208 = vst.msk [vmem:[%s426 + $0xe0] sm:$0xff] %vm496, %v7176
      %7209 = vst.msk [vmem:[%s426 + $0xe8] sm:$0xff] %vm496, %v7177
      %7210 = vst.msk [vmem:[%s426 + $0xf0] sm:$0xff] %vm496, %v7178
      %7211 = vst.msk [vmem:[%s426 + $0xf8] sm:$0xff] %vm496, %v7179
      %p7212 = scmp.lt.s32.totalorder %s23, 1
      %s7213 = scalar_select %p7212, %s23, 1
      %s7214 = smul.addr %s7213, 32
      %s7215 = smul.addr %s7214, 8
      %s7216 = scalar_lea.vmem %s9, %s7215
      %p7217 = scmp.lt.s32.totalorder %s23, 1
      %s7218 = scalar_select %p7217, %s23, 1
      %s7219 = smul.addr %s7218, 32
      %s7220 = smul.addr %s7219, 8
      %s7221 = scalar_lea.vmem %s10, %s7220
      %p7222 = scmp.lt.s32.totalorder %s23, 1
      %s7223 = scalar_select %p7222, %s23, 1
      %s7224 = smul.addr %s7223, 32
      %s7225 = smul.addr %s7224, 8
      %s7226 = scalar_lea.vmem %s11, %s7225
      // Predicated region
      $region57: #{tpu_custom_call.1} parent=55 // pred_check
        %p7227 = pneg %p240
      $region58: #{tpu_custom_call.1} parent=55 // pred_check_branch
        %7229 = sbr.rel (%p7227) target = $region60
      $region59: #{tpu_custom_call.1} parent=55 // pred_region
        _
      $region60: #{tpu_custom_call.1} parent=55 // pred_fallthru
        _
      // Predicated region
      $region61: #{tpu_custom_call.1} parent=55 // pred_check
        %p7230 = pneg %p266
      $region62: #{tpu_custom_call.1} parent=55 // pred_check_branch
        %7232 = sbr.rel (%p7230) target = $region64
      $region63: #{tpu_custom_call.1} parent=55 // pred_region
        _
      $region64: #{tpu_custom_call.1} parent=55 // pred_fallthru
        _
      // Predicated region
      $region65: #{tpu_custom_call.1} parent=55 // pred_check
        %p7233 = pneg %p292
      $region66: #{tpu_custom_call.1} parent=55 // pred_check_branch
        %7235 = sbr.rel (%p7233) target = $region68
      $region67: #{tpu_custom_call.1} parent=55 // pred_region
        _
      $region68: #{tpu_custom_call.1} parent=55 // pred_fallthru
        _
    $region56: #{tpu_custom_call.1} parent=5 // pred_fallthru
      _
    %p7236 = scmp.le.s32.totalorder 2, %s18
    // Predicated region
    $region69: #{tpu_custom_call.1} parent=5 // pred_check
      %p7237 = pneg %p7236
    $region70: #{tpu_custom_call.1} parent=5 // pred_check_branch
      %7239 = sbr.rel (%p7237) target = $region72
    $region71: #{tpu_custom_call.1} parent=5 // pred_region
      %s7240 = ssub.s32 %s18, 2
      // Predicated region
      $region73: #{tpu_custom_call.1} parent=71 // pred_check
        %p7241 = pneg %p246
      $region74: #{tpu_custom_call.1} parent=71 // pred_check_branch
        %7243 = sbr.rel (%p7241) target = $region76
      $region75: #{tpu_custom_call.1} parent=71 // pred_region
        %p7244 = scmp.lt.s32.totalorder %s24, 1
        %s7245 = scalar_select %p7244, %s24, 1
        %s7246 = smul.addr %s7245, 32
        %s7247 = smul.addr %s7246, 8
        %s7248 = scalar_lea.vmem %s9, %s7247
      $region76: #{tpu_custom_call.1} parent=71 // pred_fallthru
        _
      // Predicated region
      $region77: #{tpu_custom_call.1} parent=71 // pred_check
        %p7249 = pneg %p272
      $region78: #{tpu_custom_call.1} parent=71 // pred_check_branch
        %7251 = sbr.rel (%p7249) target = $region80
      $region79: #{tpu_custom_call.1} parent=71 // pred_region
        %p7252 = scmp.lt.s32.totalorder %s24, 1
        %s7253 = scalar_select %p7252, %s24, 1
        %s7254 = smul.addr %s7253, 32
        %s7255 = smul.addr %s7254, 8
        %s7256 = scalar_lea.vmem %s10, %s7255
      $region80: #{tpu_custom_call.1} parent=71 // pred_fallthru
        _
      // Predicated region
      $region81: #{tpu_custom_call.1} parent=71 // pred_check
        %p7257 = pneg %p298
      $region82: #{tpu_custom_call.1} parent=71 // pred_check_branch
        %7259 = sbr.rel (%p7257) target = $region84
      $region83: #{tpu_custom_call.1} parent=71 // pred_region
        %p7260 = scmp.lt.s32.totalorder %s24, 1
        %s7261 = scalar_select %p7260, %s24, 1
        %s7262 = smul.addr %s7261, 32
        %s7263 = smul.addr %s7262, 8
        %s7264 = scalar_lea.vmem %s11, %s7263
      $region84: #{tpu_custom_call.1} parent=71 // pred_fallthru
        _
    $region72: #{tpu_custom_call.1} parent=5 // pred_fallthru
      _
  $region6: #{tpu_custom_call.1} parent=0 // loop_footer
    %s22 = sadd.s32 1, %s18
  $region7: #{tpu_custom_call.1} parent=0 // loop_footer_branch
    %17 = sbr.rel target = $region3
  $region8: #{tpu_custom_call.1} parent=0 // loop_exit
    _

</llo_original>
